<compile_context>
chip_gen: v6e
topology: v6e:2x2x1
jax: 0.10.0
libtpu: 0.0.40
codegen_flags: <defaults>
</compile_context>

<pallas_src>
import math

import jax
import jax.numpy as jnp
from jax import lax
from jax.experimental import pallas as pl
from jax.experimental.pallas import tpu as pltpu


# ----------------------------------------------------------------------------
# Fused Pallas kernel: embedding + PE + one transformer block per grid step
# (grid = (batch, layer)) + vocab head on the last layer step.
# ----------------------------------------------------------------------------
def fused_forward_kernel(tok_ref, emb_ref, pe_ref,
                         wqkv_ref, bqkv_ref, wo_ref, bo_ref,
                         ln1w_ref, ln1b_ref,
                         w1_ref, b1_ref, w2_ref, b2_ref,
                         ln2w_ref, ln2b_ref,
                         wout_ref, bout_ref,
                         o_ref, x_vmem):
    l = pl.program_id(1)
    num_layers = pl.num_programs(1)
    seq, embed = pe_ref.shape
    vocab = emb_ref.shape[0]

    # --- layer 0: embedding lookup (one-hot MXU matmul) + positional encoding ------
    @pl.when(l == 0)
    def _():
        tok = tok_ref[...]                                         # (T, 1) int32
        vocab_iota = lax.broadcasted_iota(jnp.int32, (seq, vocab), 1)
        one_hot = (tok == vocab_iota).astype(jnp.float32)          # (T, V)
        x_vmem[...] = jnp.dot(one_hot, emb_ref[...],
                              preferred_element_type=jnp.float32) + pe_ref[...]
        # TODO(synk): nn.Dropout after the PE add is identity (eval mode).

    x = x_vmem[...]                                                # (T, E) f32

    # --- per-batch "causal" mask built in-kernel (no mask operand) ------------------
    # Faithful reproduction of `attn_scores.masked_fill(mask == 0, -1e9)`:
    # the reference's mask is 0.0 on/below the diagonal, so those positions get -1e9.
    row = lax.broadcasted_iota(jnp.int32, (seq, seq), 0)
    col = lax.broadcasted_iota(jnp.int32, (seq, seq), 1)
    masked = col <= row

    # --- fused single-head self attention (scale pre-folded into the q slice) -------
    qkv = jnp.dot(x, wqkv_ref[0],
                  preferred_element_type=jnp.float32) + bqkv_ref[0]   # (T, 128)
    q = qkv[:, 0 * embed:1 * embed]
    k = qkv[:, 1 * embed:2 * embed]
    v = qkv[:, 2 * embed:3 * embed]

    s = jnp.dot(q, k.T, preferred_element_type=jnp.float32)           # (T, T)
    s = jnp.where(masked, jnp.float32(-1e9), s)

    m = jnp.max(s, axis=-1, keepdims=True)
    e = jnp.exp(s - m)
    denom = jnp.sum(e, axis=-1, keepdims=True)
    attn = e * pl.reciprocal(denom, approx=True)                       # EUP reciprocal

    attn_out = jnp.dot(attn, v, preferred_element_type=jnp.float32)
    attn_out = jnp.dot(attn_out, wo_ref[0],
                       preferred_element_type=jnp.float32) + bo_ref[0]

    # --- residual + LayerNorm 1 ------------------------------------------------------
    h = x + attn_out
    mu = jnp.mean(h, axis=-1, keepdims=True)
    var = jnp.mean((h - mu) ** 2, axis=-1, keepdims=True)
    h = (h - mu) * lax.rsqrt(var + 1e-5) * ln1w_ref[0] + ln1b_ref[0]

    # --- feed forward: bf16 weights straight into the MXU, f32 accumulation ----------
    ff = jnp.dot(h.astype(jnp.bfloat16), w1_ref[0],
                 preferred_element_type=jnp.float32) + b1_ref[0]
    ff = jnp.maximum(ff, 0.0)
    ff = jnp.dot(ff.astype(jnp.bfloat16), w2_ref[0],
                 preferred_element_type=jnp.float32) + b2_ref[0]

    # --- residual + LayerNorm 2 -------------------------------------------------------
    y = h + ff
    mu2 = jnp.mean(y, axis=-1, keepdims=True)
    var2 = jnp.mean((y - mu2) ** 2, axis=-1, keepdims=True)
    x_new = (y - mu2) * lax.rsqrt(var2 + 1e-5) * ln2w_ref[0] + ln2b_ref[0]
    x_vmem[...] = x_new

    # --- last layer: vocab projection, lane-dense (V padded to 128), bf16 into MXU ---
    @pl.when(l == num_layers - 1)
    def _():
        o_ref[...] = jnp.dot(x_new.astype(jnp.bfloat16), wout_ref[...],
                             preferred_element_type=jnp.float32) + bout_ref[...]


# ----------------------------------------------------------------------------
# One-time parameter preprocessing (hoisted out of the per-call forward path)
# ----------------------------------------------------------------------------
def prepare_params(params, pe, seq):
    V, E = params["emb"].shape
    L = len(params["blocks"])
    scale = jnp.float32(E ** (-0.5))
    QKV_PAD = 128                                   # 3*E padded to a full lane tile
    V_pad = ((V + 127) // 128) * 128

    stack = lambda name: jnp.stack([blk[name] for blk in params["blocks"]], axis=0)

    # Fuse q/k/v projections; fold the softmax scale into the q slice.
    wqkv = jnp.concatenate([stack("wq") * scale, stack("wk"), stack("wv")], axis=-1)
    bqkv = jnp.concatenate([stack("bq") * scale, stack("bk"), stack("bv")], axis=-1)
    wqkv = jnp.zeros((L, E, QKV_PAD), jnp.float32).at[:, :, :3 * E].set(wqkv)
    bqkv = jnp.zeros((L, 1, QKV_PAD), jnp.float32).at[:, :, :3 * E].set(bqkv)

    # Pad the vocab head to a lane-dense 128-wide output (sliced back after the call).
    w_out = jnp.zeros((E, V_pad), jnp.bfloat16).at[:, :V].set(params["w_out"])
    b_out = jnp.zeros((1, V_pad), jnp.float32).at[:, :V].set(params["b_out"])

    return dict(
        emb=params["emb"], pe=pe[:seq],
        wqkv=wqkv, bqkv=bqkv,
        wo=stack("wo"), bo=stack("bo"),
        ln1w=stack("ln1w"), ln1b=stack("ln1b"),
        w1=stack("w1"), b1=stack("b1"),
        w2=stack("w2"), b2=stack("b2"),
        ln2w=stack("ln2w"), ln2b=stack("ln2b"),
        w_out=w_out, b_out=b_out,
    )


# ----------------------------------------------------------------------------
# Wrapper: one pallas_call, grid = (batch, layer)
# ----------------------------------------------------------------------------
def text_gen_forward(tokens, prep):
    B, T = tokens.shape
    V, E = prep["emb"].shape
    L = prep["wqkv"].shape[0]
    V_pad = prep["w_out"].shape[1]
    BT = B * T

    tok = tokens.reshape(BT, 1).astype(jnp.int32)

    def full(a):
        shape = tuple(int(d) for d in a.shape)
        return pl.BlockSpec(shape, lambda b, l, _z=(0,) * len(shape): _z)

    def perlayer(a):
        shape = (1,) + tuple(int(d) for d in a.shape[1:])
        zeros = (0,) * (len(shape) - 1)
        return pl.BlockSpec(shape, lambda b, l, _z=zeros: (l,) + _z)

    in_specs = [
        pl.BlockSpec((T, 1), lambda b, l: (b, 0)),          # tokens (per-batch slab)
        full(prep["emb"]), full(prep["pe"]),
        perlayer(prep["wqkv"]), perlayer(prep["bqkv"]),
        perlayer(prep["wo"]), perlayer(prep["bo"]),
        perlayer(prep["ln1w"]), perlayer(prep["ln1b"]),
        perlayer(prep["w1"]), perlayer(prep["b1"]),
        perlayer(prep["w2"]), perlayer(prep["b2"]),
        perlayer(prep["ln2w"]), perlayer(prep["ln2b"]),
        full(prep["w_out"]), full(prep["b_out"]),
    ]

    out = pl.pallas_call(
        fused_forward_kernel,
        grid_spec=pltpu.PrefetchScalarGridSpec(
            num_scalar_prefetch=0,
            grid=(B, L),
            in_specs=in_specs,
            out_specs=pl.BlockSpec((T, V_pad), lambda b, l: (b, 0)),
            scratch_shapes=[pltpu.VMEM((T, E), jnp.float32)],   # resident activations
        ),
        out_shape=jax.ShapeDtypeStruct((BT, V_pad), jnp.float32),
        compiler_params=pltpu.CompilerParams(
            dimension_semantics=("parallel", "arbitrary")),
    )(tok, prep["emb"], prep["pe"],
      prep["wqkv"], prep["bqkv"], prep["wo"], prep["bo"],
      prep["ln1w"], prep["ln1b"],
      prep["w1"], prep["b1"], prep["w2"], prep["b2"],
      prep["ln2w"], prep["ln2b"],
      prep["w_out"], prep["b_out"])

    return out.reshape(B, T, V_pad)[:, :, :V]


# ----------------------------------------------------------------------------
# Deterministic parameter construction + helpers
# ----------------------------------------------------------------------------
def init_linear(key, fan_in, fan_out):
    k1, k2 = jax.random.split(key)
    bound = 1.0 / math.sqrt(fan_in)
    w = jax.random.uniform(k1, (fan_in, fan_out), jnp.float32, -bound, bound)
    b = jax.random.uniform(k2, (1, fan_out), jnp.float32, -bound, bound)
    return w, b


def make_params(key, vocab_size, embed_dim, num_layers, ff_dim):
    keys = jax.random.split(key, 2 + num_layers)
    params = {"emb": jax.random.normal(keys[0], (vocab_size, embed_dim), jnp.float32)}
    blocks = []
    for i in range(num_layers):
        ks = jax.random.split(keys[2 + i], 6)
        wq, bq = init_linear(ks[0], embed_dim, embed_dim)
        wk, bk = init_linear(ks[1], embed_dim, embed_dim)
        wv, bv = init_linear(ks[2], embed_dim, embed_dim)
        wo, bo = init_linear(ks[3], embed_dim, embed_dim)
        w1, b1 = init_linear(ks[4], embed_dim, ff_dim)
        w2, b2 = init_linear(ks[5], ff_dim, embed_dim)
        blocks.append(dict(
            wq=wq, bq=bq, wk=wk, bk=bk, wv=wv, bv=bv, wo=wo, bo=bo,
            ln1w=jnp.ones((1, embed_dim), jnp.float32),
            ln1b=jnp.zeros((1, embed_dim), jnp.float32),
            # FFN weights stored (and streamed / MXU-consumed) as bf16; biases stay f32.
            w1=w1.astype(jnp.bfloat16), b1=b1,
            w2=w2.astype(jnp.bfloat16), b2=b2,
            ln2w=jnp.ones((1, embed_dim), jnp.float32),
            ln2b=jnp.zeros((1, embed_dim), jnp.float32),
        ))
    params["blocks"] = blocks
    w_out, b_out = init_linear(keys[1], embed_dim, vocab_size)
    params["w_out"], params["b_out"] = w_out.astype(jnp.bfloat16), b_out
    return params


def make_positional_encoding(max_len, d_model):
    position = jnp.arange(max_len, dtype=jnp.float32)[:, None]
    div_term = jnp.exp(jnp.arange(0, d_model, 2, dtype=jnp.float32)
                       * (-math.log(10000.0) / d_model))
    pe = jnp.zeros((max_len, d_model), jnp.float32)
    pe = pe.at[:, 0::2].set(jnp.sin(position * div_term))
    pe = pe.at[:, 1::2].set(jnp.cos(position * div_term))
    return pe


def make_causal_mask(sz):
    # 0.0 on/below diagonal, -inf above — exactly like generate_square_subsequent_mask.
    lower = jnp.tril(jnp.ones((sz, sz), jnp.float32)) == 1
    return jnp.where(lower, 0.0, -jnp.inf).astype(jnp.float32)


# ----------------------------------------------------------------------------
# Pure-JAX reference.  Mirrors the PyTorch forward in eval mode, with the same
# quantized inference recipe as the kernel (bf16 FFN/vocab weights *and* the
# activations feeding those matmuls in bf16, f32 accumulation).  The true PyTorch
# model is all-f32; the bf16 weight storage is a deliberate perf choice shared by
# kernel and reference.
# ----------------------------------------------------------------------------
def reference_forward(tokens, params, pe, mask):
    f32 = jnp.float32
    x = params["emb"][tokens] + pe[None, : tokens.shape[1], :]
    E = x.shape[-1]
    scale = E ** (-0.5)
    for p in params["blocks"]:
        q = x @ p["wq"] + p["bq"][0]
        k = x @ p["wk"] + p["bk"][0]
        v = x @ p["wv"] + p["bv"][0]
        s = jnp.einsum("bte,bse->bts", q, k) * scale
        s = jnp.where(mask[None] == 0.0, -1e9, s)
        a = jax.nn.softmax(s, axis=-1)
        ao = jnp.einsum("bts,bse->bte", a, v) @ p["wo"] + p["bo"][0]
        h = x + ao
        mu = h.mean(-1, keepdims=True)
        var = ((h - mu) ** 2).mean(-1, keepdims=True)
        h = (h - mu) / jnp.sqrt(var + 1e-5) * p["ln1w"][0] + p["ln1b"][0]
        ff = jnp.dot(h.astype(jnp.bfloat16), p["w1"],
                     preferred_element_type=f32) + p["b1"][0]
        ff = jnp.maximum(ff, 0.0)
        ff = jnp.dot(ff.astype(jnp.bfloat16), p["w2"],
                     preferred_element_type=f32) + p["b2"][0]
        y = h + ff
        mu2 = y.mean(-1, keepdims=True)
        var2 = ((y - mu2) ** 2).mean(-1, keepdims=True)
        x = (y - mu2) / jnp.sqrt(var2 + 1e-5) * p["ln2w"][0] + p["ln2b"][0]
    return jnp.dot(x.astype(jnp.bfloat16), params["w_out"],
                   preferred_element_type=f32) + params["b_out"][0]


# ----------------------------------------------------------------------------
if __name__ == "__main__":
    VOCAB, EMBED, LAYERS, SEQ, FF = 50, 32, 2, 8, 2048
    BATCH = 2

    key = jax.random.PRNGKey(0)
    k_tok, k_param = jax.random.split(key)
    tokens = jax.random.randint(k_tok, (BATCH, SEQ), 0, VOCAB, dtype=jnp.int32)

    params = make_params(k_param, VOCAB, EMBED, LAYERS, FF)
    pe = make_positional_encoding(SEQ, EMBED)
    mask = make_causal_mask(SEQ)

    # One-time weight preprocessing (stacking / scale fold / padding) — not per call.
    prep = prepare_params(params, pe, SEQ)

    fwd = jax.jit(text_gen_forward)
    out = jax.block_until_ready(fwd(tokens, prep))

    ref = reference_forward(tokens, params, pe, mask)
    assert out.shape == (BATCH, SEQ, VOCAB)
    max_err = float(jnp.max(jnp.abs(out - ref)))
    assert jnp.allclose(out, ref, atol=1e-2, rtol=1e-2), \
        f"mismatch vs JAX reference (max_err={max_err})"

    print("KERNEL_OK")
</pallas_src>

<mosaic_0001>
module attributes {stable_mosaic.version = 11 : i64} {
  func.func @fused_forward_kernel(%arg0: i32, %arg1: i32, %arg2: memref<8x1xi32, #tpu.memory_space<vmem>>, %arg3: memref<50x32xf32, #tpu.memory_space<vmem>>, %arg4: memref<8x32xf32, #tpu.memory_space<vmem>>, %arg5: memref<1x32x128xf32, #tpu.memory_space<vmem>>, %arg6: memref<1x1x128xf32, #tpu.memory_space<vmem>>, %arg7: memref<1x32x32xf32, #tpu.memory_space<vmem>>, %arg8: memref<1x1x32xf32, #tpu.memory_space<vmem>>, %arg9: memref<1x1x32xf32, #tpu.memory_space<vmem>>, %arg10: memref<1x1x32xf32, #tpu.memory_space<vmem>>, %arg11: memref<1x32x2048xbf16, #tpu.memory_space<vmem>>, %arg12: memref<1x1x2048xf32, #tpu.memory_space<vmem>>, %arg13: memref<1x2048x32xbf16, #tpu.memory_space<vmem>>, %arg14: memref<1x1x32xf32, #tpu.memory_space<vmem>>, %arg15: memref<1x1x32xf32, #tpu.memory_space<vmem>>, %arg16: memref<1x1x32xf32, #tpu.memory_space<vmem>>, %arg17: memref<32x128xbf16, #tpu.memory_space<vmem>>, %arg18: memref<1x128xf32, #tpu.memory_space<vmem>>, %arg19: memref<8x128xf32, #tpu.memory_space<vmem>>, %arg20: memref<8x32xf32, #tpu.memory_space<vmem>>) attributes {dimension_semantics = [#tpu.dimension_semantics<parallel>, #tpu.dimension_semantics<arbitrary>], iteration_bounds = array<i64: 2, 2>, scalar_prefetch = 0 : i64, scratch_operands = 1 : i64, tpu.core_type = #tpu.core_type<tc>, window_params = [{transform_indices = @transform_0, window_bounds = array<i64: 8, 1>}, {pipeline_mode = #tpu.pipeline_mode<synchronous>, transform_indices = @transform_1, window_bounds = array<i64: 50, 32>}, {pipeline_mode = #tpu.pipeline_mode<synchronous>, transform_indices = @transform_2, window_bounds = array<i64: 8, 32>}, {transform_indices = @transform_3, window_bounds = array<i64: 1, 32, 128>}, {transform_indices = @transform_4, window_bounds = array<i64: 1, 1, 128>}, {transform_indices = @transform_5, window_bounds = array<i64: 1, 32, 32>}, {transform_indices = @transform_6, window_bounds = array<i64: 1, 1, 32>}, {transform_indices = @transform_7, window_bounds = array<i64: 1, 1, 32>}, {transform_indices = @transform_8, window_bounds = array<i64: 1, 1, 32>}, {transform_indices = @transform_9, window_bounds = array<i64: 1, 32, 2048>}, {transform_indices = @transform_10, window_bounds = array<i64: 1, 1, 2048>}, {transform_indices = @transform_11, window_bounds = array<i64: 1, 2048, 32>}, {transform_indices = @transform_12, window_bounds = array<i64: 1, 1, 32>}, {transform_indices = @transform_13, window_bounds = array<i64: 1, 1, 32>}, {transform_indices = @transform_14, window_bounds = array<i64: 1, 1, 32>}, {pipeline_mode = #tpu.pipeline_mode<synchronous>, transform_indices = @transform_15, window_bounds = array<i64: 32, 128>}, {pipeline_mode = #tpu.pipeline_mode<synchronous>, transform_indices = @transform_16, window_bounds = array<i64: 1, 128>}, {transform_indices = @transform_17, window_bounds = array<i64: 8, 128>}]} {
    %c0_i32 = arith.constant 0 : i32
    %0 = arith.cmpi eq, %arg1, %c0_i32 : i32
    %1 = arith.extui %0 : i1 to i32
    %c0_i32_0 = arith.constant 0 : i32
    %2 = arith.cmpi ne, %1, %c0_i32_0 : i32
    scf.if %2 {
      %c0_60 = arith.constant 0 : index
      %c0_61 = arith.constant 0 : index
      %115 = vector.load %arg2[%c0_60, %c0_61] : memref<8x1xi32, #tpu.memory_space<vmem>>, vector<8x1xi32>
      %116 = tpu.iota {dimensions = array<i32: 1>} : vector<8x50xi32>
      %117 = vector.broadcast %115 : vector<8x1xi32> to vector<8x50xi32>
      %118 = arith.cmpi eq, %117, %116 : vector<8x50xi32>
      %119 = arith.extui %118 : vector<8x50xi1> to vector<8x50xi32>
      %120 = arith.sitofp %119 : vector<8x50xi32> to vector<8x50xf32>
      %c0_62 = arith.constant 0 : index
      %c0_63 = arith.constant 0 : index
      %121 = vector.load %arg3[%c0_62, %c0_63] : memref<50x32xf32, #tpu.memory_space<vmem>>, vector<50x32xf32>
      %cst_64 = arith.constant dense<0.000000e+00> : vector<8x32xf32>
      %122 = tpu.matmul %120, %121, %cst_64 {dimension_numbers = #tpu.dot_dimension_numbers<[1], [0], [0], [1], [0, 0, 1, 1], [], []>} : vector<8x50xf32>, vector<50x32xf32>, vector<8x32xf32> -> vector<8x32xf32>
      %c0_65 = arith.constant 0 : index
      %c0_66 = arith.constant 0 : index
      %123 = vector.load %arg4[%c0_65, %c0_66] : memref<8x32xf32, #tpu.memory_space<vmem>>, vector<8x32xf32>
      %124 = arith.addf %122, %123 : vector<8x32xf32>
      %c0_67 = arith.constant 0 : index
      %c0_68 = arith.constant 0 : index
      %125 = vector.load %arg20[%c0_67, %c0_68] : memref<8x32xf32, #tpu.memory_space<vmem>>, vector<8x32xf32>
      tpu.vector_store %arg20[%c0_67, %c0_68], %124 {strides = array<i32>} : memref<8x32xf32, #tpu.memory_space<vmem>>, vector<8x32xf32>,
    } else {
    }
    %c0 = arith.constant 0 : index
    %c0_1 = arith.constant 0 : index
    %3 = vector.load %arg20[%c0, %c0_1] : memref<8x32xf32, #tpu.memory_space<vmem>>, vector<8x32xf32>
    %4 = tpu.iota {dimensions = array<i32: 0>} : vector<8x8xi32>
    %5 = tpu.iota {dimensions = array<i32: 1>} : vector<8x8xi32>
    %6 = arith.cmpi sle, %5, %4 : vector<8x8xi32>
    %c0_2 = arith.constant 0 : index
    %c0_3 = arith.constant 0 : index
    %c0_4 = arith.constant 0 : index
    %7 = vector.load %arg5[%c0_2, %c0_3, %c0_4] : memref<1x32x128xf32, #tpu.memory_space<vmem>>, vector<1x32x128xf32>
    %8 = vector.shape_cast %7 : vector<1x32x128xf32> to vector<32x128xf32>
    %cst = arith.constant dense<0.000000e+00> : vector<8x128xf32>
    %9 = tpu.matmul %3, %8, %cst {dimension_numbers = #tpu.dot_dimension_numbers<[1], [0], [0], [1], [0, 0, 1, 1], [], []>} : vector<8x32xf32>, vector<32x128xf32>, vector<8x128xf32> -> vector<8x128xf32>
    %c0_5 = arith.constant 0 : index
    %c0_6 = arith.constant 0 : index
    %c0_7 = arith.constant 0 : index
    %10 = vector.load %arg6[%c0_5, %c0_6, %c0_7] : memref<1x1x128xf32, #tpu.memory_space<vmem>>, vector<1x1x128xf32>
    %11 = vector.shape_cast %10 : vector<1x1x128xf32> to vector<1x128xf32>
    %12 = vector.broadcast %11 : vector<1x128xf32> to vector<8x128xf32>
    %13 = arith.addf %9, %12 : vector<8x128xf32>
    %14 = vector.extract_strided_slice %13 {offsets = [0, 0], sizes = [8, 32], strides = [1, 1]} : vector<8x128xf32> to vector<8x32xf32>
    %15 = vector.extract_strided_slice %13 {offsets = [0, 32], sizes = [8, 32], strides = [1, 1]} : vector<8x128xf32> to vector<8x32xf32>
    %16 = vector.extract_strided_slice %13 {offsets = [0, 64], sizes = [8, 32], strides = [1, 1]} : vector<8x128xf32> to vector<8x32xf32>
    %17 = tpu.transpose %15, [1, 0] : vector<8x32xf32> -> vector<32x8xf32>
    %cst_8 = arith.constant dense<0.000000e+00> : vector<8x8xf32>
    %18 = tpu.matmul %14, %17, %cst_8 {dimension_numbers = #tpu.dot_dimension_numbers<[1], [0], [0], [1], [0, 0, 1, 1], [], []>} : vector<8x32xf32>, vector<32x8xf32>, vector<8x8xf32> -> vector<8x8xf32>
    %cst_9 = arith.constant -1.000000e+09 : f32
    %19 = vector.broadcast %cst_9 : f32 to vector<8x8xf32>
    %20 = arith.select %6, %19, %18 : vector<8x8xi1>, vector<8x8xf32>
    %cst_10 = arith.constant dense<0xFF800000> : vector<8xf32>
    %21 = vector.multi_reduction <maximumf>, %20, %cst_10 [1] : vector<8x8xf32> to vector<8xf32>
    %22 = vector.shape_cast %21 : vector<8xf32> to vector<8x1xf32>
    %23 = vector.broadcast %22 : vector<8x1xf32> to vector<8x8xf32>
    %24 = arith.subf %20, %23 : vector<8x8xf32>
    %25 = math.exp %24 : vector<8x8xf32>
    %cst_11 = arith.constant dense<0.000000e+00> : vector<8xf32>
    %26 = vector.multi_reduction <add>, %25, %cst_11 [1] : vector<8x8xf32> to vector<8xf32>
    %27 = vector.shape_cast %26 : vector<8xf32> to vector<8x1xf32>
    %28 = tpu.reciprocal %27 {approx = true} : vector<8x1xf32> -> vector<8x1xf32>
    %29 = vector.broadcast %28 : vector<8x1xf32> to vector<8x8xf32>
    %30 = arith.mulf %25, %29 : vector<8x8xf32>
    %cst_12 = arith.constant dense<0.000000e+00> : vector<8x32xf32>
    %31 = tpu.matmul %30, %16, %cst_12 {dimension_numbers = #tpu.dot_dimension_numbers<[1], [0], [0], [1], [0, 0, 1, 1], [], []>} : vector<8x8xf32>, vector<8x32xf32>, vector<8x32xf32> -> vector<8x32xf32>
    %c0_13 = arith.constant 0 : index
    %c0_14 = arith.constant 0 : index
    %c0_15 = arith.constant 0 : index
    %32 = vector.load %arg7[%c0_13, %c0_14, %c0_15] : memref<1x32x32xf32, #tpu.memory_space<vmem>>, vector<1x32x32xf32>
    %33 = vector.shape_cast %32 : vector<1x32x32xf32> to vector<32x32xf32>
    %cst_16 = arith.constant dense<0.000000e+00> : vector<8x32xf32>
    %34 = tpu.matmul %31, %33, %cst_16 {dimension_numbers = #tpu.dot_dimension_numbers<[1], [0], [0], [1], [0, 0, 1, 1], [], []>} : vector<8x32xf32>, vector<32x32xf32>, vector<8x32xf32> -> vector<8x32xf32>
    %c0_17 = arith.constant 0 : index
    %c0_18 = arith.constant 0 : index
    %c0_19 = arith.constant 0 : index
    %35 = vector.load %arg8[%c0_17, %c0_18, %c0_19] : memref<1x1x32xf32, #tpu.memory_space<vmem>>, vector<1x1x32xf32>
    %36 = vector.shape_cast %35 : vector<1x1x32xf32> to vector<1x32xf32>
    %37 = vector.broadcast %36 : vector<1x32xf32> to vector<8x32xf32>
    %38 = arith.addf %34, %37 : vector<8x32xf32>
    %39 = arith.addf %3, %38 : vector<8x32xf32>
    %cst_20 = arith.constant dense<0.000000e+00> : vector<8xf32>
    %40 = vector.multi_reduction <add>, %39, %cst_20 [1] : vector<8x32xf32> to vector<8xf32>
    %41 = vector.shape_cast %40 : vector<8xf32> to vector<8x1xf32>
    %cst_21 = arith.constant 3.200000e+01 : f32
    %42 = vector.broadcast %cst_21 : f32 to vector<8x1xf32>
    %43 = arith.divf %41, %42 : vector<8x1xf32>
    %44 = vector.broadcast %43 : vector<8x1xf32> to vector<8x32xf32>
    %45 = arith.subf %39, %44 : vector<8x32xf32>
    %46 = arith.mulf %45, %45 : vector<8x32xf32>
    %cst_22 = arith.constant dense<0.000000e+00> : vector<8xf32>
    %47 = vector.multi_reduction <add>, %46, %cst_22 [1] : vector<8x32xf32> to vector<8xf32>
    %48 = vector.shape_cast %47 : vector<8xf32> to vector<8x1xf32>
    %cst_23 = arith.constant 3.200000e+01 : f32
    %49 = vector.broadcast %cst_23 : f32 to vector<8x1xf32>
    %50 = arith.divf %48, %49 : vector<8x1xf32>
    %51 = vector.broadcast %43 : vector<8x1xf32> to vector<8x32xf32>
    %52 = arith.subf %39, %51 : vector<8x32xf32>
    %cst_24 = arith.constant 9.99999974E-6 : f32
    %53 = vector.broadcast %cst_24 : f32 to vector<8x1xf32>
    %54 = arith.addf %50, %53 : vector<8x1xf32>
    %55 = math.rsqrt %54 : vector<8x1xf32>
    %56 = vector.broadcast %55 : vector<8x1xf32> to vector<8x32xf32>
    %57 = arith.mulf %52, %56 : vector<8x32xf32>
    %c0_25 = arith.constant 0 : index
    %c0_26 = arith.constant 0 : index
    %c0_27 = arith.constant 0 : index
    %58 = vector.load %arg9[%c0_25, %c0_26, %c0_27] : memref<1x1x32xf32, #tpu.memory_space<vmem>>, vector<1x1x32xf32>
    %59 = vector.shape_cast %58 : vector<1x1x32xf32> to vector<1x32xf32>
    %60 = vector.broadcast %59 : vector<1x32xf32> to vector<8x32xf32>
    %61 = arith.mulf %57, %60 : vector<8x32xf32>
    %c0_28 = arith.constant 0 : index
    %c0_29 = arith.constant 0 : index
    %c0_30 = arith.constant 0 : index
    %62 = vector.load %arg10[%c0_28, %c0_29, %c0_30] : memref<1x1x32xf32, #tpu.memory_space<vmem>>, vector<1x1x32xf32>
    %63 = vector.shape_cast %62 : vector<1x1x32xf32> to vector<1x32xf32>
    %64 = vector.broadcast %63 : vector<1x32xf32> to vector<8x32xf32>
    %65 = arith.addf %61, %64 : vector<8x32xf32>
    %66 = arith.truncf %65 : vector<8x32xf32> to vector<8x32xbf16>
    %c0_31 = arith.constant 0 : index
    %c0_32 = arith.constant 0 : index
    %c0_33 = arith.constant 0 : index
    %67 = vector.load %arg11[%c0_31, %c0_32, %c0_33] : memref<1x32x2048xbf16, #tpu.memory_space<vmem>>, vector<1x32x2048xbf16>
    %68 = vector.shape_cast %67 : vector<1x32x2048xbf16> to vector<32x2048xbf16>
    %cst_34 = arith.constant dense<0.000000e+00> : vector<8x2048xf32>
    %69 = tpu.matmul %66, %68, %cst_34 {dimension_numbers = #tpu.dot_dimension_numbers<[1], [0], [0], [1], [0, 0, 1, 1], [], []>} : vector<8x32xbf16>, vector<32x2048xbf16>, vector<8x2048xf32> -> vector<8x2048xf32>
    %c0_35 = arith.constant 0 : index
    %c0_36 = arith.constant 0 : index
    %c0_37 = arith.constant 0 : index
    %70 = vector.load %arg12[%c0_35, %c0_36, %c0_37] : memref<1x1x2048xf32, #tpu.memory_space<vmem>>, vector<1x1x2048xf32>
    %71 = vector.shape_cast %70 : vector<1x1x2048xf32> to vector<1x2048xf32>
    %72 = vector.broadcast %71 : vector<1x2048xf32> to vector<8x2048xf32>
    %73 = arith.addf %69, %72 : vector<8x2048xf32>
    %cst_38 = arith.constant 0.000000e+00 : f32
    %74 = vector.broadcast %cst_38 : f32 to vector<8x2048xf32>
    %75 = arith.maximumf %73, %74 : vector<8x2048xf32>
    %76 = arith.truncf %75 : vector<8x2048xf32> to vector<8x2048xbf16>
    %c0_39 = arith.constant 0 : index
    %c0_40 = arith.constant 0 : index
    %c0_41 = arith.constant 0 : index
    %77 = vector.load %arg13[%c0_39, %c0_40, %c0_41] : memref<1x2048x32xbf16, #tpu.memory_space<vmem>>, vector<1x2048x32xbf16>
    %78 = vector.shape_cast %77 : vector<1x2048x32xbf16> to vector<2048x32xbf16>
    %cst_42 = arith.constant dense<0.000000e+00> : vector<8x32xf32>
    %79 = tpu.matmul %76, %78, %cst_42 {dimension_numbers = #tpu.dot_dimension_numbers<[1], [0], [0], [1], [0, 0, 1, 1], [], []>} : vector<8x2048xbf16>, vector<2048x32xbf16>, vector<8x32xf32> -> vector<8x32xf32>
    %c0_43 = arith.constant 0 : index
    %c0_44 = arith.constant 0 : index
    %c0_45 = arith.constant 0 : index
    %80 = vector.load %arg14[%c0_43, %c0_44, %c0_45] : memref<1x1x32xf32, #tpu.memory_space<vmem>>, vector<1x1x32xf32>
    %81 = vector.shape_cast %80 : vector<1x1x32xf32> to vector<1x32xf32>
    %82 = vector.broadcast %81 : vector<1x32xf32> to vector<8x32xf32>
    %83 = arith.addf %79, %82 : vector<8x32xf32>
    %84 = arith.addf %65, %83 : vector<8x32xf32>
    %cst_46 = arith.constant dense<0.000000e+00> : vector<8xf32>
    %85 = vector.multi_reduction <add>, %84, %cst_46 [1] : vector<8x32xf32> to vector<8xf32>
    %86 = vector.shape_cast %85 : vector<8xf32> to vector<8x1xf32>
    %cst_47 = arith.constant 3.200000e+01 : f32
    %87 = vector.broadcast %cst_47 : f32 to vector<8x1xf32>
    %88 = arith.divf %86, %87 : vector<8x1xf32>
    %89 = vector.broadcast %88 : vector<8x1xf32> to vector<8x32xf32>
    %90 = arith.subf %84, %89 : vector<8x32xf32>
    %91 = arith.mulf %90, %90 : vector<8x32xf32>
    %cst_48 = arith.constant dense<0.000000e+00> : vector<8xf32>
    %92 = vector.multi_reduction <add>, %91, %cst_48 [1] : vector<8x32xf32> to vector<8xf32>
    %93 = vector.shape_cast %92 : vector<8xf32> to vector<8x1xf32>
    %cst_49 = arith.constant 3.200000e+01 : f32
    %94 = vector.broadcast %cst_49 : f32 to vector<8x1xf32>
    %95 = arith.divf %93, %94 : vector<8x1xf32>
    %96 = vector.broadcast %88 : vector<8x1xf32> to vector<8x32xf32>
    %97 = arith.subf %84, %96 : vector<8x32xf32>
    %cst_50 = arith.constant 9.99999974E-6 : f32
    %98 = vector.broadcast %cst_50 : f32 to vector<8x1xf32>
    %99 = arith.addf %95, %98 : vector<8x1xf32>
    %100 = math.rsqrt %99 : vector<8x1xf32>
    %101 = vector.broadcast %100 : vector<8x1xf32> to vector<8x32xf32>
    %102 = arith.mulf %97, %101 : vector<8x32xf32>
    %c0_51 = arith.constant 0 : index
    %c0_52 = arith.constant 0 : index
    %c0_53 = arith.constant 0 : index
    %103 = vector.load %arg15[%c0_51, %c0_52, %c0_53] : memref<1x1x32xf32, #tpu.memory_space<vmem>>, vector<1x1x32xf32>
    %104 = vector.shape_cast %103 : vector<1x1x32xf32> to vector<1x32xf32>
    %105 = vector.broadcast %104 : vector<1x32xf32> to vector<8x32xf32>
    %106 = arith.mulf %102, %105 : vector<8x32xf32>
    %c0_54 = arith.constant 0 : index
    %c0_55 = arith.constant 0 : index
    %c0_56 = arith.constant 0 : index
    %107 = vector.load %arg16[%c0_54, %c0_55, %c0_56] : memref<1x1x32xf32, #tpu.memory_space<vmem>>, vector<1x1x32xf32>
    %108 = vector.shape_cast %107 : vector<1x1x32xf32> to vector<1x32xf32>
    %109 = vector.broadcast %108 : vector<1x32xf32> to vector<8x32xf32>
    %110 = arith.addf %106, %109 : vector<8x32xf32>
    %c0_57 = arith.constant 0 : index
    %c0_58 = arith.constant 0 : index
    %111 = vector.load %arg20[%c0_57, %c0_58] : memref<8x32xf32, #tpu.memory_space<vmem>>, vector<8x32xf32>
    tpu.vector_store %arg20[%c0_57, %c0_58], %110 {strides = array<i32>} : memref<8x32xf32, #tpu.memory_space<vmem>>, vector<8x32xf32>,
    %c1_i32 = arith.constant 1 : i32
    %112 = arith.cmpi eq, %arg1, %c1_i32 : i32
    %113 = arith.extui %112 : i1 to i32
    %c0_i32_59 = arith.constant 0 : i32
    %114 = arith.cmpi ne, %113, %c0_i32_59 : i32
    scf.if %114 {
      %115 = arith.truncf %110 : vector<8x32xf32> to vector<8x32xbf16>
      %c0_60 = arith.constant 0 : index
      %c0_61 = arith.constant 0 : index
      %116 = vector.load %arg17[%c0_60, %c0_61] : memref<32x128xbf16, #tpu.memory_space<vmem>>, vector<32x128xbf16>
      %cst_62 = arith.constant dense<0.000000e+00> : vector<8x128xf32>
      %117 = tpu.matmul %115, %116, %cst_62 {dimension_numbers = #tpu.dot_dimension_numbers<[1], [0], [0], [1], [0, 0, 1, 1], [], []>} : vector<8x32xbf16>, vector<32x128xbf16>, vector<8x128xf32> -> vector<8x128xf32>
      %c0_63 = arith.constant 0 : index
      %c0_64 = arith.constant 0 : index
      %118 = vector.load %arg18[%c0_63, %c0_64] : memref<1x128xf32, #tpu.memory_space<vmem>>, vector<1x128xf32>
      %119 = vector.broadcast %118 : vector<1x128xf32> to vector<8x128xf32>
      %120 = arith.addf %117, %119 : vector<8x128xf32>
      %c0_65 = arith.constant 0 : index
      %c0_66 = arith.constant 0 : index
      %121 = vector.load %arg19[%c0_65, %c0_66] : memref<8x128xf32, #tpu.memory_space<vmem>>, vector<8x128xf32>
      tpu.vector_store %arg19[%c0_65, %c0_66], %120 {strides = array<i32>} : memref<8x128xf32, #tpu.memory_space<vmem>>, vector<8x128xf32>,
    } else {
    }
    return
  }
  func.func @transform_0(%arg0: i32, %arg1: i32) -> (i32, i32) {
    %c0_i32 = arith.constant 0 : i32
    %c0_i32_0 = arith.constant 0 : i32
    return %arg0, %c0_i32 : i32, i32
  }
  func.func @transform_1(%arg0: i32, %arg1: i32) -> (i32, i32) {
    %c0_i32 = arith.constant 0 : i32
    %c0_i32_0 = arith.constant 0 : i32
    %c0_i32_1 = arith.constant 0 : i32
    return %c0_i32, %c0_i32_0 : i32, i32
  }
  func.func @transform_2(%arg0: i32, %arg1: i32) -> (i32, i32) {
    %c0_i32 = arith.constant 0 : i32
    %c0_i32_0 = arith.constant 0 : i32
    %c0_i32_1 = arith.constant 0 : i32
    return %c0_i32, %c0_i32_0 : i32, i32
  }
  func.func @transform_3(%arg0: i32, %arg1: i32) -> (i32, i32, i32) {
    %c0_i32 = arith.constant 0 : i32
    %c0_i32_0 = arith.constant 0 : i32
    %c0_i32_1 = arith.constant 0 : i32
    return %arg1, %c0_i32, %c0_i32_0 : i32, i32, i32
  }
  func.func @transform_4(%arg0: i32, %arg1: i32) -> (i32, i32, i32) {
    %c0_i32 = arith.constant 0 : i32
    %c0_i32_0 = arith.constant 0 : i32
    %c0_i32_1 = arith.constant 0 : i32
    return %arg1, %c0_i32, %c0_i32_0 : i32, i32, i32
  }
  func.func @transform_5(%arg0: i32, %arg1: i32) -> (i32, i32, i32) {
    %c0_i32 = arith.constant 0 : i32
    %c0_i32_0 = arith.constant 0 : i32
    %c0_i32_1 = arith.constant 0 : i32
    return %arg1, %c0_i32, %c0_i32_0 : i32, i32, i32
  }
  func.func @transform_6(%arg0: i32, %arg1: i32) -> (i32, i32, i32) {
    %c0_i32 = arith.constant 0 : i32
    %c0_i32_0 = arith.constant 0 : i32
    %c0_i32_1 = arith.constant 0 : i32
    return %arg1, %c0_i32, %c0_i32_0 : i32, i32, i32
  }
  func.func @transform_7(%arg0: i32, %arg1: i32) -> (i32, i32, i32) {
    %c0_i32 = arith.constant 0 : i32
    %c0_i32_0 = arith.constant 0 : i32
    %c0_i32_1 = arith.constant 0 : i32
    return %arg1, %c0_i32, %c0_i32_0 : i32, i32, i32
  }
  func.func @transform_8(%arg0: i32, %arg1: i32) -> (i32, i32, i32) {
    %c0_i32 = arith.constant 0 : i32
    %c0_i32_0 = arith.constant 0 : i32
    %c0_i32_1 = arith.constant 0 : i32
    return %arg1, %c0_i32, %c0_i32_0 : i32, i32, i32
  }
  func.func @transform_9(%arg0: i32, %arg1: i32) -> (i32, i32, i32) {
    %c0_i32 = arith.constant 0 : i32
    %c0_i32_0 = arith.constant 0 : i32
    %c0_i32_1 = arith.constant 0 : i32
    return %arg1, %c0_i32, %c0_i32_0 : i32, i32, i32
  }
  func.func @transform_10(%arg0: i32, %arg1: i32) -> (i32, i32, i32) {
    %c0_i32 = arith.constant 0 : i32
    %c0_i32_0 = arith.constant 0 : i32
    %c0_i32_1 = arith.constant 0 : i32
    return %arg1, %c0_i32, %c0_i32_0 : i32, i32, i32
  }
  func.func @transform_11(%arg0: i32, %arg1: i32) -> (i32, i32, i32) {
    %c0_i32 = arith.constant 0 : i32
    %c0_i32_0 = arith.constant 0 : i32
    %c0_i32_1 = arith.constant 0 : i32
    return %arg1, %c0_i32, %c0_i32_0 : i32, i32, i32
  }
  func.func @transform_12(%arg0: i32, %arg1: i32) -> (i32, i32, i32) {
    %c0_i32 = arith.constant 0 : i32
    %c0_i32_0 = arith.constant 0 : i32
    %c0_i32_1 = arith.constant 0 : i32
    return %arg1, %c0_i32, %c0_i32_0 : i32, i32, i32
  }
  func.func @transform_13(%arg0: i32, %arg1: i32) -> (i32, i32, i32) {
    %c0_i32 = arith.constant 0 : i32
    %c0_i32_0 = arith.constant 0 : i32
    %c0_i32_1 = arith.constant 0 : i32
    return %arg1, %c0_i32, %c0_i32_0 : i32, i32, i32
  }
  func.func @transform_14(%arg0: i32, %arg1: i32) -> (i32, i32, i32) {
    %c0_i32 = arith.constant 0 : i32
    %c0_i32_0 = arith.constant 0 : i32
    %c0_i32_1 = arith.constant 0 : i32
    return %arg1, %c0_i32, %c0_i32_0 : i32, i32, i32
  }
  func.func @transform_15(%arg0: i32, %arg1: i32) -> (i32, i32) {
    %c0_i32 = arith.constant 0 : i32
    %c0_i32_0 = arith.constant 0 : i32
    %c0_i32_1 = arith.constant 0 : i32
    return %c0_i32, %c0_i32_0 : i32, i32
  }
  func.func @transform_16(%arg0: i32, %arg1: i32) -> (i32, i32) {
    %c0_i32 = arith.constant 0 : i32
    %c0_i32_0 = arith.constant 0 : i32
    %c0_i32_1 = arith.constant 0 : i32
    return %c0_i32, %c0_i32_0 : i32, i32
  }
  func.func @transform_17(%arg0: i32, %arg1: i32) -> (i32, i32) {
    %c0_i32 = arith.constant 0 : i32
    %c0_i32_0 = arith.constant 0 : i32
    return %arg0, %c0_i32 : i32, i32
  }
}

</mosaic_0001>

<llo_original>
// kernel: text_gen_forward.1
$region0: #{text_gen_forward.1}
  #allocation0 [shape = 'u32[]', space=smem, size = 0x4, offset = 0x4, fixed_abs, tag = 'smem constant byte address 0x4 - core index']
  #allocation1 [shape = 'u32[144,128]{1,0:T(1,128)}', space=vmem, size = 0x12000, scoped, tag = 'internal scratch']
  #allocation2 [shape = 'f32[8,32]{1,0:T(8,128)}', space=vmem, size = 0x1000, scoped, tag = 'scratch operand']
  %s0 = inlined_call_operand.vmem [shape: s32[16,1], index: 0, kind: input, shape index: {}]
  %s1 = inlined_call_operand.vmem [shape: f32[50,32], index: 1, kind: input, shape index: {}]
  %s2 = inlined_call_operand.vmem [shape: f32[8,32], index: 2, kind: input, shape index: {}]
  %s3 = inlined_call_operand.vmem [shape: f32[2,32,128], index: 3, kind: input, shape index: {}]
  %s4 = inlined_call_operand.vmem [shape: f32[2,1,128], index: 4, kind: input, shape index: {}]
  %s5 = inlined_call_operand.vmem [shape: f32[2,32,32], index: 5, kind: input, shape index: {}]
  %s6 = inlined_call_operand.vmem [shape: f32[2,1,32], index: 6, kind: input, shape index: {}]
  %s7 = inlined_call_operand.vmem [shape: f32[2,1,32], index: 7, kind: input, shape index: {}]
  %s8 = inlined_call_operand.vmem [shape: f32[2,1,32], index: 8, kind: input, shape index: {}]
  %s9 = inlined_call_operand.vmem [shape: bf16[2,32,2048], index: 9, kind: input, shape index: {}]
  %s10 = inlined_call_operand.vmem [shape: f32[2,1,2048], index: 10, kind: input, shape index: {}]
  %s11 = inlined_call_operand.vmem [shape: bf16[2,2048,32], index: 11, kind: input, shape index: {}]
  %s12 = inlined_call_operand.vmem [shape: f32[2,1,32], index: 12, kind: input, shape index: {}]
  %s13 = inlined_call_operand.vmem [shape: f32[2,1,32], index: 13, kind: input, shape index: {}]
  %s14 = inlined_call_operand.vmem [shape: f32[2,1,32], index: 14, kind: input, shape index: {}]
  %s15 = inlined_call_operand.vmem [shape: bf16[32,128], index: 15, kind: input, shape index: {}]
  %s16 = inlined_call_operand.vmem [shape: f32[1,128], index: 16, kind: input, shape index: {}]
  %s17 = inlined_call_operand.hbm [shape: f32[16,128], index: 17, kind: output, shape index: {}]
  %s18 = sld [smem:[#allocation0]]
  $region109: #{text_gen_forward.1} parent=0
    _
  %s20 = ssub.s32 1, %s18
  %s21 = scalar_select 0, %s20, %s18
  $region1: #{text_gen_forward.1} parent=0
    #allocation3 [shape = 'u8[8192]{0}', space=vmem, size = 0x2000, scoped, tag = 'output window, operand 0']
    #allocation4 [shape = 's32[2]{0}', space=sflag, size = 0x8, scoped, tag = 'scoped memory for text_gen_forward.1']
    %22 = vsyncpa [#allocation4], 0
    %s23 = scalar_lea.sflag [#allocation4], 1
    %24 = vsyncpa %s23, 0
    loop: start=0, step=1, limit=6
    $region2: #{text_gen_forward.1} parent=1 // loop_pre_header
      _
    $region3: #{text_gen_forward.1} parent=1 // loop_header
      %s26 = sphi 0, %s30
      %p27 = scmp.ge.s32.totalorder %s26, 6
      %s33 = sphi 0, %s45
      %s34 = sphi 0, %s41
      %s35 = sphi 0, %s33
      %s36 = sphi 0, %s34
      %s37 = sphi 0, %s35
      %s38 = sphi 0, %s36
      %s48 = sphi 0, %s50
      %s51 = sphi 0, %s48
      %s52 = sphi 0, %s51
      %s68 = sphi 0, %s52
      %s72 = sphi 0, %s72
      %s74 = sphi 0, %s72
      %s75 = sphi 0, %s74
      %s89 = sphi 0, %s75
      %s93 = sphi 0, %s93
      %s95 = sphi 0, %s93
      %s96 = sphi 0, %s95
      %s110 = sphi 0, %s96
      %s116 = sphi 0, %s118
      %s119 = sphi 0, %s116
      %s120 = sphi 0, %s119
      %s136 = sphi 0, %s120
      %s142 = sphi 0, %s144
      %s145 = sphi 0, %s142
      %s146 = sphi 0, %s145
      %s162 = sphi 0, %s146
      %s168 = sphi 0, %s170
      %s171 = sphi 0, %s168
      %s172 = sphi 0, %s171
      %s188 = sphi 0, %s172
      %s194 = sphi 0, %s196
      %s197 = sphi 0, %s194
      %s198 = sphi 0, %s197
      %s214 = sphi 0, %s198
      %s220 = sphi 0, %s222
      %s223 = sphi 0, %s220
      %s224 = sphi 0, %s223
      %s240 = sphi 0, %s224
      %s246 = sphi 0, %s248
      %s249 = sphi 0, %s246
      %s250 = sphi 0, %s249
      %s266 = sphi 0, %s250
      %s272 = sphi 0, %s274
      %s275 = sphi 0, %s272
      %s276 = sphi 0, %s275
      %s292 = sphi 0, %s276
      %s298 = sphi 0, %s300
      %s301 = sphi 0, %s298
      %s302 = sphi 0, %s301
      %s318 = sphi 0, %s302
      %s324 = sphi 0, %s326
      %s327 = sphi 0, %s324
      %s328 = sphi 0, %s327
      %s344 = sphi 0, %s328
      %s350 = sphi 0, %s352
      %s353 = sphi 0, %s350
      %s354 = sphi 0, %s353
      %s370 = sphi 0, %s354
      %s376 = sphi 0, %s378
      %s379 = sphi 0, %s376
      %s380 = sphi 0, %s379
      %s396 = sphi 0, %s380
      %s402 = sphi 0, %s404
      %s405 = sphi 0, %s402
      %s406 = sphi 0, %s405
      %s422 = sphi 0, %s406
      %s426 = sphi 0, %s426
      %s428 = sphi 0, %s426
      %s429 = sphi 0, %s428
      %s443 = sphi 0, %s429
      %s447 = sphi 0, %s447
      %s449 = sphi 0, %s447
      %s450 = sphi 0, %s449
      %s464 = sphi 0, %s450
      %s470 = sphi 0, %s472
      %s473 = sphi 0, %s470
      %s474 = sphi 0, %s473
      %s490 = sphi 0, %s474
    $region4: #{text_gen_forward.1} parent=1 // loop_header_branch
      %29 = sbr.rel (%p27) target = $region8
    $region5: #{text_gen_forward.1} parent=1 // loop_body
      %s31 = ssub.s32 %s26, 1
      %s32 = ssub.s32 %s26, 2
      %s39 = sadd.s32 1, %s34
      %p40 = scmp.ge.s32.totalorder %s39, 2
      %s41 = scalar_select %p40, 0, %s39
      %s42 = sadd.s32 1, %s33
      %s43 = scalar_select %p40, %s42, %s33
      %p44 = scmp.ge.s32.totalorder %s43, 2
      %s45 = scalar_select %p44, 0, %s43
      %s46 = ssub.s32 %s33, %s45
      %p47 = scmp.eq.s32.totalorder %s46, 0
      %s49 = sadd.s32 %s48, 1
      %s50 = scalar_select %p47, %s48, %s49
      %p53 = pneg %p47
      %p54 = scmp.eq.s32.totalorder %s26, 3
      %p55 = por %p53, %p54
      %p56 = scmp.ne.s32.totalorder %s48, %s51
      %p57 = scmp.eq.s32.totalorder %s26, 0
      %p58 = por %p56, %p57
      %p59 = scmp.ne.s32.totalorder %s48, %s51
      %p60 = scmp.eq.s32.totalorder %s31, 3
      %p61 = por %p59, %p60
      %p62 = scmp.ne.s32.totalorder %s51, %s52
      %p63 = scmp.eq.s32.totalorder %s31, 0
      %p64 = por %p62, %p63
      %p65 = scmp.ne.s32.totalorder %s51, %s52
      %p66 = scmp.eq.s32.totalorder %s32, 3
      %p67 = por %p65, %p66
      %p69 = scmp.ne.s32.totalorder %s52, %s68
      %p70 = scmp.eq.s32.totalorder %s32, 0
      %p71 = por %p69, %p70
      %s73 = sadd.s32 %s72, 1
      %p76 = scmp.eq.s32.totalorder %s26, 3
      %p77 = scmp.ne.s32.totalorder %s72, %s74
      %p78 = scmp.eq.s32.totalorder %s26, 0
      %p79 = por %p77, %p78
      %p80 = scmp.ne.s32.totalorder %s72, %s74
      %p81 = scmp.eq.s32.totalorder %s31, 3
      %p82 = por %p80, %p81
      %p83 = scmp.ne.s32.totalorder %s74, %s75
      %p84 = scmp.eq.s32.totalorder %s31, 0
      %p85 = por %p83, %p84
      %p86 = scmp.ne.s32.totalorder %s74, %s75
      %p87 = scmp.eq.s32.totalorder %s32, 3
      %p88 = por %p86, %p87
      %p90 = scmp.ne.s32.totalorder %s75, %s89
      %p91 = scmp.eq.s32.totalorder %s32, 0
      %p92 = por %p90, %p91
      %s94 = sadd.s32 %s93, 1
      %p97 = scmp.eq.s32.totalorder %s26, 3
      %p98 = scmp.ne.s32.totalorder %s93, %s95
      %p99 = scmp.eq.s32.totalorder %s26, 0
      %p100 = por %p98, %p99
      %p101 = scmp.ne.s32.totalorder %s93, %s95
      %p102 = scmp.eq.s32.totalorder %s31, 3
      %p103 = por %p101, %p102
      %p104 = scmp.ne.s32.totalorder %s95, %s96
      %p105 = scmp.eq.s32.totalorder %s31, 0
      %p106 = por %p104, %p105
      %p107 = scmp.ne.s32.totalorder %s95, %s96
      %p108 = scmp.eq.s32.totalorder %s32, 3
      %p109 = por %p107, %p108
      %p111 = scmp.ne.s32.totalorder %s96, %s110
      %p112 = scmp.eq.s32.totalorder %s32, 0
      %p113 = por %p111, %p112
      %s114 = ssub.s32 %s34, %s41
      %p115 = scmp.eq.s32.totalorder %s114, 0
      %s117 = sadd.s32 %s116, 1
      %s118 = scalar_select %p115, %s116, %s117
      %p121 = pneg %p115
      %p122 = scmp.eq.s32.totalorder %s26, 3
      %p123 = por %p121, %p122
      %p124 = scmp.ne.s32.totalorder %s116, %s119
      %p125 = scmp.eq.s32.totalorder %s26, 0
      %p126 = por %p124, %p125
      %p127 = scmp.ne.s32.totalorder %s116, %s119
      %p128 = scmp.eq.s32.totalorder %s31, 3
      %p129 = por %p127, %p128
      %p130 = scmp.ne.s32.totalorder %s119, %s120
      %p131 = scmp.eq.s32.totalorder %s31, 0
      %p132 = por %p130, %p131
      %p133 = scmp.ne.s32.totalorder %s119, %s120
      %p134 = scmp.eq.s32.totalorder %s32, 3
      %p135 = por %p133, %p134
      %p137 = scmp.ne.s32.totalorder %s120, %s136
      %p138 = scmp.eq.s32.totalorder %s32, 0
      %p139 = por %p137, %p138
      %s140 = ssub.s32 %s34, %s41
      %p141 = scmp.eq.s32.totalorder %s140, 0
      %s143 = sadd.s32 %s142, 1
      %s144 = scalar_select %p141, %s142, %s143
      %p147 = pneg %p141
      %p148 = scmp.eq.s32.totalorder %s26, 3
      %p149 = por %p147, %p148
      %p150 = scmp.ne.s32.totalorder %s142, %s145
      %p151 = scmp.eq.s32.totalorder %s26, 0
      %p152 = por %p150, %p151
      %p153 = scmp.ne.s32.totalorder %s142, %s145
      %p154 = scmp.eq.s32.totalorder %s31, 3
      %p155 = por %p153, %p154
      %p156 = scmp.ne.s32.totalorder %s145, %s146
      %p157 = scmp.eq.s32.totalorder %s31, 0
      %p158 = por %p156, %p157
      %p159 = scmp.ne.s32.totalorder %s145, %s146
      %p160 = scmp.eq.s32.totalorder %s32, 3
      %p161 = por %p159, %p160
      %p163 = scmp.ne.s32.totalorder %s146, %s162
      %p164 = scmp.eq.s32.totalorder %s32, 0
      %p165 = por %p163, %p164
      %s166 = ssub.s32 %s34, %s41
      %p167 = scmp.eq.s32.totalorder %s166, 0
      %s169 = sadd.s32 %s168, 1
      %s170 = scalar_select %p167, %s168, %s169
      %p173 = pneg %p167
      %p174 = scmp.eq.s32.totalorder %s26, 3
      %p175 = por %p173, %p174
      %p176 = scmp.ne.s32.totalorder %s168, %s171
      %p177 = scmp.eq.s32.totalorder %s26, 0
      %p178 = por %p176, %p177
      %p179 = scmp.ne.s32.totalorder %s168, %s171
      %p180 = scmp.eq.s32.totalorder %s31, 3
      %p181 = por %p179, %p180
      %p182 = scmp.ne.s32.totalorder %s171, %s172
      %p183 = scmp.eq.s32.totalorder %s31, 0
      %p184 = por %p182, %p183
      %p185 = scmp.ne.s32.totalorder %s171, %s172
      %p186 = scmp.eq.s32.totalorder %s32, 3
      %p187 = por %p185, %p186
      %p189 = scmp.ne.s32.totalorder %s172, %s188
      %p190 = scmp.eq.s32.totalorder %s32, 0
      %p191 = por %p189, %p190
      %s192 = ssub.s32 %s34, %s41
      %p193 = scmp.eq.s32.totalorder %s192, 0
      %s195 = sadd.s32 %s194, 1
      %s196 = scalar_select %p193, %s194, %s195
      %p199 = pneg %p193
      %p200 = scmp.eq.s32.totalorder %s26, 3
      %p201 = por %p199, %p200
      %p202 = scmp.ne.s32.totalorder %s194, %s197
      %p203 = scmp.eq.s32.totalorder %s26, 0
      %p204 = por %p202, %p203
      %p205 = scmp.ne.s32.totalorder %s194, %s197
      %p206 = scmp.eq.s32.totalorder %s31, 3
      %p207 = por %p205, %p206
      %p208 = scmp.ne.s32.totalorder %s197, %s198
      %p209 = scmp.eq.s32.totalorder %s31, 0
      %p210 = por %p208, %p209
      %p211 = scmp.ne.s32.totalorder %s197, %s198
      %p212 = scmp.eq.s32.totalorder %s32, 3
      %p213 = por %p211, %p212
      %p215 = scmp.ne.s32.totalorder %s198, %s214
      %p216 = scmp.eq.s32.totalorder %s32, 0
      %p217 = por %p215, %p216
      %s218 = ssub.s32 %s34, %s41
      %p219 = scmp.eq.s32.totalorder %s218, 0
      %s221 = sadd.s32 %s220, 1
      %s222 = scalar_select %p219, %s220, %s221
      %p225 = pneg %p219
      %p226 = scmp.eq.s32.totalorder %s26, 3
      %p227 = por %p225, %p226
      %p228 = scmp.ne.s32.totalorder %s220, %s223
      %p229 = scmp.eq.s32.totalorder %s26, 0
      %p230 = por %p228, %p229
      %p231 = scmp.ne.s32.totalorder %s220, %s223
      %p232 = scmp.eq.s32.totalorder %s31, 3
      %p233 = por %p231, %p232
      %p234 = scmp.ne.s32.totalorder %s223, %s224
      %p235 = scmp.eq.s32.totalorder %s31, 0
      %p236 = por %p234, %p235
      %p237 = scmp.ne.s32.totalorder %s223, %s224
      %p238 = scmp.eq.s32.totalorder %s32, 3
      %p239 = por %p237, %p238
      %p241 = scmp.ne.s32.totalorder %s224, %s240
      %p242 = scmp.eq.s32.totalorder %s32, 0
      %p243 = por %p241, %p242
      %s244 = ssub.s32 %s34, %s41
      %p245 = scmp.eq.s32.totalorder %s244, 0
      %s247 = sadd.s32 %s246, 1
      %s248 = scalar_select %p245, %s246, %s247
      %p251 = pneg %p245
      %p252 = scmp.eq.s32.totalorder %s26, 3
      %p253 = por %p251, %p252
      %p254 = scmp.ne.s32.totalorder %s246, %s249
      %p255 = scmp.eq.s32.totalorder %s26, 0
      %p256 = por %p254, %p255
      %p257 = scmp.ne.s32.totalorder %s246, %s249
      %p258 = scmp.eq.s32.totalorder %s31, 3
      %p259 = por %p257, %p258
      %p260 = scmp.ne.s32.totalorder %s249, %s250
      %p261 = scmp.eq.s32.totalorder %s31, 0
      %p262 = por %p260, %p261
      %p263 = scmp.ne.s32.totalorder %s249, %s250
      %p264 = scmp.eq.s32.totalorder %s32, 3
      %p265 = por %p263, %p264
      %p267 = scmp.ne.s32.totalorder %s250, %s266
      %p268 = scmp.eq.s32.totalorder %s32, 0
      %p269 = por %p267, %p268
      %s270 = ssub.s32 %s34, %s41
      %p271 = scmp.eq.s32.totalorder %s270, 0
      %s273 = sadd.s32 %s272, 1
      %s274 = scalar_select %p271, %s272, %s273
      %p277 = pneg %p271
      %p278 = scmp.eq.s32.totalorder %s26, 3
      %p279 = por %p277, %p278
      %p280 = scmp.ne.s32.totalorder %s272, %s275
      %p281 = scmp.eq.s32.totalorder %s26, 0
      %p282 = por %p280, %p281
      %p283 = scmp.ne.s32.totalorder %s272, %s275
      %p284 = scmp.eq.s32.totalorder %s31, 3
      %p285 = por %p283, %p284
      %p286 = scmp.ne.s32.totalorder %s275, %s276
      %p287 = scmp.eq.s32.totalorder %s31, 0
      %p288 = por %p286, %p287
      %p289 = scmp.ne.s32.totalorder %s275, %s276
      %p290 = scmp.eq.s32.totalorder %s32, 3
      %p291 = por %p289, %p290
      %p293 = scmp.ne.s32.totalorder %s276, %s292
      %p294 = scmp.eq.s32.totalorder %s32, 0
      %p295 = por %p293, %p294
      %s296 = ssub.s32 %s34, %s41
      %p297 = scmp.eq.s32.totalorder %s296, 0
      %s299 = sadd.s32 %s298, 1
      %s300 = scalar_select %p297, %s298, %s299
      %p303 = pneg %p297
      %p304 = scmp.eq.s32.totalorder %s26, 3
      %p305 = por %p303, %p304
      %p306 = scmp.ne.s32.totalorder %s298, %s301
      %p307 = scmp.eq.s32.totalorder %s26, 0
      %p308 = por %p306, %p307
      %p309 = scmp.ne.s32.totalorder %s298, %s301
      %p310 = scmp.eq.s32.totalorder %s31, 3
      %p311 = por %p309, %p310
      %p312 = scmp.ne.s32.totalorder %s301, %s302
      %p313 = scmp.eq.s32.totalorder %s31, 0
      %p314 = por %p312, %p313
      %p315 = scmp.ne.s32.totalorder %s301, %s302
      %p316 = scmp.eq.s32.totalorder %s32, 3
      %p317 = por %p315, %p316
      %p319 = scmp.ne.s32.totalorder %s302, %s318
      %p320 = scmp.eq.s32.totalorder %s32, 0
      %p321 = por %p319, %p320
      %s322 = ssub.s32 %s34, %s41
      %p323 = scmp.eq.s32.totalorder %s322, 0
      %s325 = sadd.s32 %s324, 1
      %s326 = scalar_select %p323, %s324, %s325
      %p329 = pneg %p323
      %p330 = scmp.eq.s32.totalorder %s26, 3
      %p331 = por %p329, %p330
      %p332 = scmp.ne.s32.totalorder %s324, %s327
      %p333 = scmp.eq.s32.totalorder %s26, 0
      %p334 = por %p332, %p333
      %p335 = scmp.ne.s32.totalorder %s324, %s327
      %p336 = scmp.eq.s32.totalorder %s31, 3
      %p337 = por %p335, %p336
      %p338 = scmp.ne.s32.totalorder %s327, %s328
      %p339 = scmp.eq.s32.totalorder %s31, 0
      %p340 = por %p338, %p339
      %p341 = scmp.ne.s32.totalorder %s327, %s328
      %p342 = scmp.eq.s32.totalorder %s32, 3
      %p343 = por %p341, %p342
      %p345 = scmp.ne.s32.totalorder %s328, %s344
      %p346 = scmp.eq.s32.totalorder %s32, 0
      %p347 = por %p345, %p346
      %s348 = ssub.s32 %s34, %s41
      %p349 = scmp.eq.s32.totalorder %s348, 0
      %s351 = sadd.s32 %s350, 1
      %s352 = scalar_select %p349, %s350, %s351
      %p355 = pneg %p349
      %p356 = scmp.eq.s32.totalorder %s26, 3
      %p357 = por %p355, %p356
      %p358 = scmp.ne.s32.totalorder %s350, %s353
      %p359 = scmp.eq.s32.totalorder %s26, 0
      %p360 = por %p358, %p359
      %p361 = scmp.ne.s32.totalorder %s350, %s353
      %p362 = scmp.eq.s32.totalorder %s31, 3
      %p363 = por %p361, %p362
      %p364 = scmp.ne.s32.totalorder %s353, %s354
      %p365 = scmp.eq.s32.totalorder %s31, 0
      %p366 = por %p364, %p365
      %p367 = scmp.ne.s32.totalorder %s353, %s354
      %p368 = scmp.eq.s32.totalorder %s32, 3
      %p369 = por %p367, %p368
      %p371 = scmp.ne.s32.totalorder %s354, %s370
      %p372 = scmp.eq.s32.totalorder %s32, 0
      %p373 = por %p371, %p372
      %s374 = ssub.s32 %s34, %s41
      %p375 = scmp.eq.s32.totalorder %s374, 0
      %s377 = sadd.s32 %s376, 1
      %s378 = scalar_select %p375, %s376, %s377
      %p381 = pneg %p375
      %p382 = scmp.eq.s32.totalorder %s26, 3
      %p383 = por %p381, %p382
      %p384 = scmp.ne.s32.totalorder %s376, %s379
      %p385 = scmp.eq.s32.totalorder %s26, 0
      %p386 = por %p384, %p385
      %p387 = scmp.ne.s32.totalorder %s376, %s379
      %p388 = scmp.eq.s32.totalorder %s31, 3
      %p389 = por %p387, %p388
      %p390 = scmp.ne.s32.totalorder %s379, %s380
      %p391 = scmp.eq.s32.totalorder %s31, 0
      %p392 = por %p390, %p391
      %p393 = scmp.ne.s32.totalorder %s379, %s380
      %p394 = scmp.eq.s32.totalorder %s32, 3
      %p395 = por %p393, %p394
      %p397 = scmp.ne.s32.totalorder %s380, %s396
      %p398 = scmp.eq.s32.totalorder %s32, 0
      %p399 = por %p397, %p398
      %s400 = ssub.s32 %s34, %s41
      %p401 = scmp.eq.s32.totalorder %s400, 0
      %s403 = sadd.s32 %s402, 1
      %s404 = scalar_select %p401, %s402, %s403
      %p407 = pneg %p401
      %p408 = scmp.eq.s32.totalorder %s26, 3
      %p409 = por %p407, %p408
      %p410 = scmp.ne.s32.totalorder %s402, %s405
      %p411 = scmp.eq.s32.totalorder %s26, 0
      %p412 = por %p410, %p411
      %p413 = scmp.ne.s32.totalorder %s402, %s405
      %p414 = scmp.eq.s32.totalorder %s31, 3
      %p415 = por %p413, %p414
      %p416 = scmp.ne.s32.totalorder %s405, %s406
      %p417 = scmp.eq.s32.totalorder %s31, 0
      %p418 = por %p416, %p417
      %p419 = scmp.ne.s32.totalorder %s405, %s406
      %p420 = scmp.eq.s32.totalorder %s32, 3
      %p421 = por %p419, %p420
      %p423 = scmp.ne.s32.totalorder %s406, %s422
      %p424 = scmp.eq.s32.totalorder %s32, 0
      %p425 = por %p423, %p424
      %s427 = sadd.s32 %s426, 1
      %p430 = scmp.eq.s32.totalorder %s26, 3
      %p431 = scmp.ne.s32.totalorder %s426, %s428
      %p432 = scmp.eq.s32.totalorder %s26, 0
      %p433 = por %p431, %p432
      %p434 = scmp.ne.s32.totalorder %s426, %s428
      %p435 = scmp.eq.s32.totalorder %s31, 3
      %p436 = por %p434, %p435
      %p437 = scmp.ne.s32.totalorder %s428, %s429
      %p438 = scmp.eq.s32.totalorder %s31, 0
      %p439 = por %p437, %p438
      %p440 = scmp.ne.s32.totalorder %s428, %s429
      %p441 = scmp.eq.s32.totalorder %s32, 3
      %p442 = por %p440, %p441
      %p444 = scmp.ne.s32.totalorder %s429, %s443
      %p445 = scmp.eq.s32.totalorder %s32, 0
      %p446 = por %p444, %p445
      %s448 = sadd.s32 %s447, 1
      %p451 = scmp.eq.s32.totalorder %s26, 3
      %p452 = scmp.ne.s32.totalorder %s447, %s449
      %p453 = scmp.eq.s32.totalorder %s26, 0
      %p454 = por %p452, %p453
      %p455 = scmp.ne.s32.totalorder %s447, %s449
      %p456 = scmp.eq.s32.totalorder %s31, 3
      %p457 = por %p455, %p456
      %p458 = scmp.ne.s32.totalorder %s449, %s450
      %p459 = scmp.eq.s32.totalorder %s31, 0
      %p460 = por %p458, %p459
      %p461 = scmp.ne.s32.totalorder %s449, %s450
      %p462 = scmp.eq.s32.totalorder %s32, 3
      %p463 = por %p461, %p462
      %p465 = scmp.ne.s32.totalorder %s450, %s464
      %p466 = scmp.eq.s32.totalorder %s32, 0
      %p467 = por %p465, %p466
      %s468 = ssub.s32 %s33, %s45
      %p469 = scmp.eq.s32.totalorder %s468, 0
      %s471 = sadd.s32 %s470, 1
      %s472 = scalar_select %p469, %s470, %s471
      %p475 = pneg %p469
      %p476 = scmp.eq.s32.totalorder %s26, 3
      %p477 = por %p475, %p476
      %p478 = scmp.ne.s32.totalorder %s470, %s473
      %p479 = scmp.eq.s32.totalorder %s26, 0
      %p480 = por %p478, %p479
      %p481 = scmp.ne.s32.totalorder %s470, %s473
      %p482 = scmp.eq.s32.totalorder %s31, 3
      %p483 = por %p481, %p482
      %p484 = scmp.ne.s32.totalorder %s473, %s474
      %p485 = scmp.eq.s32.totalorder %s31, 0
      %p486 = por %p484, %p485
      %p487 = scmp.ne.s32.totalorder %s473, %s474
      %p488 = scmp.eq.s32.totalorder %s32, 3
      %p489 = por %p487, %p488
      %p491 = scmp.ne.s32.totalorder %s474, %s490
      %p492 = scmp.eq.s32.totalorder %s32, 0
      %p493 = por %p491, %p492
      %p494 = scmp.le.s32.totalorder 1, %s26
      %p495 = scmp.lt.s32.totalorder %s26, 5
      %p496 = pnand %p494, %p495
      %p497 = pneg %p496
      // Predicated region
      $region9: #{text_gen_forward.1} parent=5 // pred_check
        _
      $region10: #{text_gen_forward.1} parent=5 // pred_check_branch
        %499 = sbr.rel (%p496) target = $region12
      $region11: #{text_gen_forward.1} parent=5 // pred_region
        %s500 = ssub.s32 %s26, 1
        // Predicated region
        $region13: #{text_gen_forward.1} parent=11 // pred_check
          %p501 = pneg %p85
        $region14: #{text_gen_forward.1} parent=11 // pred_check_branch
          %503 = sbr.rel (%p501) target = $region16
        $region15: #{text_gen_forward.1} parent=11 // pred_region
          _
        $region16: #{text_gen_forward.1} parent=11 // pred_fallthru
          _
        // Predicated region
        $region17: #{text_gen_forward.1} parent=11 // pred_check
          %p504 = pneg %p106
        $region18: #{text_gen_forward.1} parent=11 // pred_check_branch
          %506 = sbr.rel (%p504) target = $region20
        $region19: #{text_gen_forward.1} parent=11 // pred_region
          _
        $region20: #{text_gen_forward.1} parent=11 // pred_fallthru
          _
        // Predicated region
        $region21: #{text_gen_forward.1} parent=11 // pred_check
          %p507 = pneg %p439
        $region22: #{text_gen_forward.1} parent=11 // pred_check_branch
          %509 = sbr.rel (%p507) target = $region24
        $region23: #{text_gen_forward.1} parent=11 // pred_region
          _
        $region24: #{text_gen_forward.1} parent=11 // pred_fallthru
          _
        // Predicated region
        $region25: #{text_gen_forward.1} parent=11 // pred_check
          %p510 = pneg %p460
        $region26: #{text_gen_forward.1} parent=11 // pred_check_branch
          %512 = sbr.rel (%p510) target = $region28
        $region27: #{text_gen_forward.1} parent=11 // pred_region
          _
        $region28: #{text_gen_forward.1} parent=11 // pred_fallthru
          _
      $region12: #{text_gen_forward.1} parent=5 // pred_fallthru
        _
      %p513 = scmp.lt.s32.totalorder %s26, 4
      // Predicated region
      $region29: #{text_gen_forward.1} parent=5 // pred_check
        %p514 = pneg %p513
      $region30: #{text_gen_forward.1} parent=5 // pred_check_branch
        %516 = sbr.rel (%p514) target = $region32
      $region31: #{text_gen_forward.1} parent=5 // pred_region
        // Predicated region
        $region33: #{text_gen_forward.1} parent=31 // pred_check
          %p517 = pneg %p58
        $region34: #{text_gen_forward.1} parent=31 // pred_check_branch
          %519 = sbr.rel (%p517) target = $region36
        $region35: #{text_gen_forward.1} parent=31 // pred_region
          %p520 = scmp.lt.s32.totalorder %s33, 1
          %s521 = scalar_select %p520, %s33, 1
          %s522 = smul.addr %s521, 8
          %s523 = scalar_lea.vmem %s0, %s522
        $region36: #{text_gen_forward.1} parent=31 // pred_fallthru
          _
        // Predicated region
        $region37: #{text_gen_forward.1} parent=31 // pred_check
          %p524 = pneg %p126
        $region38: #{text_gen_forward.1} parent=31 // pred_check_branch
          %526 = sbr.rel (%p524) target = $region40
        $region39: #{text_gen_forward.1} parent=31 // pred_region
          %p527 = scmp.lt.s32.totalorder %s34, 1
          %s528 = scalar_select %p527, %s34, 1
          %s529 = smul.addr %s528, 4
          %s530 = smul.addr %s529, 8
          %s531 = scalar_lea.vmem %s3, %s530
        $region40: #{text_gen_forward.1} parent=31 // pred_fallthru
          _
        // Predicated region
        $region41: #{text_gen_forward.1} parent=31 // pred_check
          %p532 = pneg %p152
        $region42: #{text_gen_forward.1} parent=31 // pred_check_branch
          %534 = sbr.rel (%p532) target = $region44
        $region43: #{text_gen_forward.1} parent=31 // pred_region
          %p535 = scmp.lt.s32.totalorder %s34, 1
          %s536 = scalar_select %p535, %s34, 1
          %s537 = scalar_lea.vmem %s4, %s536
        $region44: #{text_gen_forward.1} parent=31 // pred_fallthru
          _
        // Predicated region
        $region45: #{text_gen_forward.1} parent=31 // pred_check
          %p538 = pneg %p178
        $region46: #{text_gen_forward.1} parent=31 // pred_check_branch
          %540 = sbr.rel (%p538) target = $region48
        $region47: #{text_gen_forward.1} parent=31 // pred_region
          %p541 = scmp.lt.s32.totalorder %s34, 1
          %s542 = scalar_select %p541, %s34, 1
          %s543 = smul.addr %s542, 4
          %s544 = smul.addr %s543, 8
          %s545 = scalar_lea.vmem %s5, %s544
        $region48: #{text_gen_forward.1} parent=31 // pred_fallthru
          _
        // Predicated region
        $region49: #{text_gen_forward.1} parent=31 // pred_check
          %p546 = pneg %p204
        $region50: #{text_gen_forward.1} parent=31 // pred_check_branch
          %548 = sbr.rel (%p546) target = $region52
        $region51: #{text_gen_forward.1} parent=31 // pred_region
          %p549 = scmp.lt.s32.totalorder %s34, 1
          %s550 = scalar_select %p549, %s34, 1
          %s551 = scalar_lea.vmem %s6, %s550
        $region52: #{text_gen_forward.1} parent=31 // pred_fallthru
          _
        // Predicated region
        $region53: #{text_gen_forward.1} parent=31 // pred_check
          %p552 = pneg %p230
        $region54: #{text_gen_forward.1} parent=31 // pred_check_branch
          %554 = sbr.rel (%p552) target = $region56
        $region55: #{text_gen_forward.1} parent=31 // pred_region
          %p555 = scmp.lt.s32.totalorder %s34, 1
          %s556 = scalar_select %p555, %s34, 1
          %s557 = scalar_lea.vmem %s7, %s556
        $region56: #{text_gen_forward.1} parent=31 // pred_fallthru
          _
        // Predicated region
        $region57: #{text_gen_forward.1} parent=31 // pred_check
          %p558 = pneg %p256
        $region58: #{text_gen_forward.1} parent=31 // pred_check_branch
          %560 = sbr.rel (%p558) target = $region60
        $region59: #{text_gen_forward.1} parent=31 // pred_region
          %p561 = scmp.lt.s32.totalorder %s34, 1
          %s562 = scalar_select %p561, %s34, 1
          %s563 = scalar_lea.vmem %s8, %s562
        $region60: #{text_gen_forward.1} parent=31 // pred_fallthru
          _
        // Predicated region
        $region61: #{text_gen_forward.1} parent=31 // pred_check
          %p564 = pneg %p282
        $region62: #{text_gen_forward.1} parent=31 // pred_check_branch
          %566 = sbr.rel (%p564) target = $region64
        $region63: #{text_gen_forward.1} parent=31 // pred_region
          %p567 = scmp.lt.s32.totalorder %s34, 1
          %s568 = scalar_select %p567, %s34, 1
          %s569 = smul.addr %s568, 64
          %s570 = smul.addr %s569, 4
          %s571 = scalar_lea.vmem %s9, %s570
        $region64: #{text_gen_forward.1} parent=31 // pred_fallthru
          _
        // Predicated region
        $region65: #{text_gen_forward.1} parent=31 // pred_check
          %p572 = pneg %p308
        $region66: #{text_gen_forward.1} parent=31 // pred_check_branch
          %574 = sbr.rel (%p572) target = $region68
        $region67: #{text_gen_forward.1} parent=31 // pred_region
          %p575 = scmp.lt.s32.totalorder %s34, 1
          %s576 = scalar_select %p575, %s34, 1
          %s577 = smul.addr %s576, 16
          %s578 = scalar_lea.vmem %s10, %s577
        $region68: #{text_gen_forward.1} parent=31 // pred_fallthru
          _
        // Predicated region
        $region69: #{text_gen_forward.1} parent=31 // pred_check
          %p579 = pneg %p334
        $region70: #{text_gen_forward.1} parent=31 // pred_check_branch
          %581 = sbr.rel (%p579) target = $region72
        $region71: #{text_gen_forward.1} parent=31 // pred_region
          %p582 = scmp.lt.s32.totalorder %s34, 1
          %s583 = scalar_select %p582, %s34, 1
          %s584 = smul.addr %s583, 256
          %s585 = smul.addr %s584, 4
          %s586 = scalar_lea.vmem %s11, %s585
        $region72: #{text_gen_forward.1} parent=31 // pred_fallthru
          _
        // Predicated region
        $region73: #{text_gen_forward.1} parent=31 // pred_check
          %p587 = pneg %p360
        $region74: #{text_gen_forward.1} parent=31 // pred_check_branch
          %589 = sbr.rel (%p587) target = $region76
        $region75: #{text_gen_forward.1} parent=31 // pred_region
          %p590 = scmp.lt.s32.totalorder %s34, 1
          %s591 = scalar_select %p590, %s34, 1
          %s592 = scalar_lea.vmem %s12, %s591
        $region76: #{text_gen_forward.1} parent=31 // pred_fallthru
          _
        // Predicated region
        $region77: #{text_gen_forward.1} parent=31 // pred_check
          %p593 = pneg %p386
        $region78: #{text_gen_forward.1} parent=31 // pred_check_branch
          %595 = sbr.rel (%p593) target = $region80
        $region79: #{text_gen_forward.1} parent=31 // pred_region
          %p596 = scmp.lt.s32.totalorder %s34, 1
          %s597 = scalar_select %p596, %s34, 1
          %s598 = scalar_lea.vmem %s13, %s597
        $region80: #{text_gen_forward.1} parent=31 // pred_fallthru
          _
        // Predicated region
        $region81: #{text_gen_forward.1} parent=31 // pred_check
          %p599 = pneg %p412
        $region82: #{text_gen_forward.1} parent=31 // pred_check_branch
          %601 = sbr.rel (%p599) target = $region84
        $region83: #{text_gen_forward.1} parent=31 // pred_region
          %p602 = scmp.lt.s32.totalorder %s34, 1
          %s603 = scalar_select %p602, %s34, 1
          %s604 = scalar_lea.vmem %s14, %s603
        $region84: #{text_gen_forward.1} parent=31 // pred_fallthru
          _
      $region32: #{text_gen_forward.1} parent=5 // pred_fallthru
        _
      %p605 = scmp.le.s32.totalorder 1, %s26
      %p606 = scmp.lt.s32.totalorder %s26, 5
      %p607 = pnand %p605, %p606
      %p608 = pneg %p607
      // Predicated region
      $region85: #{text_gen_forward.1} parent=5 // pred_check
        _
      $region86: #{text_gen_forward.1} parent=5 // pred_check_branch
        %610 = sbr.rel (%p607) target = $region88
      $region87: #{text_gen_forward.1} parent=5 // pred_region
        %s611 = ssub.s32 %s26, 1
        %p612 = scmp.lt.s32.totalorder %s35, 1
        %s613 = scalar_select %p612, %s35, 1
        %s614 = smul.addr %s613, 8
        %s615 = scalar_lea.vmem %s0, %s614
        %p616 = pneg %p64
        %p617 = pneg %p61
        %p618 = pneg %p85
        %p619 = pneg %p82
        %p620 = pneg %p106
        %p621 = pneg %p103
        %p622 = scmp.lt.s32.totalorder %s36, 1
        %s623 = scalar_select %p622, %s36, 1
        %s624 = smul.addr %s623, 4
        %s625 = smul.addr %s624, 8
        %s626 = scalar_lea.vmem %s3, %s625
        %p627 = pneg %p132
        %p628 = pneg %p129
        %p629 = scmp.lt.s32.totalorder %s36, 1
        %s630 = scalar_select %p629, %s36, 1
        %s631 = scalar_lea.vmem %s4, %s630
        %p632 = pneg %p158
        %p633 = pneg %p155
        %p634 = scmp.lt.s32.totalorder %s36, 1
        %s635 = scalar_select %p634, %s36, 1
        %s636 = smul.addr %s635, 4
        %s637 = smul.addr %s636, 8
        %s638 = scalar_lea.vmem %s5, %s637
        %p639 = pneg %p184
        %p640 = pneg %p181
        %p641 = scmp.lt.s32.totalorder %s36, 1
        %s642 = scalar_select %p641, %s36, 1
        %s643 = scalar_lea.vmem %s6, %s642
        %p644 = pneg %p210
        %p645 = pneg %p207
        %p646 = scmp.lt.s32.totalorder %s36, 1
        %s647 = scalar_select %p646, %s36, 1
        %s648 = scalar_lea.vmem %s7, %s647
        %p649 = pneg %p236
        %p650 = pneg %p233
        %p651 = scmp.lt.s32.totalorder %s36, 1
        %s652 = scalar_select %p651, %s36, 1
        %s653 = scalar_lea.vmem %s8, %s652
        %p654 = pneg %p262
        %p655 = pneg %p259
        %p656 = scmp.lt.s32.totalorder %s36, 1
        %s657 = scalar_select %p656, %s36, 1
        %s658 = smul.addr %s657, 64
        %s659 = smul.addr %s658, 4
        %s660 = scalar_lea.vmem %s9, %s659
        %p661 = pneg %p288
        %p662 = pneg %p285
        %p663 = scmp.lt.s32.totalorder %s36, 1
        %s664 = scalar_select %p663, %s36, 1
        %s665 = smul.addr %s664, 16
        %s666 = scalar_lea.vmem %s10, %s665
        %p667 = pneg %p314
        %p668 = pneg %p311
        %p669 = scmp.lt.s32.totalorder %s36, 1
        %s670 = scalar_select %p669, %s36, 1
        %s671 = smul.addr %s670, 256
        %s672 = smul.addr %s671, 4
        %s673 = scalar_lea.vmem %s11, %s672
        %p674 = pneg %p340
        %p675 = pneg %p337
        %p676 = scmp.lt.s32.totalorder %s36, 1
        %s677 = scalar_select %p676, %s36, 1
        %s678 = scalar_lea.vmem %s12, %s677
        %p679 = pneg %p366
        %p680 = pneg %p363
        %p681 = scmp.lt.s32.totalorder %s36, 1
        %s682 = scalar_select %p681, %s36, 1
        %s683 = scalar_lea.vmem %s13, %s682
        %p684 = pneg %p392
        %p685 = pneg %p389
        %p686 = scmp.lt.s32.totalorder %s36, 1
        %s687 = scalar_select %p686, %s36, 1
        %s688 = scalar_lea.vmem %s14, %s687
        %p689 = pneg %p418
        %p690 = pneg %p415
        %p691 = pneg %p439
        %p692 = pneg %p436
        %p693 = pneg %p460
        %p694 = pneg %p457
        %p695 = pneg %p486
        %p696 = pneg %p483
        %s697 = sand.u32 %s473, 1
        %s698 = scalar_lea.sflag [#allocation4], %s697
        %s699 = sand.u32 %s473, 1
        %s700 = smul.addr %s699, 8
        %s701 = scalar_lea.vmem [#allocation3], %s700
        %p702 = scmp.lt.s32.totalorder %s35, 1
        %s703 = scalar_select %p702, %s35, 1
        %s704 = smul.addr %s703, 8
        %s705 = scalar_lea.vmem %s0, %s704
        %p706 = scmp.lt.s32.totalorder %s36, 1
        %s707 = scalar_select %p706, %s36, 1
        %s708 = smul.addr %s707, 4
        %s709 = smul.addr %s708, 8
        %s710 = scalar_lea.vmem %s3, %s709
        %p711 = scmp.lt.s32.totalorder %s36, 1
        %s712 = scalar_select %p711, %s36, 1
        %s713 = scalar_lea.vmem %s4, %s712
        %p714 = scmp.lt.s32.totalorder %s36, 1
        %s715 = scalar_select %p714, %s36, 1
        %s716 = smul.addr %s715, 4
        %s717 = smul.addr %s716, 8
        %s718 = scalar_lea.vmem %s5, %s717
        %p719 = scmp.lt.s32.totalorder %s36, 1
        %s720 = scalar_select %p719, %s36, 1
        %s721 = scalar_lea.vmem %s6, %s720
        %p722 = scmp.lt.s32.totalorder %s36, 1
        %s723 = scalar_select %p722, %s36, 1
        %s724 = scalar_lea.vmem %s7, %s723
        %p725 = scmp.lt.s32.totalorder %s36, 1
        %s726 = scalar_select %p725, %s36, 1
        %s727 = scalar_lea.vmem %s8, %s726
        %p728 = scmp.lt.s32.totalorder %s36, 1
        %s729 = scalar_select %p728, %s36, 1
        %s730 = smul.addr %s729, 64
        %s731 = smul.addr %s730, 4
        %s732 = scalar_lea.vmem %s9, %s731
        %p733 = scmp.lt.s32.totalorder %s36, 1
        %s734 = scalar_select %p733, %s36, 1
        %s735 = smul.addr %s734, 16
        %s736 = scalar_lea.vmem %s10, %s735
        %p737 = scmp.lt.s32.totalorder %s36, 1
        %s738 = scalar_select %p737, %s36, 1
        %s739 = smul.addr %s738, 256
        %s740 = smul.addr %s739, 4
        %s741 = scalar_lea.vmem %s11, %s740
        %p742 = scmp.lt.s32.totalorder %s36, 1
        %s743 = scalar_select %p742, %s36, 1
        %s744 = scalar_lea.vmem %s12, %s743
        %p745 = scmp.lt.s32.totalorder %s36, 1
        %s746 = scalar_select %p745, %s36, 1
        %s747 = scalar_lea.vmem %s13, %s746
        %p748 = scmp.lt.s32.totalorder %s36, 1
        %s749 = scalar_select %p748, %s36, 1
        %s750 = scalar_lea.vmem %s14, %s749
        %p752 = scmp.eq.s32.totalorder %s36, 0
        // Predicated region
        $region89: #{text_gen_forward.1} parent=87 // pred_check
          %p753 = pneg %p752
        $region90: #{text_gen_forward.1} parent=87 // pred_check_branch
          %755 = sbr.rel (%p753) target = $region92
        $region91: #{text_gen_forward.1} parent=87 // pred_region
          %v756 = vld [vmem:[%s705] sm:$0xff]
          %v757 = vlaneseq
          %v758 = vand.u32 %v757, 127
          %759 = vset.pattern.permute.xlu0 0
          %760 = vperm.xlu0 %759, %v756
          %v761 = vpop.permute.xlu0 %760
          %vm762 = vcmp.eq.s32.totalorder %v761, %v758
          %v763 = vsel %vm762, 1, 0
          %v764 = vcvt.s32.f32 %v763
          %v765 = vld [vmem:[%s1] sm:$0xff]
          %v766 = vld [vmem:[%s1 + $0x8] sm:$0xff]
          %v767 = vld [vmem:[%s1 + $0x10] sm:$0xff]
          %v768 = vld [vmem:[%s1 + $0x18] sm:$0xff]
          %v769 = vld [vmem:[%s1 + $0x20] sm:$0xff]
          %v770 = vld [vmem:[%s1 + $0x28] sm:$0xff]
          %v771 = vld [vmem:[%s1 + $0x30] sm:$0x3]
          %v772 = vld [vmem:[%s2] sm:$0xff]
          %vm773 = vcmask 408576
          %v775 = vsel %vm773, %v764, 0
          %vm777 = vcmask 1041408
          %v779 = vsel %vm777, %v771, 0
          %781 = vmatprep.subr.mxu0 0.0
          %782 = vmatpush1.msra.mxu0 0.0
          %783 = vmatprep.subr.mxu0 0.0
          %784 = vmatpush1.msra.mxu0 0.0
          %785 = vmatprep.subr.mxu0 0.0
          %786 = vmatpush1.msra.mxu0 0.0
          %787 = vmatprep.subr.mxu0 0.0
          %788 = vmatpush1.msra.mxu0 0.0
          %789 = vmatprep.subr.mxu0 0.0
          %790 = vmatpush1.msra.mxu0 0.0
          %791 = vmatprep.subr.mxu0 0.0
          %792 = vmatpush1.msra.mxu0 0.0
          %793 = vmatprep.subr.mxu0 0.0
          %794 = vmatpush1.msra.mxu0 0.0
          %795 = vmatprep.subr.mxu0 0.0
          %796 = vmatpush1.msra.mxu0 0.0
          %797 = vmatprep.subr.mxu0 0.0
          %798 = vmatpush1.msra.mxu0 0.0
          %799 = vmatprep.subr.mxu0 0.0
          %800 = vmatpush1.msra.mxu0 %v779
          %801 = vmatprep.subr.mxu0 0.0
          %802 = vmatpush1.msra.mxu0 %v770
          %803 = vmatprep.subr.mxu0 0.0
          %804 = vmatpush1.msra.mxu0 %v769
          %805 = vmatprep.subr.mxu0 0.0
          %806 = vmatpush1.msra.mxu0 %v768
          %807 = vmatprep.subr.mxu0 0.0
          %808 = vmatpush1.msra.mxu0 %v767
          %809 = vmatprep.subr.mxu0 0.0
          %810 = vmatpush1.msra.mxu0 %v766
          %811 = vmatprep.subr.mxu0 0.0
          %812 = vmatpush1.msra.mxu0 %v765
          %813 = vmatprep.subr.mxu0 0.0
          %814 = vmatpush2.msra.mxu0 0.0
          %815 = vmatprep.subr.mxu0 0.0
          %816 = vmatpush2.msra.mxu0 0.0
          %817 = vmatprep.subr.mxu0 0.0
          %818 = vmatpush2.msra.mxu0 0.0
          %819 = vmatprep.subr.mxu0 0.0
          %820 = vmatpush2.msra.mxu0 0.0
          %821 = vmatprep.subr.mxu0 0.0
          %822 = vmatpush2.msra.mxu0 0.0
          %823 = vmatprep.subr.mxu0 0.0
          %824 = vmatpush2.msra.mxu0 0.0
          %825 = vmatprep.subr.mxu0 0.0
          %826 = vmatpush2.msra.mxu0 0.0
          %827 = vmatprep.subr.mxu0 0.0
          %828 = vmatpush2.msra.mxu0 0.0
          %829 = vmatprep.subr.mxu0 0.0
          %830 = vmatpush2.msra.mxu0 0.0
          %831 = vmatprep.subr.mxu0 0.0
          %832 = vmatpush2.msra.mxu0 0.0
          %833 = vmatprep.subr.mxu0 0.0
          %834 = vmatpush2.msra.mxu0 0.0
          %835 = vmatprep.subr.mxu0 0.0
          %836 = vmatpush2.msra.mxu0 0.0
          %837 = vmatprep.subr.mxu0 0.0
          %838 = vmatpush2.msra.mxu0 0.0
          %839 = vmatprep.subr.mxu0 0.0
          %840 = vmatpush2.msra.mxu0 0.0
          %841 = vmatprep.subr.mxu0 0.0
          %842 = vmatpush2.msra.mxu0 0.0
          %843 = vmatprep.subr.mxu0 0.0
          %844 = vmatpush2.msra.mxu0 0.0
          %845 = vmatprep.mubr.f32.mxu0 0.0
          %846 = vmatmul.mubr.f32.gmra.mxu0 %v775
          %v847 = vpop.f32.mrf.mxu0
          %v848 = vadd.f32 %v772, %v847
          %v849 = vpop.f32.mrf.mxu0
          %850 = vdwg.mxu0
          %vm851 = vcmask 261120
          %852 = vst.msk [vmem:[#allocation2] sm:$0xff] %vm851, %v848
        $region92: #{text_gen_forward.1} parent=87 // pred_fallthru
          _
        %v853 = vld [vmem:[#allocation2] sm:$0xff]
        %v854 = vlaneseq
        %v855 = vshrl.u32 %v854, 7
        %v856 = vlaneseq
        %v857 = vand.u32 %v856, 127
        %vm858 = vcmp.le.s32.totalorder %v857, %v855
        %v859 = vld [vmem:[%s710] sm:$0xff]
        %v860 = vld [vmem:[%s710 + $0x8] sm:$0xff]
        %v861 = vld [vmem:[%s710 + $0x10] sm:$0xff]
        %v862 = vld [vmem:[%s710 + $0x18] sm:$0xff]
        %v863 = vld [vmem:[%s713] sm:$0x1]
        %v865 = vlaneseq
        %v866 = vshrl.u32 %v865, 7
        %v867 = vsub.s32 0, %v866
        %v868 = vrot.slane %v863, %v867
        %vm870 = vcmask 261120
        %v872 = vsel %vm870, %v853, 0
        %874 = vmatprep.subr.mxu0 0.0
        %875 = vmatpush1.msra.mxu0 0.0
        %876 = vmatprep.subr.mxu0 0.0
        %877 = vmatpush1.msra.mxu0 0.0
        %878 = vmatprep.subr.mxu0 0.0
        %879 = vmatpush1.msra.mxu0 0.0
        %880 = vmatprep.subr.mxu0 0.0
        %881 = vmatpush1.msra.mxu0 0.0
        %882 = vmatprep.subr.mxu0 0.0
        %883 = vmatpush1.msra.mxu0 0.0
        %884 = vmatprep.subr.mxu0 0.0
        %885 = vmatpush1.msra.mxu0 0.0
        %886 = vmatprep.subr.mxu0 0.0
        %887 = vmatpush1.msra.mxu0 0.0
        %888 = vmatprep.subr.mxu0 0.0
        %889 = vmatpush1.msra.mxu0 0.0
        %890 = vmatprep.subr.mxu0 0.0
        %891 = vmatpush1.msra.mxu0 0.0
        %892 = vmatprep.subr.mxu0 0.0
        %893 = vmatpush1.msra.mxu0 0.0
        %894 = vmatprep.subr.mxu0 0.0
        %895 = vmatpush1.msra.mxu0 0.0
        %896 = vmatprep.subr.mxu0 0.0
        %897 = vmatpush1.msra.mxu0 0.0
        %898 = vmatprep.subr.mxu0 0.0
        %899 = vmatpush1.msra.mxu0 %v862
        %900 = vmatprep.subr.mxu0 0.0
        %901 = vmatpush1.msra.mxu0 %v861
        %902 = vmatprep.subr.mxu0 0.0
        %903 = vmatpush1.msra.mxu0 %v860
        %904 = vmatprep.subr.mxu0 0.0
        %905 = vmatpush1.msra.mxu0 %v859
        %906 = vmatprep.subr.mxu0 0.0
        %907 = vmatpush2.msra.mxu0 0.0
        %908 = vmatprep.subr.mxu0 0.0
        %909 = vmatpush2.msra.mxu0 0.0
        %910 = vmatprep.subr.mxu0 0.0
        %911 = vmatpush2.msra.mxu0 0.0
        %912 = vmatprep.subr.mxu0 0.0
        %913 = vmatpush2.msra.mxu0 0.0
        %914 = vmatprep.subr.mxu0 0.0
        %915 = vmatpush2.msra.mxu0 0.0
        %916 = vmatprep.subr.mxu0 0.0
        %917 = vmatpush2.msra.mxu0 0.0
        %918 = vmatprep.subr.mxu0 0.0
        %919 = vmatpush2.msra.mxu0 0.0
        %920 = vmatprep.subr.mxu0 0.0
        %921 = vmatpush2.msra.mxu0 0.0
        %922 = vmatprep.subr.mxu0 0.0
        %923 = vmatpush2.msra.mxu0 0.0
        %924 = vmatprep.subr.mxu0 0.0
        %925 = vmatpush2.msra.mxu0 0.0
        %926 = vmatprep.subr.mxu0 0.0
        %927 = vmatpush2.msra.mxu0 0.0
        %928 = vmatprep.subr.mxu0 0.0
        %929 = vmatpush2.msra.mxu0 0.0
        %930 = vmatprep.subr.mxu0 0.0
        %931 = vmatpush2.msra.mxu0 0.0
        %932 = vmatprep.subr.mxu0 0.0
        %933 = vmatpush2.msra.mxu0 0.0
        %934 = vmatprep.subr.mxu0 0.0
        %935 = vmatpush2.msra.mxu0 0.0
        %936 = vmatprep.subr.mxu0 0.0
        %937 = vmatpush2.msra.mxu0 0.0
        %938 = vmatprep.mubr.f32.mxu0 0.0
        %939 = vmatmul.mubr.f32.gmra.mxu0 %v872
        %v940 = vpop.f32.mrf.mxu0
        %v941 = vadd.f32 %v868, %v940
        %v942 = vpop.f32.mrf.mxu0
        %943 = vdwg.mxu0
        %945 = vrot.lane.b32.xlu0 %v941, 96
        %v946 = vpop.permute.xlu0 %945
        %v947 = vsel %vm870, %v941, 0
        %v949 = vsel %vm870, %v946, 0
        %951 = vmatprep.subr.mxu0 0.0
        %952 = vmatpush1.xpose.msra.mxu0 0.0
        %953 = vmatprep.subr.mxu0 0.0
        %954 = vmatpush1.xpose.msra.mxu0 0.0
        %955 = vmatprep.subr.mxu0 0.0
        %956 = vmatpush1.xpose.msra.mxu0 0.0
        %957 = vmatprep.subr.mxu0 0.0
        %958 = vmatpush1.xpose.msra.mxu0 0.0
        %959 = vmatprep.subr.mxu0 0.0
        %960 = vmatpush1.xpose.msra.mxu0 0.0
        %961 = vmatprep.subr.mxu0 0.0
        %962 = vmatpush1.xpose.msra.mxu0 0.0
        %963 = vmatprep.subr.mxu0 0.0
        %964 = vmatpush1.xpose.msra.mxu0 0.0
        %965 = vmatprep.subr.mxu0 0.0
        %966 = vmatpush1.xpose.msra.mxu0 0.0
        %967 = vmatprep.subr.mxu0 0.0
        %968 = vmatpush1.xpose.msra.mxu0 0.0
        %969 = vmatprep.subr.mxu0 0.0
        %970 = vmatpush1.xpose.msra.mxu0 0.0
        %971 = vmatprep.subr.mxu0 0.0
        %972 = vmatpush1.xpose.msra.mxu0 0.0
        %973 = vmatprep.subr.mxu0 0.0
        %974 = vmatpush1.xpose.msra.mxu0 0.0
        %975 = vmatprep.subr.mxu0 0.0
        %976 = vmatpush1.xpose.msra.mxu0 0.0
        %977 = vmatprep.subr.mxu0 0.0
        %978 = vmatpush1.xpose.msra.mxu0 0.0
        %979 = vmatprep.subr.mxu0 0.0
        %980 = vmatpush1.xpose.msra.mxu0 0.0
        %981 = vmatprep.subr.mxu0 0.0
        %982 = vmatpush1.xpose.msra.mxu0 %v949
        %983 = vmatprep.subr.mxu0 0.0
        %984 = vmatpush2.xpose.msra.mxu0 0.0
        %985 = vmatprep.subr.mxu0 0.0
        %986 = vmatpush2.xpose.msra.mxu0 0.0
        %987 = vmatprep.subr.mxu0 0.0
        %988 = vmatpush2.xpose.msra.mxu0 0.0
        %989 = vmatprep.subr.mxu0 0.0
        %990 = vmatpush2.xpose.msra.mxu0 0.0
        %991 = vmatprep.subr.mxu0 0.0
        %992 = vmatpush2.xpose.msra.mxu0 0.0
        %993 = vmatprep.subr.mxu0 0.0
        %994 = vmatpush2.xpose.msra.mxu0 0.0
        %995 = vmatprep.subr.mxu0 0.0
        %996 = vmatpush2.xpose.msra.mxu0 0.0
        %997 = vmatprep.subr.mxu0 0.0
        %998 = vmatpush2.xpose.msra.mxu0 0.0
        %999 = vmatprep.subr.mxu0 0.0
        %1000 = vmatpush2.xpose.msra.mxu0 0.0
        %1001 = vmatprep.subr.mxu0 0.0
        %1002 = vmatpush2.xpose.msra.mxu0 0.0
        %1003 = vmatprep.subr.mxu0 0.0
        %1004 = vmatpush2.xpose.msra.mxu0 0.0
        %1005 = vmatprep.subr.mxu0 0.0
        %1006 = vmatpush2.xpose.msra.mxu0 0.0
        %1007 = vmatprep.subr.mxu0 0.0
        %1008 = vmatpush2.xpose.msra.mxu0 0.0
        %1009 = vmatprep.subr.mxu0 0.0
        %1010 = vmatpush2.xpose.msra.mxu0 0.0
        %1011 = vmatprep.subr.mxu0 0.0
        %1012 = vmatpush2.xpose.msra.mxu0 0.0
        %1013 = vmatprep.subr.mxu0 0.0
        %1014 = vmatpush2.xpose.msra.mxu0 0.0
        %1015 = vmatprep.mubr.f32.mxu0 0.0
        %1016 = vmatmul.mubr.f32.gmra.mxu0 %v947
        %v1017 = vpop.f32.mrf.mxu0
        %v1018 = vadd.f32 0.0, %v1017
        %v1019 = vpop.f32.mrf.mxu0
        %1020 = vdwg.mxu0
        %v1021 = vsel %vm858, -1e+09, %v1018
        %vm1022 = vcmask 64512
        %v1023 = vsel %vm1022, %v1021, -inf
        %1024 = vmax.xlane.f32.xlu0 %v1023
        %v1025 = vpop.xlane.xlu0 %1024
        %v1026 = vsub.f32 %v1021, %v1025
        %v1027 = vmul.f32 %v1026, 1.442695
        %v1028 = vpow.pop %v1027
        %v1029 = vsel %vm1022, %v1028, 0.0
        %1030 = vadd.xlane.f32.xlu0 %v1029
        %v1031 = vpop.xlane.xlu0 %1030
        %v1032 = vrcp.pop %v1031
        %v1033 = vmul.f32 %v1028, %v1032
        %1034 = vrot.lane.b32.xlu0 %v941, 64
        %v1035 = vpop.permute.xlu0 %1034
        %v1038 = vsel %vm1022, %v1033, 0
        %1040 = vmatprep.subr.mxu0 0.0
        %1041 = vmatpush1.msra.mxu0 0.0
        %1042 = vmatprep.subr.mxu0 0.0
        %1043 = vmatpush1.msra.mxu0 0.0
        %1044 = vmatprep.subr.mxu0 0.0
        %1045 = vmatpush1.msra.mxu0 0.0
        %1046 = vmatprep.subr.mxu0 0.0
        %1047 = vmatpush1.msra.mxu0 0.0
        %1048 = vmatprep.subr.mxu0 0.0
        %1049 = vmatpush1.msra.mxu0 0.0
        %1050 = vmatprep.subr.mxu0 0.0
        %1051 = vmatpush1.msra.mxu0 0.0
        %1052 = vmatprep.subr.mxu0 0.0
        %1053 = vmatpush1.msra.mxu0 0.0
        %1054 = vmatprep.subr.mxu0 0.0
        %1055 = vmatpush1.msra.mxu0 0.0
        %1056 = vmatprep.subr.mxu0 0.0
        %1057 = vmatpush1.msra.mxu0 0.0
        %1058 = vmatprep.subr.mxu0 0.0
        %1059 = vmatpush1.msra.mxu0 0.0
        %1060 = vmatprep.subr.mxu0 0.0
        %1061 = vmatpush1.msra.mxu0 0.0
        %1062 = vmatprep.subr.mxu0 0.0
        %1063 = vmatpush1.msra.mxu0 0.0
        %1064 = vmatprep.subr.mxu0 0.0
        %1065 = vmatpush1.msra.mxu0 0.0
        %1066 = vmatprep.subr.mxu0 0.0
        %1067 = vmatpush1.msra.mxu0 0.0
        %1068 = vmatprep.subr.mxu0 0.0
        %1069 = vmatpush1.msra.mxu0 0.0
        %1070 = vmatprep.subr.mxu0 0.0
        %1071 = vmatpush1.msra.mxu0 %v1035
        %1072 = vmatprep.subr.mxu0 0.0
        %1073 = vmatpush2.msra.mxu0 0.0
        %1074 = vmatprep.subr.mxu0 0.0
        %1075 = vmatpush2.msra.mxu0 0.0
        %1076 = vmatprep.subr.mxu0 0.0
        %1077 = vmatpush2.msra.mxu0 0.0
        %1078 = vmatprep.subr.mxu0 0.0
        %1079 = vmatpush2.msra.mxu0 0.0
        %1080 = vmatprep.subr.mxu0 0.0
        %1081 = vmatpush2.msra.mxu0 0.0
        %1082 = vmatprep.subr.mxu0 0.0
        %1083 = vmatpush2.msra.mxu0 0.0
        %1084 = vmatprep.subr.mxu0 0.0
        %1085 = vmatpush2.msra.mxu0 0.0
        %1086 = vmatprep.subr.mxu0 0.0
        %1087 = vmatpush2.msra.mxu0 0.0
        %1088 = vmatprep.subr.mxu0 0.0
        %1089 = vmatpush2.msra.mxu0 0.0
        %1090 = vmatprep.subr.mxu0 0.0
        %1091 = vmatpush2.msra.mxu0 0.0
        %1092 = vmatprep.subr.mxu0 0.0
        %1093 = vmatpush2.msra.mxu0 0.0
        %1094 = vmatprep.subr.mxu0 0.0
        %1095 = vmatpush2.msra.mxu0 0.0
        %1096 = vmatprep.subr.mxu0 0.0
        %1097 = vmatpush2.msra.mxu0 0.0
        %1098 = vmatprep.subr.mxu0 0.0
        %1099 = vmatpush2.msra.mxu0 0.0
        %1100 = vmatprep.subr.mxu0 0.0
        %1101 = vmatpush2.msra.mxu0 0.0
        %1102 = vmatprep.subr.mxu0 0.0
        %1103 = vmatpush2.msra.mxu0 0.0
        %1104 = vmatprep.mubr.f32.mxu0 0.0
        %1105 = vmatmul.mubr.f32.gmra.mxu0 %v1038
        %v1106 = vpop.f32.mrf.mxu0
        %v1107 = vadd.f32 0.0, %v1106
        %v1108 = vpop.f32.mrf.mxu0
        %1109 = vdwg.mxu0
        %v1110 = vld [vmem:[%s718] sm:$0xff]
        %v1111 = vld [vmem:[%s718 + $0x8] sm:$0xff]
        %v1112 = vld [vmem:[%s718 + $0x10] sm:$0xff]
        %v1113 = vld [vmem:[%s718 + $0x18] sm:$0xff]
        %v1114 = vld [vmem:[%s721] sm:$0x1]
        %v1116 = vlaneseq
        %v1117 = vshrl.u32 %v1116, 7
        %v1118 = vsub.s32 0, %v1117
        %v1119 = vrot.slane %v1114, %v1118
        %v1122 = vsel %vm870, %v1107, 0
        %1124 = vmatprep.subr.mxu0 0.0
        %1125 = vmatpush1.msra.mxu0 0.0
        %1126 = vmatprep.subr.mxu0 0.0
        %1127 = vmatpush1.msra.mxu0 0.0
        %1128 = vmatprep.subr.mxu0 0.0
        %1129 = vmatpush1.msra.mxu0 0.0
        %1130 = vmatprep.subr.mxu0 0.0
        %1131 = vmatpush1.msra.mxu0 0.0
        %1132 = vmatprep.subr.mxu0 0.0
        %1133 = vmatpush1.msra.mxu0 0.0
        %1134 = vmatprep.subr.mxu0 0.0
        %1135 = vmatpush1.msra.mxu0 0.0
        %1136 = vmatprep.subr.mxu0 0.0
        %1137 = vmatpush1.msra.mxu0 0.0
        %1138 = vmatprep.subr.mxu0 0.0
        %1139 = vmatpush1.msra.mxu0 0.0
        %1140 = vmatprep.subr.mxu0 0.0
        %1141 = vmatpush1.msra.mxu0 0.0
        %1142 = vmatprep.subr.mxu0 0.0
        %1143 = vmatpush1.msra.mxu0 0.0
        %1144 = vmatprep.subr.mxu0 0.0
        %1145 = vmatpush1.msra.mxu0 0.0
        %1146 = vmatprep.subr.mxu0 0.0
        %1147 = vmatpush1.msra.mxu0 0.0
        %1148 = vmatprep.subr.mxu0 0.0
        %1149 = vmatpush1.msra.mxu0 %v1113
        %1150 = vmatprep.subr.mxu0 0.0
        %1151 = vmatpush1.msra.mxu0 %v1112
        %1152 = vmatprep.subr.mxu0 0.0
        %1153 = vmatpush1.msra.mxu0 %v1111
        %1154 = vmatprep.subr.mxu0 0.0
        %1155 = vmatpush1.msra.mxu0 %v1110
        %1156 = vmatprep.subr.mxu0 0.0
        %1157 = vmatpush2.msra.mxu0 0.0
        %1158 = vmatprep.subr.mxu0 0.0
        %1159 = vmatpush2.msra.mxu0 0.0
        %1160 = vmatprep.subr.mxu0 0.0
        %1161 = vmatpush2.msra.mxu0 0.0
        %1162 = vmatprep.subr.mxu0 0.0
        %1163 = vmatpush2.msra.mxu0 0.0
        %1164 = vmatprep.subr.mxu0 0.0
        %1165 = vmatpush2.msra.mxu0 0.0
        %1166 = vmatprep.subr.mxu0 0.0
        %1167 = vmatpush2.msra.mxu0 0.0
        %1168 = vmatprep.subr.mxu0 0.0
        %1169 = vmatpush2.msra.mxu0 0.0
        %1170 = vmatprep.subr.mxu0 0.0
        %1171 = vmatpush2.msra.mxu0 0.0
        %1172 = vmatprep.subr.mxu0 0.0
        %1173 = vmatpush2.msra.mxu0 0.0
        %1174 = vmatprep.subr.mxu0 0.0
        %1175 = vmatpush2.msra.mxu0 0.0
        %1176 = vmatprep.subr.mxu0 0.0
        %1177 = vmatpush2.msra.mxu0 0.0
        %1178 = vmatprep.subr.mxu0 0.0
        %1179 = vmatpush2.msra.mxu0 0.0
        %1180 = vmatprep.subr.mxu0 0.0
        %1181 = vmatpush2.msra.mxu0 0.0
        %1182 = vmatprep.subr.mxu0 0.0
        %1183 = vmatpush2.msra.mxu0 0.0
        %1184 = vmatprep.subr.mxu0 0.0
        %1185 = vmatpush2.msra.mxu0 0.0
        %1186 = vmatprep.subr.mxu0 0.0
        %1187 = vmatpush2.msra.mxu0 0.0
        %1188 = vmatprep.mubr.f32.mxu0 0.0
        %1189 = vmatmul.mubr.f32.gmra.mxu0 %v1122
        %v1190 = vpop.f32.mrf.mxu0
        %v1191 = vadd.f32 %v1119, %v1190
        %v1192 = vpop.f32.mrf.mxu0
        %1193 = vdwg.mxu0
        %v1194 = vadd.f32 %v853, %v1191
        %v1195 = vsel %vm870, %v1194, 0.0
        %1196 = vadd.xlane.f32.xlu0 %v1195
        %v1197 = vpop.xlane.xlu0 %1196
        %v1198 = vrcp.pop 32.0
        %v1199 = vmul.f32 %v1197, %v1198
        %v1200 = vsub.f32 %v1194, %v1199
        %v1201 = vmul.f32 %v1200, %v1200
        %v1202 = vsel %vm870, %v1201, 0.0
        %1203 = vadd.xlane.f32.xlu0 %v1202
        %v1204 = vpop.xlane.xlu0 %1203
        %v1205 = vmul.f32 %v1204, %v1198
        %v1206 = vadd.f32 %v1205, 1e-05
        %v1207 = vrsqrt.pop %v1206
        %v1208 = vmul.f32 %v1200, %v1207
        %v1209 = vld [vmem:[%s724] sm:$0x1]
        %v1211 = vlaneseq
        %v1212 = vshrl.u32 %v1211, 7
        %v1213 = vsub.s32 0, %v1212
        %v1214 = vrot.slane %v1209, %v1213
        %v1216 = vmul.f32 %v1208, %v1214
        %v1217 = vld [vmem:[%s727] sm:$0x1]
        %v1219 = vlaneseq
        %v1220 = vshrl.u32 %v1219, 7
        %v1221 = vsub.s32 0, %v1220
        %v1222 = vrot.slane %v1217, %v1221
        %v1224 = vadd.f32 %v1216, %v1222
        %v1225 = vpack.c.bf16 %v1224, %v1224
        %v1226 = vld [vmem:[%s732] sm:$0xff]
        %v1227 = vld [vmem:[%s732 + $0x8] sm:$0xff]
        %v1228 = vld [vmem:[%s732 + $0x10] sm:$0xff]
        %v1229 = vld [vmem:[%s732 + $0x18] sm:$0xff]
        %v1230 = vld [vmem:[%s732 + $0x20] sm:$0xff]
        %v1231 = vld [vmem:[%s732 + $0x28] sm:$0xff]
        %v1232 = vld [vmem:[%s732 + $0x30] sm:$0xff]
        %v1233 = vld [vmem:[%s732 + $0x38] sm:$0xff]
        %v1234 = vld [vmem:[%s732 + $0x40] sm:$0xff]
        %v1235 = vld [vmem:[%s732 + $0x48] sm:$0xff]
        %v1236 = vld [vmem:[%s732 + $0x50] sm:$0xff]
        %v1237 = vld [vmem:[%s732 + $0x58] sm:$0xff]
        %v1238 = vld [vmem:[%s732 + $0x60] sm:$0xff]
        %v1239 = vld [vmem:[%s732 + $0x68] sm:$0xff]
        %v1240 = vld [vmem:[%s732 + $0x70] sm:$0xff]
        %v1241 = vld [vmem:[%s732 + $0x78] sm:$0xff]
        %v1242 = vld [vmem:[%s732 + $0x80] sm:$0xff]
        %v1243 = vld [vmem:[%s732 + $0x88] sm:$0xff]
        %v1244 = vld [vmem:[%s732 + $0x90] sm:$0xff]
        %v1245 = vld [vmem:[%s732 + $0x98] sm:$0xff]
        %v1246 = vld [vmem:[%s732 + $0xa0] sm:$0xff]
        %v1247 = vld [vmem:[%s732 + $0xa8] sm:$0xff]
        %v1248 = vld [vmem:[%s732 + $0xb0] sm:$0xff]
        %v1249 = vld [vmem:[%s732 + $0xb8] sm:$0xff]
        %v1250 = vld [vmem:[%s732 + $0xc0] sm:$0xff]
        %v1251 = vld [vmem:[%s732 + $0xc8] sm:$0xff]
        %v1252 = vld [vmem:[%s732 + $0xd0] sm:$0xff]
        %v1253 = vld [vmem:[%s732 + $0xd8] sm:$0xff]
        %v1254 = vld [vmem:[%s732 + $0xe0] sm:$0xff]
        %v1255 = vld [vmem:[%s732 + $0xe8] sm:$0xff]
        %v1256 = vld [vmem:[%s732 + $0xf0] sm:$0xff]
        %v1257 = vld [vmem:[%s732 + $0xf8] sm:$0xff]
        %v1258 = vld [vmem:[%s736] sm:$0xff]
        %v1259 = vld [vmem:[%s736 + $0x8] sm:$0xff]
        %v1262 = vlaneseq
        %v1263 = vshrl.u32 %v1262, 7
        %v1264 = vsub.s32 0, %v1263
        %v1265 = vrot.slane %v1258, %v1264
        %v1266 = vlaneseq
        %v1267 = vshrl.u32 %v1266, 7
        %v1268 = vsub.s32 1, %v1267
        %v1269 = vrot.slane %v1258, %v1268
        %v1270 = vlaneseq
        %v1271 = vshrl.u32 %v1270, 7
        %v1272 = vsub.s32 2, %v1271
        %v1273 = vrot.slane %v1258, %v1272
        %v1274 = vlaneseq
        %v1275 = vshrl.u32 %v1274, 7
        %v1276 = vsub.s32 3, %v1275
        %v1277 = vrot.slane %v1258, %v1276
        %v1278 = vlaneseq
        %v1279 = vshrl.u32 %v1278, 7
        %v1280 = vsub.s32 4, %v1279
        %v1281 = vrot.slane %v1258, %v1280
        %v1282 = vlaneseq
        %v1283 = vshrl.u32 %v1282, 7
        %v1284 = vsub.s32 5, %v1283
        %v1285 = vrot.slane %v1258, %v1284
        %v1286 = vlaneseq
        %v1287 = vshrl.u32 %v1286, 7
        %v1288 = vsub.s32 6, %v1287
        %v1289 = vrot.slane %v1258, %v1288
        %v1290 = vlaneseq
        %v1291 = vshrl.u32 %v1290, 7
        %v1292 = vsub.s32 7, %v1291
        %v1293 = vrot.slane %v1258, %v1292
        %v1294 = vlaneseq
        %v1295 = vshrl.u32 %v1294, 7
        %v1296 = vsub.s32 0, %v1295
        %v1297 = vrot.slane %v1259, %v1296
        %v1298 = vlaneseq
        %v1299 = vshrl.u32 %v1298, 7
        %v1300 = vsub.s32 1, %v1299
        %v1301 = vrot.slane %v1259, %v1300
        %v1302 = vlaneseq
        %v1303 = vshrl.u32 %v1302, 7
        %v1304 = vsub.s32 2, %v1303
        %v1305 = vrot.slane %v1259, %v1304
        %v1306 = vlaneseq
        %v1307 = vshrl.u32 %v1306, 7
        %v1308 = vsub.s32 3, %v1307
        %v1309 = vrot.slane %v1259, %v1308
        %v1310 = vlaneseq
        %v1311 = vshrl.u32 %v1310, 7
        %v1312 = vsub.s32 4, %v1311
        %v1313 = vrot.slane %v1259, %v1312
        %v1314 = vlaneseq
        %v1315 = vshrl.u32 %v1314, 7
        %v1316 = vsub.s32 5, %v1315
        %v1317 = vrot.slane %v1259, %v1316
        %v1318 = vlaneseq
        %v1319 = vshrl.u32 %v1318, 7
        %v1320 = vsub.s32 6, %v1319
        %v1321 = vrot.slane %v1259, %v1320
        %v1322 = vlaneseq
        %v1323 = vshrl.u32 %v1322, 7
        %v1324 = vsub.s32 7, %v1323
        %v1325 = vrot.slane %v1259, %v1324
        %v1374 = vunpack.c.l.b16 %v1226
        %v1375 = vunpack.c.h.b16 %v1226
        %v1376 = vunpack.c.l.b16 %v1227
        %v1377 = vunpack.c.h.b16 %v1227
        %v1378 = vunpack.c.l.b16 %v1228
        %v1379 = vunpack.c.h.b16 %v1228
        %v1380 = vunpack.c.l.b16 %v1229
        %v1381 = vunpack.c.h.b16 %v1229
        %v1382 = vunpack.c.l.b16 %v1230
        %v1383 = vunpack.c.h.b16 %v1230
        %v1384 = vunpack.c.l.b16 %v1231
        %v1385 = vunpack.c.h.b16 %v1231
        %v1386 = vunpack.c.l.b16 %v1232
        %v1387 = vunpack.c.h.b16 %v1232
        %v1388 = vunpack.c.l.b16 %v1233
        %v1389 = vunpack.c.h.b16 %v1233
        %v1390 = vunpack.c.l.b16 %v1234
        %v1391 = vunpack.c.h.b16 %v1234
        %v1392 = vunpack.c.l.b16 %v1235
        %v1393 = vunpack.c.h.b16 %v1235
        %v1394 = vunpack.c.l.b16 %v1236
        %v1395 = vunpack.c.h.b16 %v1236
        %v1396 = vunpack.c.l.b16 %v1237
        %v1397 = vunpack.c.h.b16 %v1237
        %v1398 = vunpack.c.l.b16 %v1238
        %v1399 = vunpack.c.h.b16 %v1238
        %v1400 = vunpack.c.l.b16 %v1239
        %v1401 = vunpack.c.h.b16 %v1239
        %v1402 = vunpack.c.l.b16 %v1240
        %v1403 = vunpack.c.h.b16 %v1240
        %v1404 = vunpack.c.l.b16 %v1241
        %v1405 = vunpack.c.h.b16 %v1241
        %v1406 = vunpack.c.l.b16 %v1242
        %v1407 = vunpack.c.h.b16 %v1242
        %v1408 = vunpack.c.l.b16 %v1243
        %v1409 = vunpack.c.h.b16 %v1243
        %v1410 = vunpack.c.l.b16 %v1244
        %v1411 = vunpack.c.h.b16 %v1244
        %v1412 = vunpack.c.l.b16 %v1245
        %v1413 = vunpack.c.h.b16 %v1245
        %v1414 = vunpack.c.l.b16 %v1246
        %v1415 = vunpack.c.h.b16 %v1246
        %v1416 = vunpack.c.l.b16 %v1247
        %v1417 = vunpack.c.h.b16 %v1247
        %v1418 = vunpack.c.l.b16 %v1248
        %v1419 = vunpack.c.h.b16 %v1248
        %v1420 = vunpack.c.l.b16 %v1249
        %v1421 = vunpack.c.h.b16 %v1249
        %v1422 = vunpack.c.l.b16 %v1250
        %v1423 = vunpack.c.h.b16 %v1250
        %v1424 = vunpack.c.l.b16 %v1251
        %v1425 = vunpack.c.h.b16 %v1251
        %v1426 = vunpack.c.l.b16 %v1252
        %v1427 = vunpack.c.h.b16 %v1252
        %v1428 = vunpack.c.l.b16 %v1253
        %v1429 = vunpack.c.h.b16 %v1253
        %v1430 = vunpack.c.l.b16 %v1254
        %v1431 = vunpack.c.h.b16 %v1254
        %v1432 = vunpack.c.l.b16 %v1255
        %v1433 = vunpack.c.h.b16 %v1255
        %v1434 = vunpack.c.l.b16 %v1256
        %v1435 = vunpack.c.h.b16 %v1256
        %v1436 = vunpack.c.l.b16 %v1257
        %v1437 = vunpack.c.h.b16 %v1257
        %v1438 = vpack.c.b16 %v1390, %v1374
        %v1439 = vpack.c.b16 %v1391, %v1375
        %v1440 = vpack.c.b16 %v1392, %v1376
        %v1441 = vpack.c.b16 %v1393, %v1377
        %v1442 = vpack.c.b16 %v1394, %v1378
        %v1443 = vpack.c.b16 %v1395, %v1379
        %v1444 = vpack.c.b16 %v1396, %v1380
        %v1445 = vpack.c.b16 %v1397, %v1381
        %v1446 = vpack.c.b16 %v1398, %v1382
        %v1447 = vpack.c.b16 %v1399, %v1383
        %v1448 = vpack.c.b16 %v1400, %v1384
        %v1449 = vpack.c.b16 %v1401, %v1385
        %v1450 = vpack.c.b16 %v1402, %v1386
        %v1451 = vpack.c.b16 %v1403, %v1387
        %v1452 = vpack.c.b16 %v1404, %v1388
        %v1453 = vpack.c.b16 %v1405, %v1389
        %v1454 = vpack.c.b16 %v1422, %v1406
        %v1455 = vpack.c.b16 %v1423, %v1407
        %v1456 = vpack.c.b16 %v1424, %v1408
        %v1457 = vpack.c.b16 %v1425, %v1409
        %v1458 = vpack.c.b16 %v1426, %v1410
        %v1459 = vpack.c.b16 %v1427, %v1411
        %v1460 = vpack.c.b16 %v1428, %v1412
        %v1461 = vpack.c.b16 %v1429, %v1413
        %v1462 = vpack.c.b16 %v1430, %v1414
        %v1463 = vpack.c.b16 %v1431, %v1415
        %v1464 = vpack.c.b16 %v1432, %v1416
        %v1465 = vpack.c.b16 %v1433, %v1417
        %v1466 = vpack.c.b16 %v1434, %v1418
        %v1467 = vpack.c.b16 %v1435, %v1419
        %v1468 = vpack.c.b16 %v1436, %v1420
        %v1469 = vpack.c.b16 %v1437, %v1421
        %v1503 = vsel %vm870, %v1225, 0
        %1505 = vmatprep.subr.bf16.mxu0 0
        %1506 = vmatpush1.bf16.msra.mxu0 0
        %1507 = vmatprep.subr.bf16.mxu0 0
        %1508 = vmatpush1.bf16.msra.mxu0 0
        %1509 = vmatprep.subr.bf16.mxu0 0
        %1510 = vmatpush1.bf16.msra.mxu0 0
        %1511 = vmatprep.subr.bf16.mxu0 0
        %1512 = vmatpush1.bf16.msra.mxu0 0
        %1513 = vmatprep.subr.bf16.mxu0 0
        %1514 = vmatpush1.bf16.msra.mxu0 0
        %1515 = vmatprep.subr.bf16.mxu0 0
        %1516 = vmatpush1.bf16.msra.mxu0 0
        %1517 = vmatprep.subr.bf16.mxu0 %v1455
        %1518 = vmatpush1.bf16.msra.mxu0 %v1454
        %1519 = vmatprep.subr.bf16.mxu0 %v1439
        %1520 = vmatpush1.bf16.msra.mxu0 %v1438
        %1521 = vmatprep.subr.bf16.mxu0 0
        %1522 = vmatpush2.bf16.msra.mxu0 0
        %1523 = vmatprep.subr.bf16.mxu0 0
        %1524 = vmatpush2.bf16.msra.mxu0 0
        %1525 = vmatprep.subr.bf16.mxu0 0
        %1526 = vmatpush2.bf16.msra.mxu0 0
        %1527 = vmatprep.subr.bf16.mxu0 0
        %1528 = vmatpush2.bf16.msra.mxu0 0
        %1529 = vmatprep.subr.bf16.mxu0 0
        %1530 = vmatpush2.bf16.msra.mxu0 0
        %1531 = vmatprep.subr.bf16.mxu0 0
        %1532 = vmatpush2.bf16.msra.mxu0 0
        %1533 = vmatprep.subr.bf16.mxu0 0
        %1534 = vmatpush2.bf16.msra.mxu0 0
        %1535 = vmatprep.subr.bf16.mxu0 0
        %1536 = vmatpush2.bf16.msra.mxu0 0
        %1537 = vmatprep.mubr.bf16.mxu0 0
        %1538 = vmatmul.mubr.bf16.gmra.mxu0 %v1503
        %v1539 = vpop.f32.mrf.mxu0
        %v1540 = vadd.f32 %v1265, %v1539
        %v1541 = vpop.f32.mrf.mxu0
        %v1542 = vadd.f32 %v1269, %v1541
        %v1543 = vpop.f32.mrf.mxu0
        %v1544 = vpop.f32.mrf.mxu0
        %1545 = vdwg.mxu0
        %1546 = vmatprep.subr.bf16.mxu0 0
        %1547 = vmatpush1.bf16.msra.mxu0 0
        %1548 = vmatprep.subr.bf16.mxu0 0
        %1549 = vmatpush1.bf16.msra.mxu0 0
        %1550 = vmatprep.subr.bf16.mxu0 0
        %1551 = vmatpush1.bf16.msra.mxu0 0
        %1552 = vmatprep.subr.bf16.mxu0 0
        %1553 = vmatpush1.bf16.msra.mxu0 0
        %1554 = vmatprep.subr.bf16.mxu0 0
        %1555 = vmatpush1.bf16.msra.mxu0 0
        %1556 = vmatprep.subr.bf16.mxu0 0
        %1557 = vmatpush1.bf16.msra.mxu0 0
        %1558 = vmatprep.subr.bf16.mxu0 %v1457
        %1559 = vmatpush1.bf16.msra.mxu0 %v1456
        %1560 = vmatprep.subr.bf16.mxu0 %v1441
        %1561 = vmatpush1.bf16.msra.mxu0 %v1440
        %1562 = vmatprep.subr.bf16.mxu0 0
        %1563 = vmatpush2.bf16.msra.mxu0 0
        %1564 = vmatprep.subr.bf16.mxu0 0
        %1565 = vmatpush2.bf16.msra.mxu0 0
        %1566 = vmatprep.subr.bf16.mxu0 0
        %1567 = vmatpush2.bf16.msra.mxu0 0
        %1568 = vmatprep.subr.bf16.mxu0 0
        %1569 = vmatpush2.bf16.msra.mxu0 0
        %1570 = vmatprep.subr.bf16.mxu0 0
        %1571 = vmatpush2.bf16.msra.mxu0 0
        %1572 = vmatprep.subr.bf16.mxu0 0
        %1573 = vmatpush2.bf16.msra.mxu0 0
        %1574 = vmatprep.subr.bf16.mxu0 0
        %1575 = vmatpush2.bf16.msra.mxu0 0
        %1576 = vmatprep.subr.bf16.mxu0 0
        %1577 = vmatpush2.bf16.msra.mxu0 0
        %1578 = vmatprep.mubr.bf16.mxu0 0
        %1579 = vmatmul.mubr.bf16.gmra.mxu0 %v1503
        %v1580 = vpop.f32.mrf.mxu0
        %v1581 = vadd.f32 %v1273, %v1580
        %v1582 = vpop.f32.mrf.mxu0
        %v1583 = vadd.f32 %v1277, %v1582
        %v1584 = vpop.f32.mrf.mxu0
        %v1585 = vpop.f32.mrf.mxu0
        %1586 = vdwg.mxu0
        %1587 = vmatprep.subr.bf16.mxu0 0
        %1588 = vmatpush1.bf16.msra.mxu0 0
        %1589 = vmatprep.subr.bf16.mxu0 0
        %1590 = vmatpush1.bf16.msra.mxu0 0
        %1591 = vmatprep.subr.bf16.mxu0 0
        %1592 = vmatpush1.bf16.msra.mxu0 0
        %1593 = vmatprep.subr.bf16.mxu0 0
        %1594 = vmatpush1.bf16.msra.mxu0 0
        %1595 = vmatprep.subr.bf16.mxu0 0
        %1596 = vmatpush1.bf16.msra.mxu0 0
        %1597 = vmatprep.subr.bf16.mxu0 0
        %1598 = vmatpush1.bf16.msra.mxu0 0
        %1599 = vmatprep.subr.bf16.mxu0 %v1459
        %1600 = vmatpush1.bf16.msra.mxu0 %v1458
        %1601 = vmatprep.subr.bf16.mxu0 %v1443
        %1602 = vmatpush1.bf16.msra.mxu0 %v1442
        %1603 = vmatprep.subr.bf16.mxu0 0
        %1604 = vmatpush2.bf16.msra.mxu0 0
        %1605 = vmatprep.subr.bf16.mxu0 0
        %1606 = vmatpush2.bf16.msra.mxu0 0
        %1607 = vmatprep.subr.bf16.mxu0 0
        %1608 = vmatpush2.bf16.msra.mxu0 0
        %1609 = vmatprep.subr.bf16.mxu0 0
        %1610 = vmatpush2.bf16.msra.mxu0 0
        %1611 = vmatprep.subr.bf16.mxu0 0
        %1612 = vmatpush2.bf16.msra.mxu0 0
        %1613 = vmatprep.subr.bf16.mxu0 0
        %1614 = vmatpush2.bf16.msra.mxu0 0
        %1615 = vmatprep.subr.bf16.mxu0 0
        %1616 = vmatpush2.bf16.msra.mxu0 0
        %1617 = vmatprep.subr.bf16.mxu0 0
        %1618 = vmatpush2.bf16.msra.mxu0 0
        %1619 = vmatprep.mubr.bf16.mxu0 0
        %1620 = vmatmul.mubr.bf16.gmra.mxu0 %v1503
        %v1621 = vpop.f32.mrf.mxu0
        %v1622 = vadd.f32 %v1281, %v1621
        %v1623 = vpop.f32.mrf.mxu0
        %v1624 = vadd.f32 %v1285, %v1623
        %v1625 = vpop.f32.mrf.mxu0
        %v1626 = vpop.f32.mrf.mxu0
        %1627 = vdwg.mxu0
        %1628 = vmatprep.subr.bf16.mxu0 0
        %1629 = vmatpush1.bf16.msra.mxu0 0
        %1630 = vmatprep.subr.bf16.mxu0 0
        %1631 = vmatpush1.bf16.msra.mxu0 0
        %1632 = vmatprep.subr.bf16.mxu0 0
        %1633 = vmatpush1.bf16.msra.mxu0 0
        %1634 = vmatprep.subr.bf16.mxu0 0
        %1635 = vmatpush1.bf16.msra.mxu0 0
        %1636 = vmatprep.subr.bf16.mxu0 0
        %1637 = vmatpush1.bf16.msra.mxu0 0
        %1638 = vmatprep.subr.bf16.mxu0 0
        %1639 = vmatpush1.bf16.msra.mxu0 0
        %1640 = vmatprep.subr.bf16.mxu0 %v1461
        %1641 = vmatpush1.bf16.msra.mxu0 %v1460
        %1642 = vmatprep.subr.bf16.mxu0 %v1445
        %1643 = vmatpush1.bf16.msra.mxu0 %v1444
        %1644 = vmatprep.subr.bf16.mxu0 0
        %1645 = vmatpush2.bf16.msra.mxu0 0
        %1646 = vmatprep.subr.bf16.mxu0 0
        %1647 = vmatpush2.bf16.msra.mxu0 0
        %1648 = vmatprep.subr.bf16.mxu0 0
        %1649 = vmatpush2.bf16.msra.mxu0 0
        %1650 = vmatprep.subr.bf16.mxu0 0
        %1651 = vmatpush2.bf16.msra.mxu0 0
        %1652 = vmatprep.subr.bf16.mxu0 0
        %1653 = vmatpush2.bf16.msra.mxu0 0
        %1654 = vmatprep.subr.bf16.mxu0 0
        %1655 = vmatpush2.bf16.msra.mxu0 0
        %1656 = vmatprep.subr.bf16.mxu0 0
        %1657 = vmatpush2.bf16.msra.mxu0 0
        %1658 = vmatprep.subr.bf16.mxu0 0
        %1659 = vmatpush2.bf16.msra.mxu0 0
        %1660 = vmatprep.mubr.bf16.mxu0 0
        %1661 = vmatmul.mubr.bf16.gmra.mxu0 %v1503
        %v1662 = vpop.f32.mrf.mxu0
        %v1663 = vadd.f32 %v1289, %v1662
        %v1664 = vpop.f32.mrf.mxu0
        %v1665 = vadd.f32 %v1293, %v1664
        %v1666 = vpop.f32.mrf.mxu0
        %v1667 = vpop.f32.mrf.mxu0
        %1668 = vdwg.mxu0
        %1669 = vmatprep.subr.bf16.mxu0 0
        %1670 = vmatpush1.bf16.msra.mxu0 0
        %1671 = vmatprep.subr.bf16.mxu0 0
        %1672 = vmatpush1.bf16.msra.mxu0 0
        %1673 = vmatprep.subr.bf16.mxu0 0
        %1674 = vmatpush1.bf16.msra.mxu0 0
        %1675 = vmatprep.subr.bf16.mxu0 0
        %1676 = vmatpush1.bf16.msra.mxu0 0
        %1677 = vmatprep.subr.bf16.mxu0 0
        %1678 = vmatpush1.bf16.msra.mxu0 0
        %1679 = vmatprep.subr.bf16.mxu0 0
        %1680 = vmatpush1.bf16.msra.mxu0 0
        %1681 = vmatprep.subr.bf16.mxu0 %v1463
        %1682 = vmatpush1.bf16.msra.mxu0 %v1462
        %1683 = vmatprep.subr.bf16.mxu0 %v1447
        %1684 = vmatpush1.bf16.msra.mxu0 %v1446
        %1685 = vmatprep.subr.bf16.mxu0 0
        %1686 = vmatpush2.bf16.msra.mxu0 0
        %1687 = vmatprep.subr.bf16.mxu0 0
        %1688 = vmatpush2.bf16.msra.mxu0 0
        %1689 = vmatprep.subr.bf16.mxu0 0
        %1690 = vmatpush2.bf16.msra.mxu0 0
        %1691 = vmatprep.subr.bf16.mxu0 0
        %1692 = vmatpush2.bf16.msra.mxu0 0
        %1693 = vmatprep.subr.bf16.mxu0 0
        %1694 = vmatpush2.bf16.msra.mxu0 0
        %1695 = vmatprep.subr.bf16.mxu0 0
        %1696 = vmatpush2.bf16.msra.mxu0 0
        %1697 = vmatprep.subr.bf16.mxu0 0
        %1698 = vmatpush2.bf16.msra.mxu0 0
        %1699 = vmatprep.subr.bf16.mxu0 0
        %1700 = vmatpush2.bf16.msra.mxu0 0
        %1701 = vmatprep.mubr.bf16.mxu0 0
        %1702 = vmatmul.mubr.bf16.gmra.mxu0 %v1503
        %v1703 = vpop.f32.mrf.mxu0
        %v1704 = vadd.f32 %v1297, %v1703
        %v1705 = vpop.f32.mrf.mxu0
        %v1706 = vadd.f32 %v1301, %v1705
        %v1707 = vpop.f32.mrf.mxu0
        %v1708 = vpop.f32.mrf.mxu0
        %1709 = vdwg.mxu0
        %1710 = vmatprep.subr.bf16.mxu0 0
        %1711 = vmatpush1.bf16.msra.mxu0 0
        %1712 = vmatprep.subr.bf16.mxu0 0
        %1713 = vmatpush1.bf16.msra.mxu0 0
        %1714 = vmatprep.subr.bf16.mxu0 0
        %1715 = vmatpush1.bf16.msra.mxu0 0
        %1716 = vmatprep.subr.bf16.mxu0 0
        %1717 = vmatpush1.bf16.msra.mxu0 0
        %1718 = vmatprep.subr.bf16.mxu0 0
        %1719 = vmatpush1.bf16.msra.mxu0 0
        %1720 = vmatprep.subr.bf16.mxu0 0
        %1721 = vmatpush1.bf16.msra.mxu0 0
        %1722 = vmatprep.subr.bf16.mxu0 %v1465
        %1723 = vmatpush1.bf16.msra.mxu0 %v1464
        %1724 = vmatprep.subr.bf16.mxu0 %v1449
        %1725 = vmatpush1.bf16.msra.mxu0 %v1448
        %1726 = vmatprep.subr.bf16.mxu0 0
        %1727 = vmatpush2.bf16.msra.mxu0 0
        %1728 = vmatprep.subr.bf16.mxu0 0
        %1729 = vmatpush2.bf16.msra.mxu0 0
        %1730 = vmatprep.subr.bf16.mxu0 0
        %1731 = vmatpush2.bf16.msra.mxu0 0
        %1732 = vmatprep.subr.bf16.mxu0 0
        %1733 = vmatpush2.bf16.msra.mxu0 0
        %1734 = vmatprep.subr.bf16.mxu0 0
        %1735 = vmatpush2.bf16.msra.mxu0 0
        %1736 = vmatprep.subr.bf16.mxu0 0
        %1737 = vmatpush2.bf16.msra.mxu0 0
        %1738 = vmatprep.subr.bf16.mxu0 0
        %1739 = vmatpush2.bf16.msra.mxu0 0
        %1740 = vmatprep.subr.bf16.mxu0 0
        %1741 = vmatpush2.bf16.msra.mxu0 0
        %1742 = vmatprep.mubr.bf16.mxu0 0
        %1743 = vmatmul.mubr.bf16.gmra.mxu0 %v1503
        %v1744 = vpop.f32.mrf.mxu0
        %v1745 = vadd.f32 %v1305, %v1744
        %v1746 = vpop.f32.mrf.mxu0
        %v1747 = vadd.f32 %v1309, %v1746
        %v1748 = vpop.f32.mrf.mxu0
        %v1749 = vpop.f32.mrf.mxu0
        %1750 = vdwg.mxu0
        %1751 = vmatprep.subr.bf16.mxu0 0
        %1752 = vmatpush1.bf16.msra.mxu0 0
        %1753 = vmatprep.subr.bf16.mxu0 0
        %1754 = vmatpush1.bf16.msra.mxu0 0
        %1755 = vmatprep.subr.bf16.mxu0 0
        %1756 = vmatpush1.bf16.msra.mxu0 0
        %1757 = vmatprep.subr.bf16.mxu0 0
        %1758 = vmatpush1.bf16.msra.mxu0 0
        %1759 = vmatprep.subr.bf16.mxu0 0
        %1760 = vmatpush1.bf16.msra.mxu0 0
        %1761 = vmatprep.subr.bf16.mxu0 0
        %1762 = vmatpush1.bf16.msra.mxu0 0
        %1763 = vmatprep.subr.bf16.mxu0 %v1467
        %1764 = vmatpush1.bf16.msra.mxu0 %v1466
        %1765 = vmatprep.subr.bf16.mxu0 %v1451
        %1766 = vmatpush1.bf16.msra.mxu0 %v1450
        %1767 = vmatprep.subr.bf16.mxu0 0
        %1768 = vmatpush2.bf16.msra.mxu0 0
        %1769 = vmatprep.subr.bf16.mxu0 0
        %1770 = vmatpush2.bf16.msra.mxu0 0
        %1771 = vmatprep.subr.bf16.mxu0 0
        %1772 = vmatpush2.bf16.msra.mxu0 0
        %1773 = vmatprep.subr.bf16.mxu0 0
        %1774 = vmatpush2.bf16.msra.mxu0 0
        %1775 = vmatprep.subr.bf16.mxu0 0
        %1776 = vmatpush2.bf16.msra.mxu0 0
        %1777 = vmatprep.subr.bf16.mxu0 0
        %1778 = vmatpush2.bf16.msra.mxu0 0
        %1779 = vmatprep.subr.bf16.mxu0 0
        %1780 = vmatpush2.bf16.msra.mxu0 0
        %1781 = vmatprep.subr.bf16.mxu0 0
        %1782 = vmatpush2.bf16.msra.mxu0 0
        %1783 = vmatprep.mubr.bf16.mxu0 0
        %1784 = vmatmul.mubr.bf16.gmra.mxu0 %v1503
        %v1785 = vpop.f32.mrf.mxu0
        %v1786 = vadd.f32 %v1313, %v1785
        %v1787 = vpop.f32.mrf.mxu0
        %v1788 = vadd.f32 %v1317, %v1787
        %v1789 = vpop.f32.mrf.mxu0
        %v1790 = vpop.f32.mrf.mxu0
        %1791 = vdwg.mxu0
        %1792 = vmatprep.subr.bf16.mxu0 0
        %1793 = vmatpush1.bf16.msra.mxu0 0
        %1794 = vmatprep.subr.bf16.mxu0 0
        %1795 = vmatpush1.bf16.msra.mxu0 0
        %1796 = vmatprep.subr.bf16.mxu0 0
        %1797 = vmatpush1.bf16.msra.mxu0 0
        %1798 = vmatprep.subr.bf16.mxu0 0
        %1799 = vmatpush1.bf16.msra.mxu0 0
        %1800 = vmatprep.subr.bf16.mxu0 0
        %1801 = vmatpush1.bf16.msra.mxu0 0
        %1802 = vmatprep.subr.bf16.mxu0 0
        %1803 = vmatpush1.bf16.msra.mxu0 0
        %1804 = vmatprep.subr.bf16.mxu0 %v1469
        %1805 = vmatpush1.bf16.msra.mxu0 %v1468
        %1806 = vmatprep.subr.bf16.mxu0 %v1453
        %1807 = vmatpush1.bf16.msra.mxu0 %v1452
        %1808 = vmatprep.subr.bf16.mxu0 0
        %1809 = vmatpush2.bf16.msra.mxu0 0
        %1810 = vmatprep.subr.bf16.mxu0 0
        %1811 = vmatpush2.bf16.msra.mxu0 0
        %1812 = vmatprep.subr.bf16.mxu0 0
        %1813 = vmatpush2.bf16.msra.mxu0 0
        %1814 = vmatprep.subr.bf16.mxu0 0
        %1815 = vmatpush2.bf16.msra.mxu0 0
        %1816 = vmatprep.subr.bf16.mxu0 0
        %1817 = vmatpush2.bf16.msra.mxu0 0
        %1818 = vmatprep.subr.bf16.mxu0 0
        %1819 = vmatpush2.bf16.msra.mxu0 0
        %1820 = vmatprep.subr.bf16.mxu0 0
        %1821 = vmatpush2.bf16.msra.mxu0 0
        %1822 = vmatprep.subr.bf16.mxu0 0
        %1823 = vmatpush2.bf16.msra.mxu0 0
        %1824 = vmatprep.mubr.bf16.mxu0 0
        %1825 = vmatmul.mubr.bf16.gmra.mxu0 %v1503
        %v1826 = vpop.f32.mrf.mxu0
        %v1827 = vadd.f32 %v1321, %v1826
        %v1828 = vpop.f32.mrf.mxu0
        %v1829 = vadd.f32 %v1325, %v1828
        %v1830 = vpop.f32.mrf.mxu0
        %v1831 = vpop.f32.mrf.mxu0
        %1832 = vdwg.mxu0
        %v1833 = vmax.f32 %v1540, 0.0
        %v1834 = vmax.f32 %v1542, 0.0
        %v1835 = vmax.f32 %v1581, 0.0
        %v1836 = vmax.f32 %v1583, 0.0
        %v1837 = vmax.f32 %v1622, 0.0
        %v1838 = vmax.f32 %v1624, 0.0
        %v1839 = vmax.f32 %v1663, 0.0
        %v1840 = vmax.f32 %v1665, 0.0
        %v1841 = vmax.f32 %v1704, 0.0
        %v1842 = vmax.f32 %v1706, 0.0
        %v1843 = vmax.f32 %v1745, 0.0
        %v1844 = vmax.f32 %v1747, 0.0
        %v1845 = vmax.f32 %v1786, 0.0
        %v1846 = vmax.f32 %v1788, 0.0
        %v1847 = vmax.f32 %v1827, 0.0
        %v1848 = vmax.f32 %v1829, 0.0
        %v1849 = vpack.c.bf16 %v1833, %v1833
        %v1850 = vpack.c.bf16 %v1834, %v1834
        %v1851 = vpack.c.bf16 %v1835, %v1835
        %v1852 = vpack.c.bf16 %v1836, %v1836
        %v1853 = vpack.c.bf16 %v1837, %v1837
        %v1854 = vpack.c.bf16 %v1838, %v1838
        %v1855 = vpack.c.bf16 %v1839, %v1839
        %v1856 = vpack.c.bf16 %v1840, %v1840
        %v1857 = vpack.c.bf16 %v1841, %v1841
        %v1858 = vpack.c.bf16 %v1842, %v1842
        %v1859 = vpack.c.bf16 %v1843, %v1843
        %v1860 = vpack.c.bf16 %v1844, %v1844
        %v1861 = vpack.c.bf16 %v1845, %v1845
        %v1862 = vpack.c.bf16 %v1846, %v1846
        %v1863 = vpack.c.bf16 %v1847, %v1847
        %v1864 = vpack.c.bf16 %v1848, %v1848
        %v1865 = vld [vmem:[%s741] sm:$0xf]
        %v1866 = vld [vmem:[%s741 + $0x4] sm:$0xf]
        %v1867 = vld [vmem:[%s741 + $0x8] sm:$0xf]
        %v1868 = vld [vmem:[%s741 + $0xc] sm:$0xf]
        %v1869 = vld [vmem:[%s741 + $0x10] sm:$0xf]
        %v1870 = vld [vmem:[%s741 + $0x14] sm:$0xf]
        %v1871 = vld [vmem:[%s741 + $0x18] sm:$0xf]
        %v1872 = vld [vmem:[%s741 + $0x1c] sm:$0xf]
        %v1873 = vld [vmem:[%s741 + $0x20] sm:$0xf]
        %v1874 = vld [vmem:[%s741 + $0x24] sm:$0xf]
        %v1875 = vld [vmem:[%s741 + $0x28] sm:$0xf]
        %v1876 = vld [vmem:[%s741 + $0x2c] sm:$0xf]
        %v1877 = vld [vmem:[%s741 + $0x30] sm:$0xf]
        %v1878 = vld [vmem:[%s741 + $0x34] sm:$0xf]
        %v1879 = vld [vmem:[%s741 + $0x38] sm:$0xf]
        %v1880 = vld [vmem:[%s741 + $0x3c] sm:$0xf]
        %v1881 = vld [vmem:[%s741 + $0x40] sm:$0xf]
        %v1882 = vld [vmem:[%s741 + $0x44] sm:$0xf]
        %v1883 = vld [vmem:[%s741 + $0x48] sm:$0xf]
        %v1884 = vld [vmem:[%s741 + $0x4c] sm:$0xf]
        %v1885 = vld [vmem:[%s741 + $0x50] sm:$0xf]
        %v1886 = vld [vmem:[%s741 + $0x54] sm:$0xf]
        %v1887 = vld [vmem:[%s741 + $0x58] sm:$0xf]
        %v1888 = vld [vmem:[%s741 + $0x5c] sm:$0xf]
        %v1889 = vld [vmem:[%s741 + $0x60] sm:$0xf]
        %v1890 = vld [vmem:[%s741 + $0x64] sm:$0xf]
        %v1891 = vld [vmem:[%s741 + $0x68] sm:$0xf]
        %v1892 = vld [vmem:[%s741 + $0x6c] sm:$0xf]
        %v1893 = vld [vmem:[%s741 + $0x70] sm:$0xf]
        %v1894 = vld [vmem:[%s741 + $0x74] sm:$0xf]
        %v1895 = vld [vmem:[%s741 + $0x78] sm:$0xf]
        %v1896 = vld [vmem:[%s741 + $0x7c] sm:$0xf]
        %v1897 = vld [vmem:[%s741 + $0x80] sm:$0xf]
        %v1898 = vld [vmem:[%s741 + $0x84] sm:$0xf]
        %v1899 = vld [vmem:[%s741 + $0x88] sm:$0xf]
        %v1900 = vld [vmem:[%s741 + $0x8c] sm:$0xf]
        %v1901 = vld [vmem:[%s741 + $0x90] sm:$0xf]
        %v1902 = vld [vmem:[%s741 + $0x94] sm:$0xf]
        %v1903 = vld [vmem:[%s741 + $0x98] sm:$0xf]
        %v1904 = vld [vmem:[%s741 + $0x9c] sm:$0xf]
        %v1905 = vld [vmem:[%s741 + $0xa0] sm:$0xf]
        %v1906 = vld [vmem:[%s741 + $0xa4] sm:$0xf]
        %v1907 = vld [vmem:[%s741 + $0xa8] sm:$0xf]
        %v1908 = vld [vmem:[%s741 + $0xac] sm:$0xf]
        %v1909 = vld [vmem:[%s741 + $0xb0] sm:$0xf]
        %v1910 = vld [vmem:[%s741 + $0xb4] sm:$0xf]
        %v1911 = vld [vmem:[%s741 + $0xb8] sm:$0xf]
        %v1912 = vld [vmem:[%s741 + $0xbc] sm:$0xf]
        %v1913 = vld [vmem:[%s741 + $0xc0] sm:$0xf]
        %v1914 = vld [vmem:[%s741 + $0xc4] sm:$0xf]
        %v1915 = vld [vmem:[%s741 + $0xc8] sm:$0xf]
        %v1916 = vld [vmem:[%s741 + $0xcc] sm:$0xf]
        %v1917 = vld [vmem:[%s741 + $0xd0] sm:$0xf]
        %v1918 = vld [vmem:[%s741 + $0xd4] sm:$0xf]
        %v1919 = vld [vmem:[%s741 + $0xd8] sm:$0xf]
        %v1920 = vld [vmem:[%s741 + $0xdc] sm:$0xf]
        %v1921 = vld [vmem:[%s741 + $0xe0] sm:$0xf]
        %v1922 = vld [vmem:[%s741 + $0xe4] sm:$0xf]
        %v1923 = vld [vmem:[%s741 + $0xe8] sm:$0xf]
        %v1924 = vld [vmem:[%s741 + $0xec] sm:$0xf]
        %v1925 = vld [vmem:[%s741 + $0xf0] sm:$0xf]
        %v1926 = vld [vmem:[%s741 + $0xf4] sm:$0xf]
        %v1927 = vld [vmem:[%s741 + $0xf8] sm:$0xf]
        %v1928 = vld [vmem:[%s741 + $0xfc] sm:$0xf]
        %v1929 = vld [vmem:[%s741 + $0x100] sm:$0xf]
        %v1930 = vld [vmem:[%s741 + $0x104] sm:$0xf]
        %v1931 = vld [vmem:[%s741 + $0x108] sm:$0xf]
        %v1932 = vld [vmem:[%s741 + $0x10c] sm:$0xf]
        %v1933 = vld [vmem:[%s741 + $0x110] sm:$0xf]
        %v1934 = vld [vmem:[%s741 + $0x114] sm:$0xf]
        %v1935 = vld [vmem:[%s741 + $0x118] sm:$0xf]
        %v1936 = vld [vmem:[%s741 + $0x11c] sm:$0xf]
        %v1937 = vld [vmem:[%s741 + $0x120] sm:$0xf]
        %v1938 = vld [vmem:[%s741 + $0x124] sm:$0xf]
        %v1939 = vld [vmem:[%s741 + $0x128] sm:$0xf]
        %v1940 = vld [vmem:[%s741 + $0x12c] sm:$0xf]
        %v1941 = vld [vmem:[%s741 + $0x130] sm:$0xf]
        %v1942 = vld [vmem:[%s741 + $0x134] sm:$0xf]
        %v1943 = vld [vmem:[%s741 + $0x138] sm:$0xf]
        %v1944 = vld [vmem:[%s741 + $0x13c] sm:$0xf]
        %v1945 = vld [vmem:[%s741 + $0x140] sm:$0xf]
        %v1946 = vld [vmem:[%s741 + $0x144] sm:$0xf]
        %v1947 = vld [vmem:[%s741 + $0x148] sm:$0xf]
        %v1948 = vld [vmem:[%s741 + $0x14c] sm:$0xf]
        %v1949 = vld [vmem:[%s741 + $0x150] sm:$0xf]
        %v1950 = vld [vmem:[%s741 + $0x154] sm:$0xf]
        %v1951 = vld [vmem:[%s741 + $0x158] sm:$0xf]
        %v1952 = vld [vmem:[%s741 + $0x15c] sm:$0xf]
        %v1953 = vld [vmem:[%s741 + $0x160] sm:$0xf]
        %v1954 = vld [vmem:[%s741 + $0x164] sm:$0xf]
        %v1955 = vld [vmem:[%s741 + $0x168] sm:$0xf]
        %v1956 = vld [vmem:[%s741 + $0x16c] sm:$0xf]
        %v1957 = vld [vmem:[%s741 + $0x170] sm:$0xf]
        %v1958 = vld [vmem:[%s741 + $0x174] sm:$0xf]
        %v1959 = vld [vmem:[%s741 + $0x178] sm:$0xf]
        %v1960 = vld [vmem:[%s741 + $0x17c] sm:$0xf]
        %v1961 = vld [vmem:[%s741 + $0x180] sm:$0xf]
        %v1962 = vld [vmem:[%s741 + $0x184] sm:$0xf]
        %v1963 = vld [vmem:[%s741 + $0x188] sm:$0xf]
        %v1964 = vld [vmem:[%s741 + $0x18c] sm:$0xf]
        %v1965 = vld [vmem:[%s741 + $0x190] sm:$0xf]
        %v1966 = vld [vmem:[%s741 + $0x194] sm:$0xf]
        %v1967 = vld [vmem:[%s741 + $0x198] sm:$0xf]
        %v1968 = vld [vmem:[%s741 + $0x19c] sm:$0xf]
        %v1969 = vld [vmem:[%s741 + $0x1a0] sm:$0xf]
        %v1970 = vld [vmem:[%s741 + $0x1a4] sm:$0xf]
        %v1971 = vld [vmem:[%s741 + $0x1a8] sm:$0xf]
        %v1972 = vld [vmem:[%s741 + $0x1ac] sm:$0xf]
        %v1973 = vld [vmem:[%s741 + $0x1b0] sm:$0xf]
        %v1974 = vld [vmem:[%s741 + $0x1b4] sm:$0xf]
        %v1975 = vld [vmem:[%s741 + $0x1b8] sm:$0xf]
        %v1976 = vld [vmem:[%s741 + $0x1bc] sm:$0xf]
        %v1977 = vld [vmem:[%s741 + $0x1c0] sm:$0xf]
        %v1978 = vld [vmem:[%s741 + $0x1c4] sm:$0xf]
        %v1979 = vld [vmem:[%s741 + $0x1c8] sm:$0xf]
        %v1980 = vld [vmem:[%s741 + $0x1cc] sm:$0xf]
        %v1981 = vld [vmem:[%s741 + $0x1d0] sm:$0xf]
        %v1982 = vld [vmem:[%s741 + $0x1d4] sm:$0xf]
        %v1983 = vld [vmem:[%s741 + $0x1d8] sm:$0xf]
        %v1984 = vld [vmem:[%s741 + $0x1dc] sm:$0xf]
        %v1985 = vld [vmem:[%s741 + $0x1e0] sm:$0xf]
        %v1986 = vld [vmem:[%s741 + $0x1e4] sm:$0xf]
        %v1987 = vld [vmem:[%s741 + $0x1e8] sm:$0xf]
        %v1988 = vld [vmem:[%s741 + $0x1ec] sm:$0xf]
        %v1989 = vld [vmem:[%s741 + $0x1f0] sm:$0xf]
        %v1990 = vld [vmem:[%s741 + $0x1f4] sm:$0xf]
        %v1991 = vld [vmem:[%s741 + $0x1f8] sm:$0xf]
        %v1992 = vld [vmem:[%s741 + $0x1fc] sm:$0xf]
        %v1993 = vld [vmem:[%s741 + $0x200] sm:$0xf]
        %v1994 = vld [vmem:[%s741 + $0x204] sm:$0xf]
        %v1995 = vld [vmem:[%s741 + $0x208] sm:$0xf]
        %v1996 = vld [vmem:[%s741 + $0x20c] sm:$0xf]
        %v1997 = vld [vmem:[%s741 + $0x210] sm:$0xf]
        %v1998 = vld [vmem:[%s741 + $0x214] sm:$0xf]
        %v1999 = vld [vmem:[%s741 + $0x218] sm:$0xf]
        %v2000 = vld [vmem:[%s741 + $0x21c] sm:$0xf]
        %v2001 = vld [vmem:[%s741 + $0x220] sm:$0xf]
        %v2002 = vld [vmem:[%s741 + $0x224] sm:$0xf]
        %v2003 = vld [vmem:[%s741 + $0x228] sm:$0xf]
        %v2004 = vld [vmem:[%s741 + $0x22c] sm:$0xf]
        %v2005 = vld [vmem:[%s741 + $0x230] sm:$0xf]
        %v2006 = vld [vmem:[%s741 + $0x234] sm:$0xf]
        %v2007 = vld [vmem:[%s741 + $0x238] sm:$0xf]
        %v2008 = vld [vmem:[%s741 + $0x23c] sm:$0xf]
        %v2009 = vld [vmem:[%s741 + $0x240] sm:$0xf]
        %v2010 = vld [vmem:[%s741 + $0x244] sm:$0xf]
        %v2011 = vld [vmem:[%s741 + $0x248] sm:$0xf]
        %v2012 = vld [vmem:[%s741 + $0x24c] sm:$0xf]
        %v2013 = vld [vmem:[%s741 + $0x250] sm:$0xf]
        %v2014 = vld [vmem:[%s741 + $0x254] sm:$0xf]
        %v2015 = vld [vmem:[%s741 + $0x258] sm:$0xf]
        %v2016 = vld [vmem:[%s741 + $0x25c] sm:$0xf]
        %v2017 = vld [vmem:[%s741 + $0x260] sm:$0xf]
        %v2018 = vld [vmem:[%s741 + $0x264] sm:$0xf]
        %v2019 = vld [vmem:[%s741 + $0x268] sm:$0xf]
        %v2020 = vld [vmem:[%s741 + $0x26c] sm:$0xf]
        %v2021 = vld [vmem:[%s741 + $0x270] sm:$0xf]
        %v2022 = vld [vmem:[%s741 + $0x274] sm:$0xf]
        %v2023 = vld [vmem:[%s741 + $0x278] sm:$0xf]
        %v2024 = vld [vmem:[%s741 + $0x27c] sm:$0xf]
        %v2025 = vld [vmem:[%s741 + $0x280] sm:$0xf]
        %v2026 = vld [vmem:[%s741 + $0x284] sm:$0xf]
        %v2027 = vld [vmem:[%s741 + $0x288] sm:$0xf]
        %v2028 = vld [vmem:[%s741 + $0x28c] sm:$0xf]
        %v2029 = vld [vmem:[%s741 + $0x290] sm:$0xf]
        %v2030 = vld [vmem:[%s741 + $0x294] sm:$0xf]
        %v2031 = vld [vmem:[%s741 + $0x298] sm:$0xf]
        %v2032 = vld [vmem:[%s741 + $0x29c] sm:$0xf]
        %v2033 = vld [vmem:[%s741 + $0x2a0] sm:$0xf]
        %v2034 = vld [vmem:[%s741 + $0x2a4] sm:$0xf]
        %v2035 = vld [vmem:[%s741 + $0x2a8] sm:$0xf]
        %v2036 = vld [vmem:[%s741 + $0x2ac] sm:$0xf]
        %v2037 = vld [vmem:[%s741 + $0x2b0] sm:$0xf]
        %v2038 = vld [vmem:[%s741 + $0x2b4] sm:$0xf]
        %v2039 = vld [vmem:[%s741 + $0x2b8] sm:$0xf]
        %v2040 = vld [vmem:[%s741 + $0x2bc] sm:$0xf]
        %v2041 = vld [vmem:[%s741 + $0x2c0] sm:$0xf]
        %v2042 = vld [vmem:[%s741 + $0x2c4] sm:$0xf]
        %v2043 = vld [vmem:[%s741 + $0x2c8] sm:$0xf]
        %v2044 = vld [vmem:[%s741 + $0x2cc] sm:$0xf]
        %v2045 = vld [vmem:[%s741 + $0x2d0] sm:$0xf]
        %v2046 = vld [vmem:[%s741 + $0x2d4] sm:$0xf]
        %v2047 = vld [vmem:[%s741 + $0x2d8] sm:$0xf]
        %v2048 = vld [vmem:[%s741 + $0x2dc] sm:$0xf]
        %v2049 = vld [vmem:[%s741 + $0x2e0] sm:$0xf]
        %v2050 = vld [vmem:[%s741 + $0x2e4] sm:$0xf]
        %v2051 = vld [vmem:[%s741 + $0x2e8] sm:$0xf]
        %v2052 = vld [vmem:[%s741 + $0x2ec] sm:$0xf]
        %v2053 = vld [vmem:[%s741 + $0x2f0] sm:$0xf]
        %v2054 = vld [vmem:[%s741 + $0x2f4] sm:$0xf]
        %v2055 = vld [vmem:[%s741 + $0x2f8] sm:$0xf]
        %v2056 = vld [vmem:[%s741 + $0x2fc] sm:$0xf]
        %v2057 = vld [vmem:[%s741 + $0x300] sm:$0xf]
        %v2058 = vld [vmem:[%s741 + $0x304] sm:$0xf]
        %v2059 = vld [vmem:[%s741 + $0x308] sm:$0xf]
        %v2060 = vld [vmem:[%s741 + $0x30c] sm:$0xf]
        %v2061 = vld [vmem:[%s741 + $0x310] sm:$0xf]
        %v2062 = vld [vmem:[%s741 + $0x314] sm:$0xf]
        %v2063 = vld [vmem:[%s741 + $0x318] sm:$0xf]
        %v2064 = vld [vmem:[%s741 + $0x31c] sm:$0xf]
        %v2065 = vld [vmem:[%s741 + $0x320] sm:$0xf]
        %v2066 = vld [vmem:[%s741 + $0x324] sm:$0xf]
        %v2067 = vld [vmem:[%s741 + $0x328] sm:$0xf]
        %v2068 = vld [vmem:[%s741 + $0x32c] sm:$0xf]
        %v2069 = vld [vmem:[%s741 + $0x330] sm:$0xf]
        %v2070 = vld [vmem:[%s741 + $0x334] sm:$0xf]
        %v2071 = vld [vmem:[%s741 + $0x338] sm:$0xf]
        %v2072 = vld [vmem:[%s741 + $0x33c] sm:$0xf]
        %v2073 = vld [vmem:[%s741 + $0x340] sm:$0xf]
        %v2074 = vld [vmem:[%s741 + $0x344] sm:$0xf]
        %v2075 = vld [vmem:[%s741 + $0x348] sm:$0xf]
        %v2076 = vld [vmem:[%s741 + $0x34c] sm:$0xf]
        %v2077 = vld [vmem:[%s741 + $0x350] sm:$0xf]
        %v2078 = vld [vmem:[%s741 + $0x354] sm:$0xf]
        %v2079 = vld [vmem:[%s741 + $0x358] sm:$0xf]
        %v2080 = vld [vmem:[%s741 + $0x35c] sm:$0xf]
        %v2081 = vld [vmem:[%s741 + $0x360] sm:$0xf]
        %v2082 = vld [vmem:[%s741 + $0x364] sm:$0xf]
        %v2083 = vld [vmem:[%s741 + $0x368] sm:$0xf]
        %v2084 = vld [vmem:[%s741 + $0x36c] sm:$0xf]
        %v2085 = vld [vmem:[%s741 + $0x370] sm:$0xf]
        %v2086 = vld [vmem:[%s741 + $0x374] sm:$0xf]
        %v2087 = vld [vmem:[%s741 + $0x378] sm:$0xf]
        %v2088 = vld [vmem:[%s741 + $0x37c] sm:$0xf]
        %v2089 = vld [vmem:[%s741 + $0x380] sm:$0xf]
        %v2090 = vld [vmem:[%s741 + $0x384] sm:$0xf]
        %v2091 = vld [vmem:[%s741 + $0x388] sm:$0xf]
        %v2092 = vld [vmem:[%s741 + $0x38c] sm:$0xf]
        %v2093 = vld [vmem:[%s741 + $0x390] sm:$0xf]
        %v2094 = vld [vmem:[%s741 + $0x394] sm:$0xf]
        %v2095 = vld [vmem:[%s741 + $0x398] sm:$0xf]
        %v2096 = vld [vmem:[%s741 + $0x39c] sm:$0xf]
        %v2097 = vld [vmem:[%s741 + $0x3a0] sm:$0xf]
        %v2098 = vld [vmem:[%s741 + $0x3a4] sm:$0xf]
        %v2099 = vld [vmem:[%s741 + $0x3a8] sm:$0xf]
        %v2100 = vld [vmem:[%s741 + $0x3ac] sm:$0xf]
        %v2101 = vld [vmem:[%s741 + $0x3b0] sm:$0xf]
        %v2102 = vld [vmem:[%s741 + $0x3b4] sm:$0xf]
        %v2103 = vld [vmem:[%s741 + $0x3b8] sm:$0xf]
        %v2104 = vld [vmem:[%s741 + $0x3bc] sm:$0xf]
        %v2105 = vld [vmem:[%s741 + $0x3c0] sm:$0xf]
        %v2106 = vld [vmem:[%s741 + $0x3c4] sm:$0xf]
        %v2107 = vld [vmem:[%s741 + $0x3c8] sm:$0xf]
        %v2108 = vld [vmem:[%s741 + $0x3cc] sm:$0xf]
        %v2109 = vld [vmem:[%s741 + $0x3d0] sm:$0xf]
        %v2110 = vld [vmem:[%s741 + $0x3d4] sm:$0xf]
        %v2111 = vld [vmem:[%s741 + $0x3d8] sm:$0xf]
        %v2112 = vld [vmem:[%s741 + $0x3dc] sm:$0xf]
        %v2113 = vld [vmem:[%s741 + $0x3e0] sm:$0xf]
        %v2114 = vld [vmem:[%s741 + $0x3e4] sm:$0xf]
        %v2115 = vld [vmem:[%s741 + $0x3e8] sm:$0xf]
        %v2116 = vld [vmem:[%s741 + $0x3ec] sm:$0xf]
        %v2117 = vld [vmem:[%s741 + $0x3f0] sm:$0xf]
        %v2118 = vld [vmem:[%s741 + $0x3f4] sm:$0xf]
        %v2119 = vld [vmem:[%s741 + $0x3f8] sm:$0xf]
        %v2120 = vld [vmem:[%s741 + $0x3fc] sm:$0xf]
        %v2121 = vld [vmem:[%s744] sm:$0x1]
        %v2123 = vlaneseq
        %v2124 = vshrl.u32 %v2123, 7
        %v2125 = vsub.s32 0, %v2124
        %v2126 = vrot.slane %v2121, %v2125
        %v2384 = vunpack.c.l.b16 %v1865
        %v2385 = vunpack.c.l.b16 %v1866
        %v2386 = vunpack.c.l.b16 %v1867
        %v2387 = vunpack.c.l.b16 %v1868
        %v2388 = vunpack.c.l.b16 %v1869
        %v2389 = vunpack.c.l.b16 %v1870
        %v2390 = vunpack.c.l.b16 %v1871
        %v2391 = vunpack.c.l.b16 %v1872
        %v2392 = vunpack.c.l.b16 %v1873
        %v2393 = vunpack.c.l.b16 %v1874
        %v2394 = vunpack.c.l.b16 %v1875
        %v2395 = vunpack.c.l.b16 %v1876
        %v2396 = vunpack.c.l.b16 %v1877
        %v2397 = vunpack.c.l.b16 %v1878
        %v2398 = vunpack.c.l.b16 %v1879
        %v2399 = vunpack.c.l.b16 %v1880
        %v2400 = vunpack.c.l.b16 %v1881
        %v2401 = vunpack.c.l.b16 %v1882
        %v2402 = vunpack.c.l.b16 %v1883
        %v2403 = vunpack.c.l.b16 %v1884
        %v2404 = vunpack.c.l.b16 %v1885
        %v2405 = vunpack.c.l.b16 %v1886
        %v2406 = vunpack.c.l.b16 %v1887
        %v2407 = vunpack.c.l.b16 %v1888
        %v2408 = vunpack.c.l.b16 %v1889
        %v2409 = vunpack.c.l.b16 %v1890
        %v2410 = vunpack.c.l.b16 %v1891
        %v2411 = vunpack.c.l.b16 %v1892
        %v2412 = vunpack.c.l.b16 %v1893
        %v2413 = vunpack.c.l.b16 %v1894
        %v2414 = vunpack.c.l.b16 %v1895
        %v2415 = vunpack.c.l.b16 %v1896
        %v2416 = vunpack.c.l.b16 %v1897
        %v2417 = vunpack.c.l.b16 %v1898
        %v2418 = vunpack.c.l.b16 %v1899
        %v2419 = vunpack.c.l.b16 %v1900
        %v2420 = vunpack.c.l.b16 %v1901
        %v2421 = vunpack.c.l.b16 %v1902
        %v2422 = vunpack.c.l.b16 %v1903
        %v2423 = vunpack.c.l.b16 %v1904
        %v2424 = vunpack.c.l.b16 %v1905
        %v2425 = vunpack.c.l.b16 %v1906
        %v2426 = vunpack.c.l.b16 %v1907
        %v2427 = vunpack.c.l.b16 %v1908
        %v2428 = vunpack.c.l.b16 %v1909
        %v2429 = vunpack.c.l.b16 %v1910
        %v2430 = vunpack.c.l.b16 %v1911
        %v2431 = vunpack.c.l.b16 %v1912
        %v2432 = vunpack.c.l.b16 %v1913
        %v2433 = vunpack.c.l.b16 %v1914
        %v2434 = vunpack.c.l.b16 %v1915
        %v2435 = vunpack.c.l.b16 %v1916
        %v2436 = vunpack.c.l.b16 %v1917
        %v2437 = vunpack.c.l.b16 %v1918
        %v2438 = vunpack.c.l.b16 %v1919
        %v2439 = vunpack.c.l.b16 %v1920
        %v2440 = vunpack.c.l.b16 %v1921
        %v2441 = vunpack.c.l.b16 %v1922
        %v2442 = vunpack.c.l.b16 %v1923
        %v2443 = vunpack.c.l.b16 %v1924
        %v2444 = vunpack.c.l.b16 %v1925
        %v2445 = vunpack.c.l.b16 %v1926
        %v2446 = vunpack.c.l.b16 %v1927
        %v2447 = vunpack.c.l.b16 %v1928
        %v2448 = vunpack.c.l.b16 %v1929
        %v2449 = vunpack.c.l.b16 %v1930
        %v2450 = vunpack.c.l.b16 %v1931
        %v2451 = vunpack.c.l.b16 %v1932
        %v2452 = vunpack.c.l.b16 %v1933
        %v2453 = vunpack.c.l.b16 %v1934
        %v2454 = vunpack.c.l.b16 %v1935
        %v2455 = vunpack.c.l.b16 %v1936
        %v2456 = vunpack.c.l.b16 %v1937
        %v2457 = vunpack.c.l.b16 %v1938
        %v2458 = vunpack.c.l.b16 %v1939
        %v2459 = vunpack.c.l.b16 %v1940
        %v2460 = vunpack.c.l.b16 %v1941
        %v2461 = vunpack.c.l.b16 %v1942
        %v2462 = vunpack.c.l.b16 %v1943
        %v2463 = vunpack.c.l.b16 %v1944
        %v2464 = vunpack.c.l.b16 %v1945
        %v2465 = vunpack.c.l.b16 %v1946
        %v2466 = vunpack.c.l.b16 %v1947
        %v2467 = vunpack.c.l.b16 %v1948
        %v2468 = vunpack.c.l.b16 %v1949
        %v2469 = vunpack.c.l.b16 %v1950
        %v2470 = vunpack.c.l.b16 %v1951
        %v2471 = vunpack.c.l.b16 %v1952
        %v2472 = vunpack.c.l.b16 %v1953
        %v2473 = vunpack.c.l.b16 %v1954
        %v2474 = vunpack.c.l.b16 %v1955
        %v2475 = vunpack.c.l.b16 %v1956
        %v2476 = vunpack.c.l.b16 %v1957
        %v2477 = vunpack.c.l.b16 %v1958
        %v2478 = vunpack.c.l.b16 %v1959
        %v2479 = vunpack.c.l.b16 %v1960
        %v2480 = vunpack.c.l.b16 %v1961
        %v2481 = vunpack.c.l.b16 %v1962
        %v2482 = vunpack.c.l.b16 %v1963
        %v2483 = vunpack.c.l.b16 %v1964
        %v2484 = vunpack.c.l.b16 %v1965
        %v2485 = vunpack.c.l.b16 %v1966
        %v2486 = vunpack.c.l.b16 %v1967
        %v2487 = vunpack.c.l.b16 %v1968
        %v2488 = vunpack.c.l.b16 %v1969
        %v2489 = vunpack.c.l.b16 %v1970
        %v2490 = vunpack.c.l.b16 %v1971
        %v2491 = vunpack.c.l.b16 %v1972
        %v2492 = vunpack.c.l.b16 %v1973
        %v2493 = vunpack.c.l.b16 %v1974
        %v2494 = vunpack.c.l.b16 %v1975
        %v2495 = vunpack.c.l.b16 %v1976
        %v2496 = vunpack.c.l.b16 %v1977
        %v2497 = vunpack.c.l.b16 %v1978
        %v2498 = vunpack.c.l.b16 %v1979
        %v2499 = vunpack.c.l.b16 %v1980
        %v2500 = vunpack.c.l.b16 %v1981
        %v2501 = vunpack.c.l.b16 %v1982
        %v2502 = vunpack.c.l.b16 %v1983
        %v2503 = vunpack.c.l.b16 %v1984
        %v2504 = vunpack.c.l.b16 %v1985
        %v2505 = vunpack.c.l.b16 %v1986
        %v2506 = vunpack.c.l.b16 %v1987
        %v2507 = vunpack.c.l.b16 %v1988
        %v2508 = vunpack.c.l.b16 %v1989
        %v2509 = vunpack.c.l.b16 %v1990
        %v2510 = vunpack.c.l.b16 %v1991
        %v2511 = vunpack.c.l.b16 %v1992
        %v2512 = vunpack.c.l.b16 %v1993
        %v2513 = vunpack.c.l.b16 %v1994
        %v2514 = vunpack.c.l.b16 %v1995
        %v2515 = vunpack.c.l.b16 %v1996
        %v2516 = vunpack.c.l.b16 %v1997
        %v2517 = vunpack.c.l.b16 %v1998
        %v2518 = vunpack.c.l.b16 %v1999
        %v2519 = vunpack.c.l.b16 %v2000
        %v2520 = vunpack.c.l.b16 %v2001
        %v2521 = vunpack.c.l.b16 %v2002
        %v2522 = vunpack.c.l.b16 %v2003
        %v2523 = vunpack.c.l.b16 %v2004
        %v2524 = vunpack.c.l.b16 %v2005
        %v2525 = vunpack.c.l.b16 %v2006
        %v2526 = vunpack.c.l.b16 %v2007
        %v2527 = vunpack.c.l.b16 %v2008
        %v2528 = vunpack.c.l.b16 %v2009
        %v2529 = vunpack.c.l.b16 %v2010
        %v2530 = vunpack.c.l.b16 %v2011
        %v2531 = vunpack.c.l.b16 %v2012
        %v2532 = vunpack.c.l.b16 %v2013
        %v2533 = vunpack.c.l.b16 %v2014
        %v2534 = vunpack.c.l.b16 %v2015
        %v2535 = vunpack.c.l.b16 %v2016
        %v2536 = vunpack.c.l.b16 %v2017
        %v2537 = vunpack.c.l.b16 %v2018
        %v2538 = vunpack.c.l.b16 %v2019
        %v2539 = vunpack.c.l.b16 %v2020
        %v2540 = vunpack.c.l.b16 %v2021
        %v2541 = vunpack.c.l.b16 %v2022
        %v2542 = vunpack.c.l.b16 %v2023
        %v2543 = vunpack.c.l.b16 %v2024
        %v2544 = vunpack.c.l.b16 %v2025
        %v2545 = vunpack.c.l.b16 %v2026
        %v2546 = vunpack.c.l.b16 %v2027
        %v2547 = vunpack.c.l.b16 %v2028
        %v2548 = vunpack.c.l.b16 %v2029
        %v2549 = vunpack.c.l.b16 %v2030
        %v2550 = vunpack.c.l.b16 %v2031
        %v2551 = vunpack.c.l.b16 %v2032
        %v2552 = vunpack.c.l.b16 %v2033
        %v2553 = vunpack.c.l.b16 %v2034
        %v2554 = vunpack.c.l.b16 %v2035
        %v2555 = vunpack.c.l.b16 %v2036
        %v2556 = vunpack.c.l.b16 %v2037
        %v2557 = vunpack.c.l.b16 %v2038
        %v2558 = vunpack.c.l.b16 %v2039
        %v2559 = vunpack.c.l.b16 %v2040
        %v2560 = vunpack.c.l.b16 %v2041
        %v2561 = vunpack.c.l.b16 %v2042
        %v2562 = vunpack.c.l.b16 %v2043
        %v2563 = vunpack.c.l.b16 %v2044
        %v2564 = vunpack.c.l.b16 %v2045
        %v2565 = vunpack.c.l.b16 %v2046
        %v2566 = vunpack.c.l.b16 %v2047
        %v2567 = vunpack.c.l.b16 %v2048
        %v2568 = vunpack.c.l.b16 %v2049
        %v2569 = vunpack.c.l.b16 %v2050
        %v2570 = vunpack.c.l.b16 %v2051
        %v2571 = vunpack.c.l.b16 %v2052
        %v2572 = vunpack.c.l.b16 %v2053
        %v2573 = vunpack.c.l.b16 %v2054
        %v2574 = vunpack.c.l.b16 %v2055
        %v2575 = vunpack.c.l.b16 %v2056
        %v2576 = vunpack.c.l.b16 %v2057
        %v2577 = vunpack.c.l.b16 %v2058
        %v2578 = vunpack.c.l.b16 %v2059
        %v2579 = vunpack.c.l.b16 %v2060
        %v2580 = vunpack.c.l.b16 %v2061
        %v2581 = vunpack.c.l.b16 %v2062
        %v2582 = vunpack.c.l.b16 %v2063
        %v2583 = vunpack.c.l.b16 %v2064
        %v2584 = vunpack.c.l.b16 %v2065
        %v2585 = vunpack.c.l.b16 %v2066
        %v2586 = vunpack.c.l.b16 %v2067
        %v2587 = vunpack.c.l.b16 %v2068
        %v2588 = vunpack.c.l.b16 %v2069
        %v2589 = vunpack.c.l.b16 %v2070
        %v2590 = vunpack.c.l.b16 %v2071
        %v2591 = vunpack.c.l.b16 %v2072
        %v2592 = vunpack.c.l.b16 %v2073
        %v2593 = vunpack.c.l.b16 %v2074
        %v2594 = vunpack.c.l.b16 %v2075
        %v2595 = vunpack.c.l.b16 %v2076
        %v2596 = vunpack.c.l.b16 %v2077
        %v2597 = vunpack.c.l.b16 %v2078
        %v2598 = vunpack.c.l.b16 %v2079
        %v2599 = vunpack.c.l.b16 %v2080
        %v2600 = vunpack.c.l.b16 %v2081
        %v2601 = vunpack.c.l.b16 %v2082
        %v2602 = vunpack.c.l.b16 %v2083
        %v2603 = vunpack.c.l.b16 %v2084
        %v2604 = vunpack.c.l.b16 %v2085
        %v2605 = vunpack.c.l.b16 %v2086
        %v2606 = vunpack.c.l.b16 %v2087
        %v2607 = vunpack.c.l.b16 %v2088
        %v2608 = vunpack.c.l.b16 %v2089
        %v2609 = vunpack.c.l.b16 %v2090
        %v2610 = vunpack.c.l.b16 %v2091
        %v2611 = vunpack.c.l.b16 %v2092
        %v2612 = vunpack.c.l.b16 %v2093
        %v2613 = vunpack.c.l.b16 %v2094
        %v2614 = vunpack.c.l.b16 %v2095
        %v2615 = vunpack.c.l.b16 %v2096
        %v2616 = vunpack.c.l.b16 %v2097
        %v2617 = vunpack.c.l.b16 %v2098
        %v2618 = vunpack.c.l.b16 %v2099
        %v2619 = vunpack.c.l.b16 %v2100
        %v2620 = vunpack.c.l.b16 %v2101
        %v2621 = vunpack.c.l.b16 %v2102
        %v2622 = vunpack.c.l.b16 %v2103
        %v2623 = vunpack.c.l.b16 %v2104
        %v2624 = vunpack.c.l.b16 %v2105
        %v2625 = vunpack.c.l.b16 %v2106
        %v2626 = vunpack.c.l.b16 %v2107
        %v2627 = vunpack.c.l.b16 %v2108
        %v2628 = vunpack.c.l.b16 %v2109
        %v2629 = vunpack.c.l.b16 %v2110
        %v2630 = vunpack.c.l.b16 %v2111
        %v2631 = vunpack.c.l.b16 %v2112
        %v2632 = vunpack.c.l.b16 %v2113
        %v2633 = vunpack.c.l.b16 %v2114
        %v2634 = vunpack.c.l.b16 %v2115
        %v2635 = vunpack.c.l.b16 %v2116
        %v2636 = vunpack.c.l.b16 %v2117
        %v2637 = vunpack.c.l.b16 %v2118
        %v2638 = vunpack.c.l.b16 %v2119
        %v2639 = vunpack.c.l.b16 %v2120
        %v2640 = vpack.c.b16 %v2385, %v2384
        %v2641 = vpack.c.b16 %v2387, %v2386
        %v2642 = vpack.c.b16 %v2389, %v2388
        %v2643 = vpack.c.b16 %v2391, %v2390
        %v2644 = vpack.c.b16 %v2393, %v2392
        %v2645 = vpack.c.b16 %v2395, %v2394
        %v2646 = vpack.c.b16 %v2397, %v2396
        %v2647 = vpack.c.b16 %v2399, %v2398
        %v2648 = vpack.c.b16 %v2401, %v2400
        %v2649 = vpack.c.b16 %v2403, %v2402
        %v2650 = vpack.c.b16 %v2405, %v2404
        %v2651 = vpack.c.b16 %v2407, %v2406
        %v2652 = vpack.c.b16 %v2409, %v2408
        %v2653 = vpack.c.b16 %v2411, %v2410
        %v2654 = vpack.c.b16 %v2413, %v2412
        %v2655 = vpack.c.b16 %v2415, %v2414
        %v2656 = vpack.c.b16 %v2417, %v2416
        %v2657 = vpack.c.b16 %v2419, %v2418
        %v2658 = vpack.c.b16 %v2421, %v2420
        %v2659 = vpack.c.b16 %v2423, %v2422
        %v2660 = vpack.c.b16 %v2425, %v2424
        %v2661 = vpack.c.b16 %v2427, %v2426
        %v2662 = vpack.c.b16 %v2429, %v2428
        %v2663 = vpack.c.b16 %v2431, %v2430
        %v2664 = vpack.c.b16 %v2433, %v2432
        %v2665 = vpack.c.b16 %v2435, %v2434
        %v2666 = vpack.c.b16 %v2437, %v2436
        %v2667 = vpack.c.b16 %v2439, %v2438
        %v2668 = vpack.c.b16 %v2441, %v2440
        %v2669 = vpack.c.b16 %v2443, %v2442
        %v2670 = vpack.c.b16 %v2445, %v2444
        %v2671 = vpack.c.b16 %v2447, %v2446
        %v2672 = vpack.c.b16 %v2449, %v2448
        %v2673 = vpack.c.b16 %v2451, %v2450
        %v2674 = vpack.c.b16 %v2453, %v2452
        %v2675 = vpack.c.b16 %v2455, %v2454
        %v2676 = vpack.c.b16 %v2457, %v2456
        %v2677 = vpack.c.b16 %v2459, %v2458
        %v2678 = vpack.c.b16 %v2461, %v2460
        %v2679 = vpack.c.b16 %v2463, %v2462
        %v2680 = vpack.c.b16 %v2465, %v2464
        %v2681 = vpack.c.b16 %v2467, %v2466
        %v2682 = vpack.c.b16 %v2469, %v2468
        %v2683 = vpack.c.b16 %v2471, %v2470
        %v2684 = vpack.c.b16 %v2473, %v2472
        %v2685 = vpack.c.b16 %v2475, %v2474
        %v2686 = vpack.c.b16 %v2477, %v2476
        %v2687 = vpack.c.b16 %v2479, %v2478
        %v2688 = vpack.c.b16 %v2481, %v2480
        %v2689 = vpack.c.b16 %v2483, %v2482
        %v2690 = vpack.c.b16 %v2485, %v2484
        %v2691 = vpack.c.b16 %v2487, %v2486
        %v2692 = vpack.c.b16 %v2489, %v2488
        %v2693 = vpack.c.b16 %v2491, %v2490
        %v2694 = vpack.c.b16 %v2493, %v2492
        %v2695 = vpack.c.b16 %v2495, %v2494
        %v2696 = vpack.c.b16 %v2497, %v2496
        %v2697 = vpack.c.b16 %v2499, %v2498
        %v2698 = vpack.c.b16 %v2501, %v2500
        %v2699 = vpack.c.b16 %v2503, %v2502
        %v2700 = vpack.c.b16 %v2505, %v2504
        %v2701 = vpack.c.b16 %v2507, %v2506
        %v2702 = vpack.c.b16 %v2509, %v2508
        %v2703 = vpack.c.b16 %v2511, %v2510
        %v2704 = vpack.c.b16 %v2513, %v2512
        %v2705 = vpack.c.b16 %v2515, %v2514
        %v2706 = vpack.c.b16 %v2517, %v2516
        %v2707 = vpack.c.b16 %v2519, %v2518
        %v2708 = vpack.c.b16 %v2521, %v2520
        %v2709 = vpack.c.b16 %v2523, %v2522
        %v2710 = vpack.c.b16 %v2525, %v2524
        %v2711 = vpack.c.b16 %v2527, %v2526
        %v2712 = vpack.c.b16 %v2529, %v2528
        %v2713 = vpack.c.b16 %v2531, %v2530
        %v2714 = vpack.c.b16 %v2533, %v2532
        %v2715 = vpack.c.b16 %v2535, %v2534
        %v2716 = vpack.c.b16 %v2537, %v2536
        %v2717 = vpack.c.b16 %v2539, %v2538
        %v2718 = vpack.c.b16 %v2541, %v2540
        %v2719 = vpack.c.b16 %v2543, %v2542
        %v2720 = vpack.c.b16 %v2545, %v2544
        %v2721 = vpack.c.b16 %v2547, %v2546
        %v2722 = vpack.c.b16 %v2549, %v2548
        %v2723 = vpack.c.b16 %v2551, %v2550
        %v2724 = vpack.c.b16 %v2553, %v2552
        %v2725 = vpack.c.b16 %v2555, %v2554
        %v2726 = vpack.c.b16 %v2557, %v2556
        %v2727 = vpack.c.b16 %v2559, %v2558
        %v2728 = vpack.c.b16 %v2561, %v2560
        %v2729 = vpack.c.b16 %v2563, %v2562
        %v2730 = vpack.c.b16 %v2565, %v2564
        %v2731 = vpack.c.b16 %v2567, %v2566
        %v2732 = vpack.c.b16 %v2569, %v2568
        %v2733 = vpack.c.b16 %v2571, %v2570
        %v2734 = vpack.c.b16 %v2573, %v2572
        %v2735 = vpack.c.b16 %v2575, %v2574
        %v2736 = vpack.c.b16 %v2577, %v2576
        %v2737 = vpack.c.b16 %v2579, %v2578
        %v2738 = vpack.c.b16 %v2581, %v2580
        %v2739 = vpack.c.b16 %v2583, %v2582
        %v2740 = vpack.c.b16 %v2585, %v2584
        %v2741 = vpack.c.b16 %v2587, %v2586
        %v2742 = vpack.c.b16 %v2589, %v2588
        %v2743 = vpack.c.b16 %v2591, %v2590
        %v2744 = vpack.c.b16 %v2593, %v2592
        %v2745 = vpack.c.b16 %v2595, %v2594
        %v2746 = vpack.c.b16 %v2597, %v2596
        %v2747 = vpack.c.b16 %v2599, %v2598
        %v2748 = vpack.c.b16 %v2601, %v2600
        %v2749 = vpack.c.b16 %v2603, %v2602
        %v2750 = vpack.c.b16 %v2605, %v2604
        %v2751 = vpack.c.b16 %v2607, %v2606
        %v2752 = vpack.c.b16 %v2609, %v2608
        %v2753 = vpack.c.b16 %v2611, %v2610
        %v2754 = vpack.c.b16 %v2613, %v2612
        %v2755 = vpack.c.b16 %v2615, %v2614
        %v2756 = vpack.c.b16 %v2617, %v2616
        %v2757 = vpack.c.b16 %v2619, %v2618
        %v2758 = vpack.c.b16 %v2621, %v2620
        %v2759 = vpack.c.b16 %v2623, %v2622
        %v2760 = vpack.c.b16 %v2625, %v2624
        %v2761 = vpack.c.b16 %v2627, %v2626
        %v2762 = vpack.c.b16 %v2629, %v2628
        %v2763 = vpack.c.b16 %v2631, %v2630
        %v2764 = vpack.c.b16 %v2633, %v2632
        %v2765 = vpack.c.b16 %v2635, %v2634
        %v2766 = vpack.c.b16 %v2637, %v2636
        %v2767 = vpack.c.b16 %v2639, %v2638
        %2896 = vmatprep.subr.bf16.mxu0 0
        %2897 = vmatpush1.bf16.msra.mxu0 %v2647
        %2898 = vmatprep.subr.bf16.mxu0 0
        %2899 = vmatpush1.bf16.msra.mxu0 %v2646
        %2900 = vmatprep.subr.bf16.mxu0 0
        %2901 = vmatpush1.bf16.msra.mxu0 %v2645
        %2902 = vmatprep.subr.bf16.mxu0 0
        %2903 = vmatpush1.bf16.msra.mxu0 %v2644
        %2904 = vmatprep.subr.bf16.mxu0 0
        %2905 = vmatpush1.bf16.msra.mxu0 %v2643
        %2906 = vmatprep.subr.bf16.mxu0 0
        %2907 = vmatpush1.bf16.msra.mxu0 %v2642
        %2908 = vmatprep.subr.bf16.mxu0 0
        %2909 = vmatpush1.bf16.msra.mxu0 %v2641
        %2910 = vmatprep.subr.bf16.mxu0 0
        %2911 = vmatpush1.bf16.msra.mxu0 %v2640
        %2912 = vmatprep.subr.bf16.mxu0 0
        %2913 = vmatpush2.bf16.msra.mxu0 %v2655
        %2914 = vmatprep.subr.bf16.mxu0 0
        %2915 = vmatpush2.bf16.msra.mxu0 %v2654
        %2916 = vmatprep.subr.bf16.mxu0 0
        %2917 = vmatpush2.bf16.msra.mxu0 %v2653
        %2918 = vmatprep.subr.bf16.mxu0 0
        %2919 = vmatpush2.bf16.msra.mxu0 %v2652
        %2920 = vmatprep.subr.bf16.mxu0 0
        %2921 = vmatpush2.bf16.msra.mxu0 %v2651
        %2922 = vmatprep.subr.bf16.mxu0 0
        %2923 = vmatpush2.bf16.msra.mxu0 %v2650
        %2924 = vmatprep.subr.bf16.mxu0 0
        %2925 = vmatpush2.bf16.msra.mxu0 %v2649
        %2926 = vmatprep.subr.bf16.mxu0 0
        %2927 = vmatpush2.bf16.msra.mxu0 %v2648
        %2928 = vmatprep.mubr.bf16.mxu0 %v1850
        %2929 = vmatmul.mubr.bf16.gmra.mxu0 %v1849
        %v2930 = vpop.f32.mrf.mxu0
        %v2931 = vadd.f32 %v2126, %v2930
        %v2932 = vpop.f32.mrf.mxu0
        %v2933 = vpop.f32.mrf.mxu0
        %v2934 = vpop.f32.mrf.mxu0
        %2935 = vdwg.mxu0
        %2936 = vmatprep.subr.bf16.mxu0 0
        %2937 = vmatpush1.bf16.msra.mxu0 %v2663
        %2938 = vmatprep.subr.bf16.mxu0 0
        %2939 = vmatpush1.bf16.msra.mxu0 %v2662
        %2940 = vmatprep.subr.bf16.mxu0 0
        %2941 = vmatpush1.bf16.msra.mxu0 %v2661
        %2942 = vmatprep.subr.bf16.mxu0 0
        %2943 = vmatpush1.bf16.msra.mxu0 %v2660
        %2944 = vmatprep.subr.bf16.mxu0 0
        %2945 = vmatpush1.bf16.msra.mxu0 %v2659
        %2946 = vmatprep.subr.bf16.mxu0 0
        %2947 = vmatpush1.bf16.msra.mxu0 %v2658
        %2948 = vmatprep.subr.bf16.mxu0 0
        %2949 = vmatpush1.bf16.msra.mxu0 %v2657
        %2950 = vmatprep.subr.bf16.mxu0 0
        %2951 = vmatpush1.bf16.msra.mxu0 %v2656
        %2952 = vmatprep.subr.bf16.mxu0 0
        %2953 = vmatpush2.bf16.msra.mxu0 %v2671
        %2954 = vmatprep.subr.bf16.mxu0 0
        %2955 = vmatpush2.bf16.msra.mxu0 %v2670
        %2956 = vmatprep.subr.bf16.mxu0 0
        %2957 = vmatpush2.bf16.msra.mxu0 %v2669
        %2958 = vmatprep.subr.bf16.mxu0 0
        %2959 = vmatpush2.bf16.msra.mxu0 %v2668
        %2960 = vmatprep.subr.bf16.mxu0 0
        %2961 = vmatpush2.bf16.msra.mxu0 %v2667
        %2962 = vmatprep.subr.bf16.mxu0 0
        %2963 = vmatpush2.bf16.msra.mxu0 %v2666
        %2964 = vmatprep.subr.bf16.mxu0 0
        %2965 = vmatpush2.bf16.msra.mxu0 %v2665
        %2966 = vmatprep.subr.bf16.mxu0 0
        %2967 = vmatpush2.bf16.msra.mxu0 %v2664
        %2968 = vmatprep.mubr.bf16.mxu0 %v1852
        %2969 = vmatmul.mubr.bf16.gmra.mxu0 %v1851
        %v2970 = vpop.f32.mrf.mxu0
        %v2971 = vadd.f32 %v2931, %v2970
        %v2972 = vpop.f32.mrf.mxu0
        %v2973 = vpop.f32.mrf.mxu0
        %v2974 = vpop.f32.mrf.mxu0
        %2975 = vdwg.mxu0
        %2976 = vmatprep.subr.bf16.mxu0 0
        %2977 = vmatpush1.bf16.msra.mxu0 %v2679
        %2978 = vmatprep.subr.bf16.mxu0 0
        %2979 = vmatpush1.bf16.msra.mxu0 %v2678
        %2980 = vmatprep.subr.bf16.mxu0 0
        %2981 = vmatpush1.bf16.msra.mxu0 %v2677
        %2982 = vmatprep.subr.bf16.mxu0 0
        %2983 = vmatpush1.bf16.msra.mxu0 %v2676
        %2984 = vmatprep.subr.bf16.mxu0 0
        %2985 = vmatpush1.bf16.msra.mxu0 %v2675
        %2986 = vmatprep.subr.bf16.mxu0 0
        %2987 = vmatpush1.bf16.msra.mxu0 %v2674
        %2988 = vmatprep.subr.bf16.mxu0 0
        %2989 = vmatpush1.bf16.msra.mxu0 %v2673
        %2990 = vmatprep.subr.bf16.mxu0 0
        %2991 = vmatpush1.bf16.msra.mxu0 %v2672
        %2992 = vmatprep.subr.bf16.mxu0 0
        %2993 = vmatpush2.bf16.msra.mxu0 %v2687
        %2994 = vmatprep.subr.bf16.mxu0 0
        %2995 = vmatpush2.bf16.msra.mxu0 %v2686
        %2996 = vmatprep.subr.bf16.mxu0 0
        %2997 = vmatpush2.bf16.msra.mxu0 %v2685
        %2998 = vmatprep.subr.bf16.mxu0 0
        %2999 = vmatpush2.bf16.msra.mxu0 %v2684
        %3000 = vmatprep.subr.bf16.mxu0 0
        %3001 = vmatpush2.bf16.msra.mxu0 %v2683
        %3002 = vmatprep.subr.bf16.mxu0 0
        %3003 = vmatpush2.bf16.msra.mxu0 %v2682
        %3004 = vmatprep.subr.bf16.mxu0 0
        %3005 = vmatpush2.bf16.msra.mxu0 %v2681
        %3006 = vmatprep.subr.bf16.mxu0 0
        %3007 = vmatpush2.bf16.msra.mxu0 %v2680
        %3008 = vmatprep.mubr.bf16.mxu0 %v1854
        %3009 = vmatmul.mubr.bf16.gmra.mxu0 %v1853
        %v3010 = vpop.f32.mrf.mxu0
        %v3011 = vadd.f32 %v2971, %v3010
        %v3012 = vpop.f32.mrf.mxu0
        %v3013 = vpop.f32.mrf.mxu0
        %v3014 = vpop.f32.mrf.mxu0
        %3015 = vdwg.mxu0
        %3016 = vmatprep.subr.bf16.mxu0 0
        %3017 = vmatpush1.bf16.msra.mxu0 %v2695
        %3018 = vmatprep.subr.bf16.mxu0 0
        %3019 = vmatpush1.bf16.msra.mxu0 %v2694
        %3020 = vmatprep.subr.bf16.mxu0 0
        %3021 = vmatpush1.bf16.msra.mxu0 %v2693
        %3022 = vmatprep.subr.bf16.mxu0 0
        %3023 = vmatpush1.bf16.msra.mxu0 %v2692
        %3024 = vmatprep.subr.bf16.mxu0 0
        %3025 = vmatpush1.bf16.msra.mxu0 %v2691
        %3026 = vmatprep.subr.bf16.mxu0 0
        %3027 = vmatpush1.bf16.msra.mxu0 %v2690
        %3028 = vmatprep.subr.bf16.mxu0 0
        %3029 = vmatpush1.bf16.msra.mxu0 %v2689
        %3030 = vmatprep.subr.bf16.mxu0 0
        %3031 = vmatpush1.bf16.msra.mxu0 %v2688
        %3032 = vmatprep.subr.bf16.mxu0 0
        %3033 = vmatpush2.bf16.msra.mxu0 %v2703
        %3034 = vmatprep.subr.bf16.mxu0 0
        %3035 = vmatpush2.bf16.msra.mxu0 %v2702
        %3036 = vmatprep.subr.bf16.mxu0 0
        %3037 = vmatpush2.bf16.msra.mxu0 %v2701
        %3038 = vmatprep.subr.bf16.mxu0 0
        %3039 = vmatpush2.bf16.msra.mxu0 %v2700
        %3040 = vmatprep.subr.bf16.mxu0 0
        %3041 = vmatpush2.bf16.msra.mxu0 %v2699
        %3042 = vmatprep.subr.bf16.mxu0 0
        %3043 = vmatpush2.bf16.msra.mxu0 %v2698
        %3044 = vmatprep.subr.bf16.mxu0 0
        %3045 = vmatpush2.bf16.msra.mxu0 %v2697
        %3046 = vmatprep.subr.bf16.mxu0 0
        %3047 = vmatpush2.bf16.msra.mxu0 %v2696
        %3048 = vmatprep.mubr.bf16.mxu0 %v1856
        %3049 = vmatmul.mubr.bf16.gmra.mxu0 %v1855
        %v3050 = vpop.f32.mrf.mxu0
        %v3051 = vadd.f32 %v3011, %v3050
        %v3052 = vpop.f32.mrf.mxu0
        %v3053 = vpop.f32.mrf.mxu0
        %v3054 = vpop.f32.mrf.mxu0
        %3055 = vdwg.mxu0
        %3056 = vmatprep.subr.bf16.mxu0 0
        %3057 = vmatpush1.bf16.msra.mxu0 %v2711
        %3058 = vmatprep.subr.bf16.mxu0 0
        %3059 = vmatpush1.bf16.msra.mxu0 %v2710
        %3060 = vmatprep.subr.bf16.mxu0 0
        %3061 = vmatpush1.bf16.msra.mxu0 %v2709
        %3062 = vmatprep.subr.bf16.mxu0 0
        %3063 = vmatpush1.bf16.msra.mxu0 %v2708
        %3064 = vmatprep.subr.bf16.mxu0 0
        %3065 = vmatpush1.bf16.msra.mxu0 %v2707
        %3066 = vmatprep.subr.bf16.mxu0 0
        %3067 = vmatpush1.bf16.msra.mxu0 %v2706
        %3068 = vmatprep.subr.bf16.mxu0 0
        %3069 = vmatpush1.bf16.msra.mxu0 %v2705
        %3070 = vmatprep.subr.bf16.mxu0 0
        %3071 = vmatpush1.bf16.msra.mxu0 %v2704
        %3072 = vmatprep.subr.bf16.mxu0 0
        %3073 = vmatpush2.bf16.msra.mxu0 %v2719
        %3074 = vmatprep.subr.bf16.mxu0 0
        %3075 = vmatpush2.bf16.msra.mxu0 %v2718
        %3076 = vmatprep.subr.bf16.mxu0 0
        %3077 = vmatpush2.bf16.msra.mxu0 %v2717
        %3078 = vmatprep.subr.bf16.mxu0 0
        %3079 = vmatpush2.bf16.msra.mxu0 %v2716
        %3080 = vmatprep.subr.bf16.mxu0 0
        %3081 = vmatpush2.bf16.msra.mxu0 %v2715
        %3082 = vmatprep.subr.bf16.mxu0 0
        %3083 = vmatpush2.bf16.msra.mxu0 %v2714
        %3084 = vmatprep.subr.bf16.mxu0 0
        %3085 = vmatpush2.bf16.msra.mxu0 %v2713
        %3086 = vmatprep.subr.bf16.mxu0 0
        %3087 = vmatpush2.bf16.msra.mxu0 %v2712
        %3088 = vmatprep.mubr.bf16.mxu0 %v1858
        %3089 = vmatmul.mubr.bf16.gmra.mxu0 %v1857
        %v3090 = vpop.f32.mrf.mxu0
        %v3091 = vadd.f32 %v3051, %v3090
        %v3092 = vpop.f32.mrf.mxu0
        %v3093 = vpop.f32.mrf.mxu0
        %v3094 = vpop.f32.mrf.mxu0
        %3095 = vdwg.mxu0
        %3096 = vmatprep.subr.bf16.mxu0 0
        %3097 = vmatpush1.bf16.msra.mxu0 %v2727
        %3098 = vmatprep.subr.bf16.mxu0 0
        %3099 = vmatpush1.bf16.msra.mxu0 %v2726
        %3100 = vmatprep.subr.bf16.mxu0 0
        %3101 = vmatpush1.bf16.msra.mxu0 %v2725
        %3102 = vmatprep.subr.bf16.mxu0 0
        %3103 = vmatpush1.bf16.msra.mxu0 %v2724
        %3104 = vmatprep.subr.bf16.mxu0 0
        %3105 = vmatpush1.bf16.msra.mxu0 %v2723
        %3106 = vmatprep.subr.bf16.mxu0 0
        %3107 = vmatpush1.bf16.msra.mxu0 %v2722
        %3108 = vmatprep.subr.bf16.mxu0 0
        %3109 = vmatpush1.bf16.msra.mxu0 %v2721
        %3110 = vmatprep.subr.bf16.mxu0 0
        %3111 = vmatpush1.bf16.msra.mxu0 %v2720
        %3112 = vmatprep.subr.bf16.mxu0 0
        %3113 = vmatpush2.bf16.msra.mxu0 %v2735
        %3114 = vmatprep.subr.bf16.mxu0 0
        %3115 = vmatpush2.bf16.msra.mxu0 %v2734
        %3116 = vmatprep.subr.bf16.mxu0 0
        %3117 = vmatpush2.bf16.msra.mxu0 %v2733
        %3118 = vmatprep.subr.bf16.mxu0 0
        %3119 = vmatpush2.bf16.msra.mxu0 %v2732
        %3120 = vmatprep.subr.bf16.mxu0 0
        %3121 = vmatpush2.bf16.msra.mxu0 %v2731
        %3122 = vmatprep.subr.bf16.mxu0 0
        %3123 = vmatpush2.bf16.msra.mxu0 %v2730
        %3124 = vmatprep.subr.bf16.mxu0 0
        %3125 = vmatpush2.bf16.msra.mxu0 %v2729
        %3126 = vmatprep.subr.bf16.mxu0 0
        %3127 = vmatpush2.bf16.msra.mxu0 %v2728
        %3128 = vmatprep.mubr.bf16.mxu0 %v1860
        %3129 = vmatmul.mubr.bf16.gmra.mxu0 %v1859
        %v3130 = vpop.f32.mrf.mxu0
        %v3131 = vadd.f32 %v3091, %v3130
        %v3132 = vpop.f32.mrf.mxu0
        %v3133 = vpop.f32.mrf.mxu0
        %v3134 = vpop.f32.mrf.mxu0
        %3135 = vdwg.mxu0
        %3136 = vmatprep.subr.bf16.mxu0 0
        %3137 = vmatpush1.bf16.msra.mxu0 %v2743
        %3138 = vmatprep.subr.bf16.mxu0 0
        %3139 = vmatpush1.bf16.msra.mxu0 %v2742
        %3140 = vmatprep.subr.bf16.mxu0 0
        %3141 = vmatpush1.bf16.msra.mxu0 %v2741
        %3142 = vmatprep.subr.bf16.mxu0 0
        %3143 = vmatpush1.bf16.msra.mxu0 %v2740
        %3144 = vmatprep.subr.bf16.mxu0 0
        %3145 = vmatpush1.bf16.msra.mxu0 %v2739
        %3146 = vmatprep.subr.bf16.mxu0 0
        %3147 = vmatpush1.bf16.msra.mxu0 %v2738
        %3148 = vmatprep.subr.bf16.mxu0 0
        %3149 = vmatpush1.bf16.msra.mxu0 %v2737
        %3150 = vmatprep.subr.bf16.mxu0 0
        %3151 = vmatpush1.bf16.msra.mxu0 %v2736
        %3152 = vmatprep.subr.bf16.mxu0 0
        %3153 = vmatpush2.bf16.msra.mxu0 %v2751
        %3154 = vmatprep.subr.bf16.mxu0 0
        %3155 = vmatpush2.bf16.msra.mxu0 %v2750
        %3156 = vmatprep.subr.bf16.mxu0 0
        %3157 = vmatpush2.bf16.msra.mxu0 %v2749
        %3158 = vmatprep.subr.bf16.mxu0 0
        %3159 = vmatpush2.bf16.msra.mxu0 %v2748
        %3160 = vmatprep.subr.bf16.mxu0 0
        %3161 = vmatpush2.bf16.msra.mxu0 %v2747
        %3162 = vmatprep.subr.bf16.mxu0 0
        %3163 = vmatpush2.bf16.msra.mxu0 %v2746
        %3164 = vmatprep.subr.bf16.mxu0 0
        %3165 = vmatpush2.bf16.msra.mxu0 %v2745
        %3166 = vmatprep.subr.bf16.mxu0 0
        %3167 = vmatpush2.bf16.msra.mxu0 %v2744
        %3168 = vmatprep.mubr.bf16.mxu0 %v1862
        %3169 = vmatmul.mubr.bf16.gmra.mxu0 %v1861
        %v3170 = vpop.f32.mrf.mxu0
        %v3171 = vadd.f32 %v3131, %v3170
        %v3172 = vpop.f32.mrf.mxu0
        %v3173 = vpop.f32.mrf.mxu0
        %v3174 = vpop.f32.mrf.mxu0
        %3175 = vdwg.mxu0
        %3176 = vmatprep.subr.bf16.mxu0 0
        %3177 = vmatpush1.bf16.msra.mxu0 %v2759
        %3178 = vmatprep.subr.bf16.mxu0 0
        %3179 = vmatpush1.bf16.msra.mxu0 %v2758
        %3180 = vmatprep.subr.bf16.mxu0 0
        %3181 = vmatpush1.bf16.msra.mxu0 %v2757
        %3182 = vmatprep.subr.bf16.mxu0 0
        %3183 = vmatpush1.bf16.msra.mxu0 %v2756
        %3184 = vmatprep.subr.bf16.mxu0 0
        %3185 = vmatpush1.bf16.msra.mxu0 %v2755
        %3186 = vmatprep.subr.bf16.mxu0 0
        %3187 = vmatpush1.bf16.msra.mxu0 %v2754
        %3188 = vmatprep.subr.bf16.mxu0 0
        %3189 = vmatpush1.bf16.msra.mxu0 %v2753
        %3190 = vmatprep.subr.bf16.mxu0 0
        %3191 = vmatpush1.bf16.msra.mxu0 %v2752
        %3192 = vmatprep.subr.bf16.mxu0 0
        %3193 = vmatpush2.bf16.msra.mxu0 %v2767
        %3194 = vmatprep.subr.bf16.mxu0 0
        %3195 = vmatpush2.bf16.msra.mxu0 %v2766
        %3196 = vmatprep.subr.bf16.mxu0 0
        %3197 = vmatpush2.bf16.msra.mxu0 %v2765
        %3198 = vmatprep.subr.bf16.mxu0 0
        %3199 = vmatpush2.bf16.msra.mxu0 %v2764
        %3200 = vmatprep.subr.bf16.mxu0 0
        %3201 = vmatpush2.bf16.msra.mxu0 %v2763
        %3202 = vmatprep.subr.bf16.mxu0 0
        %3203 = vmatpush2.bf16.msra.mxu0 %v2762
        %3204 = vmatprep.subr.bf16.mxu0 0
        %3205 = vmatpush2.bf16.msra.mxu0 %v2761
        %3206 = vmatprep.subr.bf16.mxu0 0
        %3207 = vmatpush2.bf16.msra.mxu0 %v2760
        %3208 = vmatprep.mubr.bf16.mxu0 %v1864
        %3209 = vmatmul.mubr.bf16.gmra.mxu0 %v1863
        %v3210 = vpop.f32.mrf.mxu0
        %v3211 = vadd.f32 %v3171, %v3210
        %v3212 = vpop.f32.mrf.mxu0
        %v3213 = vpop.f32.mrf.mxu0
        %v3214 = vpop.f32.mrf.mxu0
        %3215 = vdwg.mxu0
        %v3216 = vadd.f32 %v1224, %v3211
        %v3217 = vsel %vm870, %v3216, 0.0
        %3218 = vadd.xlane.f32.xlu0 %v3217
        %v3219 = vpop.xlane.xlu0 %3218
        %v3220 = vmul.f32 %v3219, %v1198
        %v3221 = vsub.f32 %v3216, %v3220
        %v3222 = vmul.f32 %v3221, %v3221
        %v3223 = vsel %vm870, %v3222, 0.0
        %3224 = vadd.xlane.f32.xlu0 %v3223
        %v3225 = vpop.xlane.xlu0 %3224
        %v3226 = vmul.f32 %v3225, %v1198
        %v3227 = vadd.f32 %v3226, 1e-05
        %v3228 = vrsqrt.pop %v3227
        %v3229 = vmul.f32 %v3221, %v3228
        %v3230 = vld [vmem:[%s747] sm:$0x1]
        %v3232 = vlaneseq
        %v3233 = vshrl.u32 %v3232, 7
        %v3234 = vsub.s32 0, %v3233
        %v3235 = vrot.slane %v3230, %v3234
        %v3237 = vmul.f32 %v3229, %v3235
        %v3238 = vld [vmem:[%s750] sm:$0x1]
        %v3240 = vlaneseq
        %v3241 = vshrl.u32 %v3240, 7
        %v3242 = vsub.s32 0, %v3241
        %v3243 = vrot.slane %v3238, %v3242
        %v3245 = vadd.f32 %v3237, %v3243
        %3246 = vst.msk [vmem:[#allocation2] sm:$0xff] %vm870, %v3245
        %p3247 = scmp.eq.s32.totalorder %s36, 1
        // Predicated region
        $region93: #{text_gen_forward.1} parent=87 // pred_check
          %p3248 = pneg %p3247
        $region94: #{text_gen_forward.1} parent=87 // pred_check_branch
          %3250 = sbr.rel (%p3248) target = $region96
        $region95: #{text_gen_forward.1} parent=87 // pred_region
          %v3251 = vpack.c.bf16 %v3245, %v3245
          %v3252 = vld [vmem:[%s15] sm:$0xf]
          %v3253 = vld [vmem:[%s15 + $0x4] sm:$0xf]
          %v3254 = vld [vmem:[%s15 + $0x8] sm:$0xf]
          %v3255 = vld [vmem:[%s15 + $0xc] sm:$0xf]
          %v3256 = vld [vmem:[%s16] sm:$0x1]
          %v3258 = vlaneseq
          %v3259 = vshrl.u32 %v3258, 7
          %v3260 = vsub.s32 0, %v3259
          %v3261 = vrot.slane %v3256, %v3260
          %v3267 = vunpack.c.l.b16 %v3252
          %v3268 = vunpack.c.l.b16 %v3253
          %v3269 = vunpack.c.l.b16 %v3254
          %v3270 = vunpack.c.l.b16 %v3255
          %v3271 = vpack.c.b16 %v3268, %v3267
          %v3272 = vpack.c.b16 %v3270, %v3269
          %v3276 = vsel %vm870, %v3251, 0
          %3278 = vmatprep.subr.bf16.mxu0 0
          %3279 = vmatpush1.bf16.msra.mxu0 0
          %3280 = vmatprep.subr.bf16.mxu0 0
          %3281 = vmatpush1.bf16.msra.mxu0 0
          %3282 = vmatprep.subr.bf16.mxu0 0
          %3283 = vmatpush1.bf16.msra.mxu0 0
          %3284 = vmatprep.subr.bf16.mxu0 0
          %3285 = vmatpush1.bf16.msra.mxu0 0
          %3286 = vmatprep.subr.bf16.mxu0 0
          %3287 = vmatpush1.bf16.msra.mxu0 0
          %3288 = vmatprep.subr.bf16.mxu0 0
          %3289 = vmatpush1.bf16.msra.mxu0 0
          %3290 = vmatprep.subr.bf16.mxu0 0
          %3291 = vmatpush1.bf16.msra.mxu0 %v3272
          %3292 = vmatprep.subr.bf16.mxu0 0
          %3293 = vmatpush1.bf16.msra.mxu0 %v3271
          %3294 = vmatprep.subr.bf16.mxu0 0
          %3295 = vmatpush2.bf16.msra.mxu0 0
          %3296 = vmatprep.subr.bf16.mxu0 0
          %3297 = vmatpush2.bf16.msra.mxu0 0
          %3298 = vmatprep.subr.bf16.mxu0 0
          %3299 = vmatpush2.bf16.msra.mxu0 0
          %3300 = vmatprep.subr.bf16.mxu0 0
          %3301 = vmatpush2.bf16.msra.mxu0 0
          %3302 = vmatprep.subr.bf16.mxu0 0
          %3303 = vmatpush2.bf16.msra.mxu0 0
          %3304 = vmatprep.subr.bf16.mxu0 0
          %3305 = vmatpush2.bf16.msra.mxu0 0
          %3306 = vmatprep.subr.bf16.mxu0 0
          %3307 = vmatpush2.bf16.msra.mxu0 0
          %3308 = vmatprep.subr.bf16.mxu0 0
          %3309 = vmatpush2.bf16.msra.mxu0 0
          %3310 = vmatprep.mubr.bf16.mxu0 0
          %3311 = vmatmul.mubr.bf16.gmra.mxu0 %v3276
          %v3312 = vpop.f32.mrf.mxu0
          %v3313 = vadd.f32 %v3261, %v3312
          %v3314 = vpop.f32.mrf.mxu0
          %v3315 = vpop.f32.mrf.mxu0
          %v3316 = vpop.f32.mrf.mxu0
          %3317 = vdwg.mxu0
          %3318 = vst [vmem:[%s701] sm:$0xff] %v3313
        $region96: #{text_gen_forward.1} parent=87 // pred_fallthru
          _
        %s3319 = sand.u32 %s473, 1
        %s3320 = scalar_lea.sflag [#allocation4], %s3319
        %s3321 = sand.u32 %s473, 1
        %s3322 = smul.addr %s3321, 8
        %s3323 = scalar_lea.vmem [#allocation3], %s3322
        // Predicated region
        $region97: #{text_gen_forward.1} parent=87 // pred_check
          %p3324 = pneg %p483
        $region98: #{text_gen_forward.1} parent=87 // pred_check_branch
          %3326 = sbr.rel (%p3324) target = $region100
        $region99: #{text_gen_forward.1} parent=87 // pred_region
          %s3328 = ssub.s32 128, 128
          %3329 = vsyncadd %s3320, %s3328
          %s3330 = smul.addr %s35, 128
          %s3331 = scalar_lea.hbm %s17, %s3330
          %s3333 = sshll.u32 %s3323, 4
          %s3334 = int_to_ptr.vmem [resolvable:$true] %s3333
          %3336 = dma.vmem_to_hbm [thread:$0]  %s3334, 128, %s3331, %s3320
        $region100: #{text_gen_forward.1} parent=87 // pred_fallthru
          _
      $region88: #{text_gen_forward.1} parent=5 // pred_fallthru
        _
      %p3337 = scmp.le.s32.totalorder 2, %s26
      // Predicated region
      $region101: #{text_gen_forward.1} parent=5 // pred_check
        %p3338 = pneg %p3337
      $region102: #{text_gen_forward.1} parent=5 // pred_check_branch
        %3340 = sbr.rel (%p3338) target = $region104
      $region103: #{text_gen_forward.1} parent=5 // pred_region
        %s3341 = ssub.s32 %s26, 2
        // Predicated region
        $region105: #{text_gen_forward.1} parent=103 // pred_check
          %p3342 = pneg %p489
        $region106: #{text_gen_forward.1} parent=103 // pred_check_branch
          %3344 = sbr.rel (%p3342) target = $region108
        $region107: #{text_gen_forward.1} parent=103 // pred_region
          %s3345 = sand.u32 %s474, 1
          %s3346 = scalar_lea.sflag [#allocation4], %s3345
          %s3347 = sand.u32 %s474, 1
          %s3348 = smul.addr %s3347, 8
          %s3349 = scalar_lea.vmem [#allocation3], %s3348
          %3350 = dma.done %s3346, 128
        $region108: #{text_gen_forward.1} parent=103 // pred_fallthru
          _
      $region104: #{text_gen_forward.1} parent=5 // pred_fallthru
        _
    $region6: #{text_gen_forward.1} parent=1 // loop_footer
      %s30 = sadd.s32 1, %s26
    $region7: #{text_gen_forward.1} parent=1 // loop_footer_branch
      %25 = sbr.rel target = $region3
    $region8: #{text_gen_forward.1} parent=1 // loop_exit
      _
    %3351 = vsyncpa [#allocation4], 1
    %s3352 = scalar_lea.sflag [#allocation4], 1
    %3353 = vsyncpa %s3352, 1

</llo_original>
